<compile_context>
chip_gen: v5e
topology: v5e:2x2
jax: 0.10.0
libtpu: 0.0.40
codegen_flags: <defaults>
</compile_context>

<pallas_src>
import math

import jax
import jax.numpy as jnp
from jax import lax
from jax.experimental import pallas as pl
from jax.experimental.pallas import tpu as pltpu

HS_MIN = 1e-7
MASK_BOUND = 5e-8
# torch loops until all(|high-low| < 1e-6); the gap starts at 2e4 and halves
# each iteration, so it always breaks after exactly 35 iterations.
BISECT_ITERS = 35
_SQRT2 = 1.4142135623730951
_HALF_LOG_2PI = 0.9189385332046727  # log(sqrt(2*pi))


def _softplus(z):
    # numerically stable softplus, elementwise (VPU/EUP only)
    return jnp.maximum(z, 0.0) + jnp.log(1.0 + jnp.exp(-jnp.abs(z)))


def _erfinv(x):
    # Giles (2010) single-precision erfinv approximation (elementwise).
    w = -jnp.log((1.0 - x) * (1.0 + x))
    ws = w - 2.5
    p1 = 2.81022636e-08
    p1 = 3.43273939e-07 + p1 * ws
    p1 = -3.5233877e-06 + p1 * ws
    p1 = -4.39150654e-06 + p1 * ws
    p1 = 0.00021858087 + p1 * ws
    p1 = -0.00125372503 + p1 * ws
    p1 = -0.00417768164 + p1 * ws
    p1 = 0.246640727 + p1 * ws
    p1 = 1.50140941 + p1 * ws
    wb = jnp.sqrt(jnp.maximum(w, 5.0)) - 3.0
    p2 = -0.000200214257
    p2 = 0.000100950558 + p2 * wb
    p2 = 0.00134934322 + p2 * wb
    p2 = -0.00367342844 + p2 * wb
    p2 = 0.00573950773 + p2 * wb
    p2 = -0.0076224613 + p2 * wb
    p2 = 0.00943887047 + p2 * wb
    p2 = 1.00167406 + p2 * wb
    p2 = 2.83297682 + p2 * wb
    return jnp.where(w < 5.0, p1, p2) * x


def _lse_list(terms):
    # logsumexp over a python list of equally-shaped arrays (tree max + sum).
    m = terms[0]
    for t in terms[1:]:
        m = jnp.maximum(m, t)
    s = jnp.exp(terms[0] - m)
    for t in terms[1:]:
        s = s + jnp.exp(t - m)
    return jnp.log(s) + m


def _inverse_from_logs(cdf, log_cdf, log_ccdf):
    # Inverse-only version of GaussianizationLayer.inverse_normal_cdf
    # (no log-determinant work) -- used inside the bisection loop.
    good = (cdf > MASK_BOUND) & (cdf < 1.0 - MASK_BOUND)
    cdf_good = jnp.where(good, cdf, 0.5)
    inv = _SQRT2 * _erfinv(2.0 * cdf_good - 1.0)
    bad_r = jnp.where(cdf >= 1.0 - MASK_BOUND, log_ccdf, 0.0)
    bad_l = jnp.where(cdf <= MASK_BOUND, log_cdf, 0.0)
    return inv + jnp.sqrt(-2.0 * bad_r) - jnp.sqrt(-2.0 * bad_l)


def _invdet_from_logs(cdf, log_cdf, log_ccdf):
    # Full (inverse, log_g) following the reference mask arithmetic.
    good = ((cdf > MASK_BOUND) & (cdf < 1.0 - MASK_BOUND)).astype(cdf.dtype)
    mask_l = (cdf <= MASK_BOUND).astype(cdf.dtype)
    mask_r = (cdf >= 1.0 - MASK_BOUND).astype(cdf.dtype)
    cdf_good = cdf * good + 0.5 * (1.0 - good)
    inv = _SQRT2 * _erfinv(2.0 * cdf_good - 1.0)
    bad_r = log_ccdf * mask_r
    bad_l = log_cdf * mask_l
    inv = inv + jnp.sqrt(-2.0 * bad_r) - jnp.sqrt(-2.0 * bad_l)
    logd_good = (-0.5 * inv * inv - _HALF_LOG_2PI) * good
    cbl = bad_l - (1.0 - mask_l)
    logd_left = (jnp.log(jnp.sqrt(-2.0 * cbl)) - log_cdf) * mask_l
    cbr = bad_r - (1.0 - mask_r)
    logd_right = (jnp.log(jnp.sqrt(-2.0 * cbr)) - log_ccdf) * mask_r
    return inv, logd_good + logd_left + logd_right


def _gaussianization_kernel(dp_ref, ih_ref, lhc_ref, u_ref, x_ref, ld_ref):
    di = pl.program_id(0)            # feature dimension handled by this step
    k_num = dp_ref.shape[0]
    inv_k = 1.0 / k_num
    log_k = math.log(k_num)

    u = u_ref[0]                     # (TB, 128) lane-dense batch slab

    # Per-dim mixture parameters as SMEM scalars (broadcast for free).
    dps = [dp_ref[k, di] for k in range(k_num)]
    ihs = [ih_ref[k, di] for k in range(k_num)]
    lhs = [lhc_ref[k, di] for k in range(k_num)]

    def linear_cdf_sums(x):
        # Running-sum accumulation over K keeps the live vreg set small.
        s_cdf = jnp.zeros_like(x)
        s_ccdf = jnp.zeros_like(x)
        for k in range(k_num):
            z = (x - dps[k]) * ihs[k]
            e = jnp.exp(-jnp.abs(z))         # never overflows
            r = 1.0 / (1.0 + e)              # exact divide: keeps the root accurate
            er = e * r
            pos = z >= 0.0
            s_cdf = s_cdf + jnp.where(pos, r, er)     # sigmoid(z)
            s_ccdf = s_ccdf + jnp.where(pos, er, r)   # sigmoid(-z)
        return s_cdf, s_ccdf

    def inverse_only(x):
        s_cdf, s_ccdf = linear_cdf_sums(x)
        cdf = s_cdf * inv_k
        log_cdf = jnp.log(s_cdf) - log_k
        log_ccdf = jnp.log(s_ccdf) - log_k
        return _inverse_from_logs(cdf, log_cdf, log_ccdf)

    def body(_, carry):
        low, high = carry
        mid = 0.5 * (low + high)
        val = inverse_only(mid)
        low = jnp.where(val < u, mid, low)
        high = jnp.where(val > u, mid, high)
        return low, high

    low0 = jnp.full_like(u, -10000.0)
    high0 = jnp.full_like(u, 10000.0)
    low, high = lax.fori_loop(0, BISECT_ITERS, body, (low0, high0))
    x = 0.5 * (low + high)

    # One full, reference-faithful log-space evaluation for the log-det terms.
    a_t, b_t, c_t = [], [], []
    for k in range(k_num):
        z = (x - dps[k]) * ihs[k]
        sp = _softplus(-z)
        a_t.append(-sp)
        b_t.append(-z - sp)
        c_t.append(-z - 2.0 * sp - lhs[k])
    log_cdf = _lse_list(a_t) - log_k
    log_ccdf = _lse_list(b_t) - log_k
    log_pdf = _lse_list(c_t) - log_k

    cdf = jnp.exp(log_cdf)
    _inv, log_g = _invdet_from_logs(cdf, log_cdf, log_ccdf)

    x_ref[0] = x
    ld_ref[0] = log_pdf - log_g       # per-(dim, batch); summed over dim in wrapper


def gaussianization_forward(u, datapoints, log_hs):
    u = u.astype(jnp.float32)
    datapoints = datapoints.astype(jnp.float32)
    log_hs = log_hs.astype(jnp.float32)
    n, d = u.shape
    k = datapoints.shape[0]
    assert datapoints.shape == (k, d) and log_hs.shape == (k, d)

    # Precompute the tiny (K, D) per-datapoint parameters in the wrapper.
    hs = jnp.maximum(jnp.exp(log_hs), HS_MIN)
    inv_hs = 1.0 / hs
    lh_c = jnp.maximum(log_hs, math.log(HS_MIN))

    # Lane-dense layout: batch fills the 128-lane axis (and TB sublanes).
    n_pad = -(-n // 128) * 128
    u_p = jnp.pad(u, ((0, n_pad - n), (0, 0))) if n_pad != n else u
    nb = n_pad // 128
    if nb % 8 == 0:
        tb = 8
        for cand in (64, 32, 16):
            if nb % cand == 0:
                tb = cand
                break
    else:
        tb = nb
    u_rs = u_p.T.reshape(d, nb, 128)

    blk = pl.BlockSpec((1, tb, 128), lambda di, bj: (di, bj, 0))
    param_spec = pl.BlockSpec((k, d), lambda di, bj: (0, 0),
                              memory_space=pltpu.MemorySpace.SMEM)

    x_rs, ld_rs = pl.pallas_call(
        _gaussianization_kernel,
        out_shape=(jax.ShapeDtypeStruct((d, nb, 128), jnp.float32),
                   jax.ShapeDtypeStruct((d, nb, 128), jnp.float32)),
        grid=(d, nb // tb),
        in_specs=[param_spec, param_spec, param_spec, blk],
        out_specs=(blk, blk),
        compiler_params=pltpu.CompilerParams(
            dimension_semantics=("parallel", "parallel")),
    )(datapoints, inv_hs, lh_c, u_rs)

    x = x_rs.reshape(d, n_pad).T[:n]
    neg_logd = -ld_rs.reshape(d, n_pad).sum(axis=0)[:n]
    return x, neg_logd


# ----------------------------------------------------------------------------
# Pure-JAX reference mirroring GaussianizationLayer.forward (normal_cdf).
# ----------------------------------------------------------------------------
def _logsumexp0(a):
    m = jnp.max(a, axis=0)
    return jnp.log(jnp.sum(jnp.exp(a - m), axis=0)) + m


def _mixture_logs(x, dp, inv_hs, lh_c):
    x_norm = (x[None, :, :] - dp[:, None, :]) * inv_hs[:, None, :]
    sp = _softplus(-x_norm)
    log_k = math.log(dp.shape[0])
    log_cdf = _logsumexp0(-sp) - log_k
    log_ccdf = _logsumexp0(-x_norm - sp) - log_k
    log_pdf = _logsumexp0(-x_norm - lh_c[:, None, :] - 2.0 * sp) - log_k
    return log_cdf, log_ccdf, log_pdf


def _inverse_normal_cdf(x, dp, inv_hs, lh_c):
    log_cdf, log_ccdf, log_pdf = _mixture_logs(x, dp, inv_hs, lh_c)
    cdf = jnp.exp(log_cdf)
    inverse, log_g = _invdet_from_logs(cdf, log_cdf, log_ccdf)
    logd = jnp.sum(log_pdf - log_g, axis=-1)
    return inverse, logd


def reference_forward(u, datapoints, log_hs):
    hs = jnp.maximum(jnp.exp(log_hs), HS_MIN)
    inv_hs = 1.0 / hs
    lh_c = jnp.maximum(log_hs, math.log(HS_MIN))
    low = jnp.full_like(u, -10000.0)
    high = jnp.full_like(u, 10000.0)
    for _ in range(BISECT_ITERS):
        mid = 0.5 * (low + high)
        val, _ = _inverse_normal_cdf(mid, datapoints, inv_hs, lh_c)
        low = jnp.where(val < u, mid, low)
        high = jnp.where(val > u, mid, high)
    x = 0.5 * (low + high)
    _, logd = _inverse_normal_cdf(x, datapoints, inv_hs, lh_c)
    return x, -logd


if __name__ == "__main__":
    dim = 4           # self.dim
    dp_num = 16       # self.datapoint_num
    batch = 1024      # batch fills the 8x128 vreg per feature dimension

    key = jax.random.PRNGKey(0)
    k1, k2 = jax.random.split(key)

    # Deterministic parameter init (shapes from __init__). The module inits
    # datapoints = ones; add a small deterministic perturbation so the kernel
    # mixture is non-degenerate.
    bandwidth = (4.0 * math.sqrt(math.pi) / (math.pi ** 4 * dp_num)) ** 0.2
    datapoints = (jnp.ones((dp_num, dim), jnp.float32)
                  + 0.5 * jax.random.normal(k1, (dp_num, dim), jnp.float32))
    log_hs = jnp.full((dp_num, dim), math.log(bandwidth), jnp.float32)

    # Standard-normal latents in the operating range (+-3.5; beyond that the
    # float32 quantization of the CDF dominates in both implementations).
    u = jax.random.truncated_normal(k2, -3.5, 3.5, (batch, dim), jnp.float32)

    x, neg_logd = gaussianization_forward(u, datapoints, log_hs)
    jax.block_until_ready((x, neg_logd))

    x_ref, neg_logd_ref = reference_forward(u, datapoints, log_hs)

    assert x.shape == (batch, dim) and neg_logd.shape == (batch,)
    assert bool(jnp.all(jnp.isfinite(x))) and bool(jnp.all(jnp.isfinite(neg_logd)))
    assert bool(jnp.allclose(x, x_ref, atol=1e-3, rtol=1e-3))
    assert bool(jnp.allclose(neg_logd, neg_logd_ref, atol=1e-3, rtol=1e-3))

    print("KERNEL_OK")
</pallas_src>

<mosaic_0001>
module attributes {stable_mosaic.version = 11 : i64} {
  func.func @_gaussianization_kernel(%arg0: i32, %arg1: i32, %arg2: memref<16x4xf32, #tpu.memory_space<smem>>, %arg3: memref<16x4xf32, #tpu.memory_space<smem>>, %arg4: memref<16x4xf32, #tpu.memory_space<smem>>, %arg5: memref<1x8x128xf32, #tpu.memory_space<vmem>>, %arg6: memref<1x8x128xf32, #tpu.memory_space<vmem>>, %arg7: memref<1x8x128xf32, #tpu.memory_space<vmem>>) attributes {dimension_semantics = [#tpu.dimension_semantics<parallel>, #tpu.dimension_semantics<parallel>], iteration_bounds = array<i64: 4, 1>, scalar_prefetch = 0 : i64, scratch_operands = 0 : i64, tpu.core_type = #tpu.core_type<tc>, window_params = [{transform_indices = @transform_0, window_bounds = array<i64: 16, 4>}, {transform_indices = @transform_1, window_bounds = array<i64: 16, 4>}, {transform_indices = @transform_2, window_bounds = array<i64: 16, 4>}, {transform_indices = @transform_3, window_bounds = array<i64: 1, 8, 128>}, {transform_indices = @transform_4, window_bounds = array<i64: 1, 8, 128>}, {transform_indices = @transform_5, window_bounds = array<i64: 1, 8, 128>}]} {
    %c0 = arith.constant 0 : index
    %c0_0 = arith.constant 0 : index
    %c0_1 = arith.constant 0 : index
    %0 = vector.load %arg5[%c0, %c0_0, %c0_1] : memref<1x8x128xf32, #tpu.memory_space<vmem>>, vector<1x8x128xf32>
    %1 = vector.shape_cast %0 : vector<1x8x128xf32> to vector<8x128xf32>
    %c0_2 = arith.constant 0 : index
    %2 = arith.index_cast %arg0 : i32 to index
    %3 = memref.load %arg2[%c0_2, %2] : memref<16x4xf32, #tpu.memory_space<smem>>
    %c1 = arith.constant 1 : index
    %4 = arith.index_cast %arg0 : i32 to index
    %5 = memref.load %arg2[%c1, %4] : memref<16x4xf32, #tpu.memory_space<smem>>
    %c2 = arith.constant 2 : index
    %6 = arith.index_cast %arg0 : i32 to index
    %7 = memref.load %arg2[%c2, %6] : memref<16x4xf32, #tpu.memory_space<smem>>
    %c3 = arith.constant 3 : index
    %8 = arith.index_cast %arg0 : i32 to index
    %9 = memref.load %arg2[%c3, %8] : memref<16x4xf32, #tpu.memory_space<smem>>
    %c4 = arith.constant 4 : index
    %10 = arith.index_cast %arg0 : i32 to index
    %11 = memref.load %arg2[%c4, %10] : memref<16x4xf32, #tpu.memory_space<smem>>
    %c5 = arith.constant 5 : index
    %12 = arith.index_cast %arg0 : i32 to index
    %13 = memref.load %arg2[%c5, %12] : memref<16x4xf32, #tpu.memory_space<smem>>
    %c6 = arith.constant 6 : index
    %14 = arith.index_cast %arg0 : i32 to index
    %15 = memref.load %arg2[%c6, %14] : memref<16x4xf32, #tpu.memory_space<smem>>
    %c7 = arith.constant 7 : index
    %16 = arith.index_cast %arg0 : i32 to index
    %17 = memref.load %arg2[%c7, %16] : memref<16x4xf32, #tpu.memory_space<smem>>
    %c8 = arith.constant 8 : index
    %18 = arith.index_cast %arg0 : i32 to index
    %19 = memref.load %arg2[%c8, %18] : memref<16x4xf32, #tpu.memory_space<smem>>
    %c9 = arith.constant 9 : index
    %20 = arith.index_cast %arg0 : i32 to index
    %21 = memref.load %arg2[%c9, %20] : memref<16x4xf32, #tpu.memory_space<smem>>
    %c10 = arith.constant 10 : index
    %22 = arith.index_cast %arg0 : i32 to index
    %23 = memref.load %arg2[%c10, %22] : memref<16x4xf32, #tpu.memory_space<smem>>
    %c11 = arith.constant 11 : index
    %24 = arith.index_cast %arg0 : i32 to index
    %25 = memref.load %arg2[%c11, %24] : memref<16x4xf32, #tpu.memory_space<smem>>
    %c12 = arith.constant 12 : index
    %26 = arith.index_cast %arg0 : i32 to index
    %27 = memref.load %arg2[%c12, %26] : memref<16x4xf32, #tpu.memory_space<smem>>
    %c13 = arith.constant 13 : index
    %28 = arith.index_cast %arg0 : i32 to index
    %29 = memref.load %arg2[%c13, %28] : memref<16x4xf32, #tpu.memory_space<smem>>
    %c14 = arith.constant 14 : index
    %30 = arith.index_cast %arg0 : i32 to index
    %31 = memref.load %arg2[%c14, %30] : memref<16x4xf32, #tpu.memory_space<smem>>
    %c15 = arith.constant 15 : index
    %32 = arith.index_cast %arg0 : i32 to index
    %33 = memref.load %arg2[%c15, %32] : memref<16x4xf32, #tpu.memory_space<smem>>
    %c0_3 = arith.constant 0 : index
    %34 = arith.index_cast %arg0 : i32 to index
    %35 = memref.load %arg3[%c0_3, %34] : memref<16x4xf32, #tpu.memory_space<smem>>
    %c1_4 = arith.constant 1 : index
    %36 = arith.index_cast %arg0 : i32 to index
    %37 = memref.load %arg3[%c1_4, %36] : memref<16x4xf32, #tpu.memory_space<smem>>
    %c2_5 = arith.constant 2 : index
    %38 = arith.index_cast %arg0 : i32 to index
    %39 = memref.load %arg3[%c2_5, %38] : memref<16x4xf32, #tpu.memory_space<smem>>
    %c3_6 = arith.constant 3 : index
    %40 = arith.index_cast %arg0 : i32 to index
    %41 = memref.load %arg3[%c3_6, %40] : memref<16x4xf32, #tpu.memory_space<smem>>
    %c4_7 = arith.constant 4 : index
    %42 = arith.index_cast %arg0 : i32 to index
    %43 = memref.load %arg3[%c4_7, %42] : memref<16x4xf32, #tpu.memory_space<smem>>
    %c5_8 = arith.constant 5 : index
    %44 = arith.index_cast %arg0 : i32 to index
    %45 = memref.load %arg3[%c5_8, %44] : memref<16x4xf32, #tpu.memory_space<smem>>
    %c6_9 = arith.constant 6 : index
    %46 = arith.index_cast %arg0 : i32 to index
    %47 = memref.load %arg3[%c6_9, %46] : memref<16x4xf32, #tpu.memory_space<smem>>
    %c7_10 = arith.constant 7 : index
    %48 = arith.index_cast %arg0 : i32 to index
    %49 = memref.load %arg3[%c7_10, %48] : memref<16x4xf32, #tpu.memory_space<smem>>
    %c8_11 = arith.constant 8 : index
    %50 = arith.index_cast %arg0 : i32 to index
    %51 = memref.load %arg3[%c8_11, %50] : memref<16x4xf32, #tpu.memory_space<smem>>
    %c9_12 = arith.constant 9 : index
    %52 = arith.index_cast %arg0 : i32 to index
    %53 = memref.load %arg3[%c9_12, %52] : memref<16x4xf32, #tpu.memory_space<smem>>
    %c10_13 = arith.constant 10 : index
    %54 = arith.index_cast %arg0 : i32 to index
    %55 = memref.load %arg3[%c10_13, %54] : memref<16x4xf32, #tpu.memory_space<smem>>
    %c11_14 = arith.constant 11 : index
    %56 = arith.index_cast %arg0 : i32 to index
    %57 = memref.load %arg3[%c11_14, %56] : memref<16x4xf32, #tpu.memory_space<smem>>
    %c12_15 = arith.constant 12 : index
    %58 = arith.index_cast %arg0 : i32 to index
    %59 = memref.load %arg3[%c12_15, %58] : memref<16x4xf32, #tpu.memory_space<smem>>
    %c13_16 = arith.constant 13 : index
    %60 = arith.index_cast %arg0 : i32 to index
    %61 = memref.load %arg3[%c13_16, %60] : memref<16x4xf32, #tpu.memory_space<smem>>
    %c14_17 = arith.constant 14 : index
    %62 = arith.index_cast %arg0 : i32 to index
    %63 = memref.load %arg3[%c14_17, %62] : memref<16x4xf32, #tpu.memory_space<smem>>
    %c15_18 = arith.constant 15 : index
    %64 = arith.index_cast %arg0 : i32 to index
    %65 = memref.load %arg3[%c15_18, %64] : memref<16x4xf32, #tpu.memory_space<smem>>
    %c0_19 = arith.constant 0 : index
    %66 = arith.index_cast %arg0 : i32 to index
    %67 = memref.load %arg4[%c0_19, %66] : memref<16x4xf32, #tpu.memory_space<smem>>
    %c1_20 = arith.constant 1 : index
    %68 = arith.index_cast %arg0 : i32 to index
    %69 = memref.load %arg4[%c1_20, %68] : memref<16x4xf32, #tpu.memory_space<smem>>
    %c2_21 = arith.constant 2 : index
    %70 = arith.index_cast %arg0 : i32 to index
    %71 = memref.load %arg4[%c2_21, %70] : memref<16x4xf32, #tpu.memory_space<smem>>
    %c3_22 = arith.constant 3 : index
    %72 = arith.index_cast %arg0 : i32 to index
    %73 = memref.load %arg4[%c3_22, %72] : memref<16x4xf32, #tpu.memory_space<smem>>
    %c4_23 = arith.constant 4 : index
    %74 = arith.index_cast %arg0 : i32 to index
    %75 = memref.load %arg4[%c4_23, %74] : memref<16x4xf32, #tpu.memory_space<smem>>
    %c5_24 = arith.constant 5 : index
    %76 = arith.index_cast %arg0 : i32 to index
    %77 = memref.load %arg4[%c5_24, %76] : memref<16x4xf32, #tpu.memory_space<smem>>
    %c6_25 = arith.constant 6 : index
    %78 = arith.index_cast %arg0 : i32 to index
    %79 = memref.load %arg4[%c6_25, %78] : memref<16x4xf32, #tpu.memory_space<smem>>
    %c7_26 = arith.constant 7 : index
    %80 = arith.index_cast %arg0 : i32 to index
    %81 = memref.load %arg4[%c7_26, %80] : memref<16x4xf32, #tpu.memory_space<smem>>
    %c8_27 = arith.constant 8 : index
    %82 = arith.index_cast %arg0 : i32 to index
    %83 = memref.load %arg4[%c8_27, %82] : memref<16x4xf32, #tpu.memory_space<smem>>
    %c9_28 = arith.constant 9 : index
    %84 = arith.index_cast %arg0 : i32 to index
    %85 = memref.load %arg4[%c9_28, %84] : memref<16x4xf32, #tpu.memory_space<smem>>
    %c10_29 = arith.constant 10 : index
    %86 = arith.index_cast %arg0 : i32 to index
    %87 = memref.load %arg4[%c10_29, %86] : memref<16x4xf32, #tpu.memory_space<smem>>
    %c11_30 = arith.constant 11 : index
    %88 = arith.index_cast %arg0 : i32 to index
    %89 = memref.load %arg4[%c11_30, %88] : memref<16x4xf32, #tpu.memory_space<smem>>
    %c12_31 = arith.constant 12 : index
    %90 = arith.index_cast %arg0 : i32 to index
    %91 = memref.load %arg4[%c12_31, %90] : memref<16x4xf32, #tpu.memory_space<smem>>
    %c13_32 = arith.constant 13 : index
    %92 = arith.index_cast %arg0 : i32 to index
    %93 = memref.load %arg4[%c13_32, %92] : memref<16x4xf32, #tpu.memory_space<smem>>
    %c14_33 = arith.constant 14 : index
    %94 = arith.index_cast %arg0 : i32 to index
    %95 = memref.load %arg4[%c14_33, %94] : memref<16x4xf32, #tpu.memory_space<smem>>
    %c15_34 = arith.constant 15 : index
    %96 = arith.index_cast %arg0 : i32 to index
    %97 = memref.load %arg4[%c15_34, %96] : memref<16x4xf32, #tpu.memory_space<smem>>
    %cst = arith.constant -1.000000e+04 : f32
    %98 = vector.broadcast %cst : f32 to vector<8x128xf32>
    %cst_35 = arith.constant 1.000000e+04 : f32
    %99 = vector.broadcast %cst_35 : f32 to vector<8x128xf32>
    %c0_i32 = arith.constant 0 : i32
    %c35_i32 = arith.constant 35 : i32
    %100 = arith.addi %c0_i32, %c35_i32 : i32
    %c1_i32 = arith.constant 1 : i32
    %101:2 = scf.for %arg8 = %c0_i32 to %100 step %c1_i32 iter_args(%arg9 = %98, %arg10 = %99) -> (vector<8x128xf32>, vector<8x128xf32>)  : i32 {
      %891 = arith.addf %arg9, %arg10 : vector<8x128xf32>
      %cst_216 = arith.constant 5.000000e-01 : f32
      %892 = vector.broadcast %cst_216 : f32 to vector<8x128xf32>
      %893 = arith.mulf %892, %891 : vector<8x128xf32>
      %cst_217 = arith.constant 0.000000e+00 : f32
      %894 = vector.broadcast %cst_217 : f32 to vector<8x128xf32>
      %cst_218 = arith.constant 0.000000e+00 : f32
      %895 = vector.broadcast %cst_218 : f32 to vector<8x128xf32>
      %896 = vector.broadcast %3 : f32 to vector<8x128xf32>
      %897 = arith.subf %893, %896 : vector<8x128xf32>
      %898 = vector.broadcast %35 : f32 to vector<8x128xf32>
      %899 = arith.mulf %897, %898 : vector<8x128xf32>
      %900 = math.absf %899 : vector<8x128xf32>
      %cst_219 = arith.constant 0.000000e+00 : f32
      %901 = vector.broadcast %cst_219 : f32 to vector<8x128xf32>
      %902 = arith.subf %901, %900 : vector<8x128xf32>
      %903 = math.exp %902 : vector<8x128xf32>
      %cst_220 = arith.constant 1.000000e+00 : f32
      %904 = vector.broadcast %cst_220 : f32 to vector<8x128xf32>
      %905 = arith.addf %904, %903 : vector<8x128xf32>
      %cst_221 = arith.constant 1.000000e+00 : f32
      %906 = vector.broadcast %cst_221 : f32 to vector<8x128xf32>
      %907 = arith.divf %906, %905 : vector<8x128xf32>
      %908 = arith.mulf %903, %907 : vector<8x128xf32>
      %cst_222 = arith.constant 0.000000e+00 : f32
      %909 = vector.broadcast %cst_222 : f32 to vector<8x128xf32>
      %910 = arith.cmpf oge, %899, %909 : vector<8x128xf32>
      %911 = arith.select %910, %907, %908 : vector<8x128xi1>, vector<8x128xf32>
      %912 = arith.addf %894, %911 : vector<8x128xf32>
      %913 = arith.select %910, %908, %907 : vector<8x128xi1>, vector<8x128xf32>
      %914 = arith.addf %895, %913 : vector<8x128xf32>
      %915 = vector.broadcast %5 : f32 to vector<8x128xf32>
      %916 = arith.subf %893, %915 : vector<8x128xf32>
      %917 = vector.broadcast %37 : f32 to vector<8x128xf32>
      %918 = arith.mulf %916, %917 : vector<8x128xf32>
      %919 = math.absf %918 : vector<8x128xf32>
      %cst_223 = arith.constant 0.000000e+00 : f32
      %920 = vector.broadcast %cst_223 : f32 to vector<8x128xf32>
      %921 = arith.subf %920, %919 : vector<8x128xf32>
      %922 = math.exp %921 : vector<8x128xf32>
      %cst_224 = arith.constant 1.000000e+00 : f32
      %923 = vector.broadcast %cst_224 : f32 to vector<8x128xf32>
      %924 = arith.addf %923, %922 : vector<8x128xf32>
      %cst_225 = arith.constant 1.000000e+00 : f32
      %925 = vector.broadcast %cst_225 : f32 to vector<8x128xf32>
      %926 = arith.divf %925, %924 : vector<8x128xf32>
      %927 = arith.mulf %922, %926 : vector<8x128xf32>
      %cst_226 = arith.constant 0.000000e+00 : f32
      %928 = vector.broadcast %cst_226 : f32 to vector<8x128xf32>
      %929 = arith.cmpf oge, %918, %928 : vector<8x128xf32>
      %930 = arith.select %929, %926, %927 : vector<8x128xi1>, vector<8x128xf32>
      %931 = arith.addf %912, %930 : vector<8x128xf32>
      %932 = arith.select %929, %927, %926 : vector<8x128xi1>, vector<8x128xf32>
      %933 = arith.addf %914, %932 : vector<8x128xf32>
      %934 = vector.broadcast %7 : f32 to vector<8x128xf32>
      %935 = arith.subf %893, %934 : vector<8x128xf32>
      %936 = vector.broadcast %39 : f32 to vector<8x128xf32>
      %937 = arith.mulf %935, %936 : vector<8x128xf32>
      %938 = math.absf %937 : vector<8x128xf32>
      %cst_227 = arith.constant 0.000000e+00 : f32
      %939 = vector.broadcast %cst_227 : f32 to vector<8x128xf32>
      %940 = arith.subf %939, %938 : vector<8x128xf32>
      %941 = math.exp %940 : vector<8x128xf32>
      %cst_228 = arith.constant 1.000000e+00 : f32
      %942 = vector.broadcast %cst_228 : f32 to vector<8x128xf32>
      %943 = arith.addf %942, %941 : vector<8x128xf32>
      %cst_229 = arith.constant 1.000000e+00 : f32
      %944 = vector.broadcast %cst_229 : f32 to vector<8x128xf32>
      %945 = arith.divf %944, %943 : vector<8x128xf32>
      %946 = arith.mulf %941, %945 : vector<8x128xf32>
      %cst_230 = arith.constant 0.000000e+00 : f32
      %947 = vector.broadcast %cst_230 : f32 to vector<8x128xf32>
      %948 = arith.cmpf oge, %937, %947 : vector<8x128xf32>
      %949 = arith.select %948, %945, %946 : vector<8x128xi1>, vector<8x128xf32>
      %950 = arith.addf %931, %949 : vector<8x128xf32>
      %951 = arith.select %948, %946, %945 : vector<8x128xi1>, vector<8x128xf32>
      %952 = arith.addf %933, %951 : vector<8x128xf32>
      %953 = vector.broadcast %9 : f32 to vector<8x128xf32>
      %954 = arith.subf %893, %953 : vector<8x128xf32>
      %955 = vector.broadcast %41 : f32 to vector<8x128xf32>
      %956 = arith.mulf %954, %955 : vector<8x128xf32>
      %957 = math.absf %956 : vector<8x128xf32>
      %cst_231 = arith.constant 0.000000e+00 : f32
      %958 = vector.broadcast %cst_231 : f32 to vector<8x128xf32>
      %959 = arith.subf %958, %957 : vector<8x128xf32>
      %960 = math.exp %959 : vector<8x128xf32>
      %cst_232 = arith.constant 1.000000e+00 : f32
      %961 = vector.broadcast %cst_232 : f32 to vector<8x128xf32>
      %962 = arith.addf %961, %960 : vector<8x128xf32>
      %cst_233 = arith.constant 1.000000e+00 : f32
      %963 = vector.broadcast %cst_233 : f32 to vector<8x128xf32>
      %964 = arith.divf %963, %962 : vector<8x128xf32>
      %965 = arith.mulf %960, %964 : vector<8x128xf32>
      %cst_234 = arith.constant 0.000000e+00 : f32
      %966 = vector.broadcast %cst_234 : f32 to vector<8x128xf32>
      %967 = arith.cmpf oge, %956, %966 : vector<8x128xf32>
      %968 = arith.select %967, %964, %965 : vector<8x128xi1>, vector<8x128xf32>
      %969 = arith.addf %950, %968 : vector<8x128xf32>
      %970 = arith.select %967, %965, %964 : vector<8x128xi1>, vector<8x128xf32>
      %971 = arith.addf %952, %970 : vector<8x128xf32>
      %972 = vector.broadcast %11 : f32 to vector<8x128xf32>
      %973 = arith.subf %893, %972 : vector<8x128xf32>
      %974 = vector.broadcast %43 : f32 to vector<8x128xf32>
      %975 = arith.mulf %973, %974 : vector<8x128xf32>
      %976 = math.absf %975 : vector<8x128xf32>
      %cst_235 = arith.constant 0.000000e+00 : f32
      %977 = vector.broadcast %cst_235 : f32 to vector<8x128xf32>
      %978 = arith.subf %977, %976 : vector<8x128xf32>
      %979 = math.exp %978 : vector<8x128xf32>
      %cst_236 = arith.constant 1.000000e+00 : f32
      %980 = vector.broadcast %cst_236 : f32 to vector<8x128xf32>
      %981 = arith.addf %980, %979 : vector<8x128xf32>
      %cst_237 = arith.constant 1.000000e+00 : f32
      %982 = vector.broadcast %cst_237 : f32 to vector<8x128xf32>
      %983 = arith.divf %982, %981 : vector<8x128xf32>
      %984 = arith.mulf %979, %983 : vector<8x128xf32>
      %cst_238 = arith.constant 0.000000e+00 : f32
      %985 = vector.broadcast %cst_238 : f32 to vector<8x128xf32>
      %986 = arith.cmpf oge, %975, %985 : vector<8x128xf32>
      %987 = arith.select %986, %983, %984 : vector<8x128xi1>, vector<8x128xf32>
      %988 = arith.addf %969, %987 : vector<8x128xf32>
      %989 = arith.select %986, %984, %983 : vector<8x128xi1>, vector<8x128xf32>
      %990 = arith.addf %971, %989 : vector<8x128xf32>
      %991 = vector.broadcast %13 : f32 to vector<8x128xf32>
      %992 = arith.subf %893, %991 : vector<8x128xf32>
      %993 = vector.broadcast %45 : f32 to vector<8x128xf32>
      %994 = arith.mulf %992, %993 : vector<8x128xf32>
      %995 = math.absf %994 : vector<8x128xf32>
      %cst_239 = arith.constant 0.000000e+00 : f32
      %996 = vector.broadcast %cst_239 : f32 to vector<8x128xf32>
      %997 = arith.subf %996, %995 : vector<8x128xf32>
      %998 = math.exp %997 : vector<8x128xf32>
      %cst_240 = arith.constant 1.000000e+00 : f32
      %999 = vector.broadcast %cst_240 : f32 to vector<8x128xf32>
      %1000 = arith.addf %999, %998 : vector<8x128xf32>
      %cst_241 = arith.constant 1.000000e+00 : f32
      %1001 = vector.broadcast %cst_241 : f32 to vector<8x128xf32>
      %1002 = arith.divf %1001, %1000 : vector<8x128xf32>
      %1003 = arith.mulf %998, %1002 : vector<8x128xf32>
      %cst_242 = arith.constant 0.000000e+00 : f32
      %1004 = vector.broadcast %cst_242 : f32 to vector<8x128xf32>
      %1005 = arith.cmpf oge, %994, %1004 : vector<8x128xf32>
      %1006 = arith.select %1005, %1002, %1003 : vector<8x128xi1>, vector<8x128xf32>
      %1007 = arith.addf %988, %1006 : vector<8x128xf32>
      %1008 = arith.select %1005, %1003, %1002 : vector<8x128xi1>, vector<8x128xf32>
      %1009 = arith.addf %990, %1008 : vector<8x128xf32>
      %1010 = vector.broadcast %15 : f32 to vector<8x128xf32>
      %1011 = arith.subf %893, %1010 : vector<8x128xf32>
      %1012 = vector.broadcast %47 : f32 to vector<8x128xf32>
      %1013 = arith.mulf %1011, %1012 : vector<8x128xf32>
      %1014 = math.absf %1013 : vector<8x128xf32>
      %cst_243 = arith.constant 0.000000e+00 : f32
      %1015 = vector.broadcast %cst_243 : f32 to vector<8x128xf32>
      %1016 = arith.subf %1015, %1014 : vector<8x128xf32>
      %1017 = math.exp %1016 : vector<8x128xf32>
      %cst_244 = arith.constant 1.000000e+00 : f32
      %1018 = vector.broadcast %cst_244 : f32 to vector<8x128xf32>
      %1019 = arith.addf %1018, %1017 : vector<8x128xf32>
      %cst_245 = arith.constant 1.000000e+00 : f32
      %1020 = vector.broadcast %cst_245 : f32 to vector<8x128xf32>
      %1021 = arith.divf %1020, %1019 : vector<8x128xf32>
      %1022 = arith.mulf %1017, %1021 : vector<8x128xf32>
      %cst_246 = arith.constant 0.000000e+00 : f32
      %1023 = vector.broadcast %cst_246 : f32 to vector<8x128xf32>
      %1024 = arith.cmpf oge, %1013, %1023 : vector<8x128xf32>
      %1025 = arith.select %1024, %1021, %1022 : vector<8x128xi1>, vector<8x128xf32>
      %1026 = arith.addf %1007, %1025 : vector<8x128xf32>
      %1027 = arith.select %1024, %1022, %1021 : vector<8x128xi1>, vector<8x128xf32>
      %1028 = arith.addf %1009, %1027 : vector<8x128xf32>
      %1029 = vector.broadcast %17 : f32 to vector<8x128xf32>
      %1030 = arith.subf %893, %1029 : vector<8x128xf32>
      %1031 = vector.broadcast %49 : f32 to vector<8x128xf32>
      %1032 = arith.mulf %1030, %1031 : vector<8x128xf32>
      %1033 = math.absf %1032 : vector<8x128xf32>
      %cst_247 = arith.constant 0.000000e+00 : f32
      %1034 = vector.broadcast %cst_247 : f32 to vector<8x128xf32>
      %1035 = arith.subf %1034, %1033 : vector<8x128xf32>
      %1036 = math.exp %1035 : vector<8x128xf32>
      %cst_248 = arith.constant 1.000000e+00 : f32
      %1037 = vector.broadcast %cst_248 : f32 to vector<8x128xf32>
      %1038 = arith.addf %1037, %1036 : vector<8x128xf32>
      %cst_249 = arith.constant 1.000000e+00 : f32
      %1039 = vector.broadcast %cst_249 : f32 to vector<8x128xf32>
      %1040 = arith.divf %1039, %1038 : vector<8x128xf32>
      %1041 = arith.mulf %1036, %1040 : vector<8x128xf32>
      %cst_250 = arith.constant 0.000000e+00 : f32
      %1042 = vector.broadcast %cst_250 : f32 to vector<8x128xf32>
      %1043 = arith.cmpf oge, %1032, %1042 : vector<8x128xf32>
      %1044 = arith.select %1043, %1040, %1041 : vector<8x128xi1>, vector<8x128xf32>
      %1045 = arith.addf %1026, %1044 : vector<8x128xf32>
      %1046 = arith.select %1043, %1041, %1040 : vector<8x128xi1>, vector<8x128xf32>
      %1047 = arith.addf %1028, %1046 : vector<8x128xf32>
      %1048 = vector.broadcast %19 : f32 to vector<8x128xf32>
      %1049 = arith.subf %893, %1048 : vector<8x128xf32>
      %1050 = vector.broadcast %51 : f32 to vector<8x128xf32>
      %1051 = arith.mulf %1049, %1050 : vector<8x128xf32>
      %1052 = math.absf %1051 : vector<8x128xf32>
      %cst_251 = arith.constant 0.000000e+00 : f32
      %1053 = vector.broadcast %cst_251 : f32 to vector<8x128xf32>
      %1054 = arith.subf %1053, %1052 : vector<8x128xf32>
      %1055 = math.exp %1054 : vector<8x128xf32>
      %cst_252 = arith.constant 1.000000e+00 : f32
      %1056 = vector.broadcast %cst_252 : f32 to vector<8x128xf32>
      %1057 = arith.addf %1056, %1055 : vector<8x128xf32>
      %cst_253 = arith.constant 1.000000e+00 : f32
      %1058 = vector.broadcast %cst_253 : f32 to vector<8x128xf32>
      %1059 = arith.divf %1058, %1057 : vector<8x128xf32>
      %1060 = arith.mulf %1055, %1059 : vector<8x128xf32>
      %cst_254 = arith.constant 0.000000e+00 : f32
      %1061 = vector.broadcast %cst_254 : f32 to vector<8x128xf32>
      %1062 = arith.cmpf oge, %1051, %1061 : vector<8x128xf32>
      %1063 = arith.select %1062, %1059, %1060 : vector<8x128xi1>, vector<8x128xf32>
      %1064 = arith.addf %1045, %1063 : vector<8x128xf32>
      %1065 = arith.select %1062, %1060, %1059 : vector<8x128xi1>, vector<8x128xf32>
      %1066 = arith.addf %1047, %1065 : vector<8x128xf32>
      %1067 = vector.broadcast %21 : f32 to vector<8x128xf32>
      %1068 = arith.subf %893, %1067 : vector<8x128xf32>
      %1069 = vector.broadcast %53 : f32 to vector<8x128xf32>
      %1070 = arith.mulf %1068, %1069 : vector<8x128xf32>
      %1071 = math.absf %1070 : vector<8x128xf32>
      %cst_255 = arith.constant 0.000000e+00 : f32
      %1072 = vector.broadcast %cst_255 : f32 to vector<8x128xf32>
      %1073 = arith.subf %1072, %1071 : vector<8x128xf32>
      %1074 = math.exp %1073 : vector<8x128xf32>
      %cst_256 = arith.constant 1.000000e+00 : f32
      %1075 = vector.broadcast %cst_256 : f32 to vector<8x128xf32>
      %1076 = arith.addf %1075, %1074 : vector<8x128xf32>
      %cst_257 = arith.constant 1.000000e+00 : f32
      %1077 = vector.broadcast %cst_257 : f32 to vector<8x128xf32>
      %1078 = arith.divf %1077, %1076 : vector<8x128xf32>
      %1079 = arith.mulf %1074, %1078 : vector<8x128xf32>
      %cst_258 = arith.constant 0.000000e+00 : f32
      %1080 = vector.broadcast %cst_258 : f32 to vector<8x128xf32>
      %1081 = arith.cmpf oge, %1070, %1080 : vector<8x128xf32>
      %1082 = arith.select %1081, %1078, %1079 : vector<8x128xi1>, vector<8x128xf32>
      %1083 = arith.addf %1064, %1082 : vector<8x128xf32>
      %1084 = arith.select %1081, %1079, %1078 : vector<8x128xi1>, vector<8x128xf32>
      %1085 = arith.addf %1066, %1084 : vector<8x128xf32>
      %1086 = vector.broadcast %23 : f32 to vector<8x128xf32>
      %1087 = arith.subf %893, %1086 : vector<8x128xf32>
      %1088 = vector.broadcast %55 : f32 to vector<8x128xf32>
      %1089 = arith.mulf %1087, %1088 : vector<8x128xf32>
      %1090 = math.absf %1089 : vector<8x128xf32>
      %cst_259 = arith.constant 0.000000e+00 : f32
      %1091 = vector.broadcast %cst_259 : f32 to vector<8x128xf32>
      %1092 = arith.subf %1091, %1090 : vector<8x128xf32>
      %1093 = math.exp %1092 : vector<8x128xf32>
      %cst_260 = arith.constant 1.000000e+00 : f32
      %1094 = vector.broadcast %cst_260 : f32 to vector<8x128xf32>
      %1095 = arith.addf %1094, %1093 : vector<8x128xf32>
      %cst_261 = arith.constant 1.000000e+00 : f32
      %1096 = vector.broadcast %cst_261 : f32 to vector<8x128xf32>
      %1097 = arith.divf %1096, %1095 : vector<8x128xf32>
      %1098 = arith.mulf %1093, %1097 : vector<8x128xf32>
      %cst_262 = arith.constant 0.000000e+00 : f32
      %1099 = vector.broadcast %cst_262 : f32 to vector<8x128xf32>
      %1100 = arith.cmpf oge, %1089, %1099 : vector<8x128xf32>
      %1101 = arith.select %1100, %1097, %1098 : vector<8x128xi1>, vector<8x128xf32>
      %1102 = arith.addf %1083, %1101 : vector<8x128xf32>
      %1103 = arith.select %1100, %1098, %1097 : vector<8x128xi1>, vector<8x128xf32>
      %1104 = arith.addf %1085, %1103 : vector<8x128xf32>
      %1105 = vector.broadcast %25 : f32 to vector<8x128xf32>
      %1106 = arith.subf %893, %1105 : vector<8x128xf32>
      %1107 = vector.broadcast %57 : f32 to vector<8x128xf32>
      %1108 = arith.mulf %1106, %1107 : vector<8x128xf32>
      %1109 = math.absf %1108 : vector<8x128xf32>
      %cst_263 = arith.constant 0.000000e+00 : f32
      %1110 = vector.broadcast %cst_263 : f32 to vector<8x128xf32>
      %1111 = arith.subf %1110, %1109 : vector<8x128xf32>
      %1112 = math.exp %1111 : vector<8x128xf32>
      %cst_264 = arith.constant 1.000000e+00 : f32
      %1113 = vector.broadcast %cst_264 : f32 to vector<8x128xf32>
      %1114 = arith.addf %1113, %1112 : vector<8x128xf32>
      %cst_265 = arith.constant 1.000000e+00 : f32
      %1115 = vector.broadcast %cst_265 : f32 to vector<8x128xf32>
      %1116 = arith.divf %1115, %1114 : vector<8x128xf32>
      %1117 = arith.mulf %1112, %1116 : vector<8x128xf32>
      %cst_266 = arith.constant 0.000000e+00 : f32
      %1118 = vector.broadcast %cst_266 : f32 to vector<8x128xf32>
      %1119 = arith.cmpf oge, %1108, %1118 : vector<8x128xf32>
      %1120 = arith.select %1119, %1116, %1117 : vector<8x128xi1>, vector<8x128xf32>
      %1121 = arith.addf %1102, %1120 : vector<8x128xf32>
      %1122 = arith.select %1119, %1117, %1116 : vector<8x128xi1>, vector<8x128xf32>
      %1123 = arith.addf %1104, %1122 : vector<8x128xf32>
      %1124 = vector.broadcast %27 : f32 to vector<8x128xf32>
      %1125 = arith.subf %893, %1124 : vector<8x128xf32>
      %1126 = vector.broadcast %59 : f32 to vector<8x128xf32>
      %1127 = arith.mulf %1125, %1126 : vector<8x128xf32>
      %1128 = math.absf %1127 : vector<8x128xf32>
      %cst_267 = arith.constant 0.000000e+00 : f32
      %1129 = vector.broadcast %cst_267 : f32 to vector<8x128xf32>
      %1130 = arith.subf %1129, %1128 : vector<8x128xf32>
      %1131 = math.exp %1130 : vector<8x128xf32>
      %cst_268 = arith.constant 1.000000e+00 : f32
      %1132 = vector.broadcast %cst_268 : f32 to vector<8x128xf32>
      %1133 = arith.addf %1132, %1131 : vector<8x128xf32>
      %cst_269 = arith.constant 1.000000e+00 : f32
      %1134 = vector.broadcast %cst_269 : f32 to vector<8x128xf32>
      %1135 = arith.divf %1134, %1133 : vector<8x128xf32>
      %1136 = arith.mulf %1131, %1135 : vector<8x128xf32>
      %cst_270 = arith.constant 0.000000e+00 : f32
      %1137 = vector.broadcast %cst_270 : f32 to vector<8x128xf32>
      %1138 = arith.cmpf oge, %1127, %1137 : vector<8x128xf32>
      %1139 = arith.select %1138, %1135, %1136 : vector<8x128xi1>, vector<8x128xf32>
      %1140 = arith.addf %1121, %1139 : vector<8x128xf32>
      %1141 = arith.select %1138, %1136, %1135 : vector<8x128xi1>, vector<8x128xf32>
      %1142 = arith.addf %1123, %1141 : vector<8x128xf32>
      %1143 = vector.broadcast %29 : f32 to vector<8x128xf32>
      %1144 = arith.subf %893, %1143 : vector<8x128xf32>
      %1145 = vector.broadcast %61 : f32 to vector<8x128xf32>
      %1146 = arith.mulf %1144, %1145 : vector<8x128xf32>
      %1147 = math.absf %1146 : vector<8x128xf32>
      %cst_271 = arith.constant 0.000000e+00 : f32
      %1148 = vector.broadcast %cst_271 : f32 to vector<8x128xf32>
      %1149 = arith.subf %1148, %1147 : vector<8x128xf32>
      %1150 = math.exp %1149 : vector<8x128xf32>
      %cst_272 = arith.constant 1.000000e+00 : f32
      %1151 = vector.broadcast %cst_272 : f32 to vector<8x128xf32>
      %1152 = arith.addf %1151, %1150 : vector<8x128xf32>
      %cst_273 = arith.constant 1.000000e+00 : f32
      %1153 = vector.broadcast %cst_273 : f32 to vector<8x128xf32>
      %1154 = arith.divf %1153, %1152 : vector<8x128xf32>
      %1155 = arith.mulf %1150, %1154 : vector<8x128xf32>
      %cst_274 = arith.constant 0.000000e+00 : f32
      %1156 = vector.broadcast %cst_274 : f32 to vector<8x128xf32>
      %1157 = arith.cmpf oge, %1146, %1156 : vector<8x128xf32>
      %1158 = arith.select %1157, %1154, %1155 : vector<8x128xi1>, vector<8x128xf32>
      %1159 = arith.addf %1140, %1158 : vector<8x128xf32>
      %1160 = arith.select %1157, %1155, %1154 : vector<8x128xi1>, vector<8x128xf32>
      %1161 = arith.addf %1142, %1160 : vector<8x128xf32>
      %1162 = vector.broadcast %31 : f32 to vector<8x128xf32>
      %1163 = arith.subf %893, %1162 : vector<8x128xf32>
      %1164 = vector.broadcast %63 : f32 to vector<8x128xf32>
      %1165 = arith.mulf %1163, %1164 : vector<8x128xf32>
      %1166 = math.absf %1165 : vector<8x128xf32>
      %cst_275 = arith.constant 0.000000e+00 : f32
      %1167 = vector.broadcast %cst_275 : f32 to vector<8x128xf32>
      %1168 = arith.subf %1167, %1166 : vector<8x128xf32>
      %1169 = math.exp %1168 : vector<8x128xf32>
      %cst_276 = arith.constant 1.000000e+00 : f32
      %1170 = vector.broadcast %cst_276 : f32 to vector<8x128xf32>
      %1171 = arith.addf %1170, %1169 : vector<8x128xf32>
      %cst_277 = arith.constant 1.000000e+00 : f32
      %1172 = vector.broadcast %cst_277 : f32 to vector<8x128xf32>
      %1173 = arith.divf %1172, %1171 : vector<8x128xf32>
      %1174 = arith.mulf %1169, %1173 : vector<8x128xf32>
      %cst_278 = arith.constant 0.000000e+00 : f32
      %1175 = vector.broadcast %cst_278 : f32 to vector<8x128xf32>
      %1176 = arith.cmpf oge, %1165, %1175 : vector<8x128xf32>
      %1177 = arith.select %1176, %1173, %1174 : vector<8x128xi1>, vector<8x128xf32>
      %1178 = arith.addf %1159, %1177 : vector<8x128xf32>
      %1179 = arith.select %1176, %1174, %1173 : vector<8x128xi1>, vector<8x128xf32>
      %1180 = arith.addf %1161, %1179 : vector<8x128xf32>
      %1181 = vector.broadcast %33 : f32 to vector<8x128xf32>
      %1182 = arith.subf %893, %1181 : vector<8x128xf32>
      %1183 = vector.broadcast %65 : f32 to vector<8x128xf32>
      %1184 = arith.mulf %1182, %1183 : vector<8x128xf32>
      %1185 = math.absf %1184 : vector<8x128xf32>
      %cst_279 = arith.constant 0.000000e+00 : f32
      %1186 = vector.broadcast %cst_279 : f32 to vector<8x128xf32>
      %1187 = arith.subf %1186, %1185 : vector<8x128xf32>
      %1188 = math.exp %1187 : vector<8x128xf32>
      %cst_280 = arith.constant 1.000000e+00 : f32
      %1189 = vector.broadcast %cst_280 : f32 to vector<8x128xf32>
      %1190 = arith.addf %1189, %1188 : vector<8x128xf32>
      %cst_281 = arith.constant 1.000000e+00 : f32
      %1191 = vector.broadcast %cst_281 : f32 to vector<8x128xf32>
      %1192 = arith.divf %1191, %1190 : vector<8x128xf32>
      %1193 = arith.mulf %1188, %1192 : vector<8x128xf32>
      %cst_282 = arith.constant 0.000000e+00 : f32
      %1194 = vector.broadcast %cst_282 : f32 to vector<8x128xf32>
      %1195 = arith.cmpf oge, %1184, %1194 : vector<8x128xf32>
      %1196 = arith.select %1195, %1192, %1193 : vector<8x128xi1>, vector<8x128xf32>
      %1197 = arith.addf %1178, %1196 : vector<8x128xf32>
      %1198 = arith.select %1195, %1193, %1192 : vector<8x128xi1>, vector<8x128xf32>
      %1199 = arith.addf %1180, %1198 : vector<8x128xf32>
      %cst_283 = arith.constant 6.250000e-02 : f32
      %1200 = vector.broadcast %cst_283 : f32 to vector<8x128xf32>
      %1201 = arith.mulf %1197, %1200 : vector<8x128xf32>
      %1202 = math.log %1197 : vector<8x128xf32>
      %cst_284 = arith.constant 2.77258873 : f32
      %1203 = vector.broadcast %cst_284 : f32 to vector<8x128xf32>
      %1204 = arith.subf %1202, %1203 : vector<8x128xf32>
      %1205 = math.log %1199 : vector<8x128xf32>
      %cst_285 = arith.constant 2.77258873 : f32
      %1206 = vector.broadcast %cst_285 : f32 to vector<8x128xf32>
      %1207 = arith.subf %1205, %1206 : vector<8x128xf32>
      %cst_286 = arith.constant 5.000000e-08 : f32
      %1208 = vector.broadcast %cst_286 : f32 to vector<8x128xf32>
      %1209 = arith.cmpf ogt, %1201, %1208 : vector<8x128xf32>
      %cst_287 = arith.constant 0.99999994 : f32
      %1210 = vector.broadcast %cst_287 : f32 to vector<8x128xf32>
      %1211 = arith.cmpf olt, %1201, %1210 : vector<8x128xf32>
      %1212 = arith.andi %1209, %1211 : vector<8x128xi1>
      %cst_288 = arith.constant 5.000000e-01 : f32
      %1213 = vector.broadcast %cst_288 : f32 to vector<8x128xf32>
      %1214 = arith.select %1212, %1201, %1213 : vector<8x128xi1>, vector<8x128xf32>
      %cst_289 = arith.constant 2.000000e+00 : f32
      %1215 = vector.broadcast %cst_289 : f32 to vector<8x128xf32>
      %1216 = arith.mulf %1215, %1214 : vector<8x128xf32>
      %cst_290 = arith.constant 1.000000e+00 : f32
      %1217 = vector.broadcast %cst_290 : f32 to vector<8x128xf32>
      %1218 = arith.subf %1216, %1217 : vector<8x128xf32>
      %cst_291 = arith.constant 1.000000e+00 : f32
      %1219 = vector.broadcast %cst_291 : f32 to vector<8x128xf32>
      %1220 = arith.subf %1219, %1218 : vector<8x128xf32>
      %cst_292 = arith.constant 1.000000e+00 : f32
      %1221 = vector.broadcast %cst_292 : f32 to vector<8x128xf32>
      %1222 = arith.addf %1221, %1218 : vector<8x128xf32>
      %1223 = arith.mulf %1220, %1222 : vector<8x128xf32>
      %1224 = math.log %1223 : vector<8x128xf32>
      %cst_293 = arith.constant 0.000000e+00 : f32
      %1225 = vector.broadcast %cst_293 : f32 to vector<8x128xf32>
      %1226 = arith.subf %1225, %1224 : vector<8x128xf32>
      %cst_294 = arith.constant 2.500000e+00 : f32
      %1227 = vector.broadcast %cst_294 : f32 to vector<8x128xf32>
      %1228 = arith.subf %1226, %1227 : vector<8x128xf32>
      %cst_295 = arith.constant 2.81022636E-8 : f32
      %1229 = vector.broadcast %cst_295 : f32 to vector<8x128xf32>
      %1230 = arith.mulf %1229, %1228 : vector<8x128xf32>
      %cst_296 = arith.constant 3.43273939E-7 : f32
      %1231 = vector.broadcast %cst_296 : f32 to vector<8x128xf32>
      %1232 = arith.addf %1231, %1230 : vector<8x128xf32>
      %1233 = arith.mulf %1232, %1228 : vector<8x128xf32>
      %cst_297 = arith.constant -3.5233877E-6 : f32
      %1234 = vector.broadcast %cst_297 : f32 to vector<8x128xf32>
      %1235 = arith.addf %1234, %1233 : vector<8x128xf32>
      %1236 = arith.mulf %1235, %1228 : vector<8x128xf32>
      %cst_298 = arith.constant -4.39150654E-6 : f32
      %1237 = vector.broadcast %cst_298 : f32 to vector<8x128xf32>
      %1238 = arith.addf %1237, %1236 : vector<8x128xf32>
      %1239 = arith.mulf %1238, %1228 : vector<8x128xf32>
      %cst_299 = arith.constant 2.1858087E-4 : f32
      %1240 = vector.broadcast %cst_299 : f32 to vector<8x128xf32>
      %1241 = arith.addf %1240, %1239 : vector<8x128xf32>
      %1242 = arith.mulf %1241, %1228 : vector<8x128xf32>
      %cst_300 = arith.constant -0.00125372503 : f32
      %1243 = vector.broadcast %cst_300 : f32 to vector<8x128xf32>
      %1244 = arith.addf %1243, %1242 : vector<8x128xf32>
      %1245 = arith.mulf %1244, %1228 : vector<8x128xf32>
      %cst_301 = arith.constant -0.00417768164 : f32
      %1246 = vector.broadcast %cst_301 : f32 to vector<8x128xf32>
      %1247 = arith.addf %1246, %1245 : vector<8x128xf32>
      %1248 = arith.mulf %1247, %1228 : vector<8x128xf32>
      %cst_302 = arith.constant 0.246640727 : f32
      %1249 = vector.broadcast %cst_302 : f32 to vector<8x128xf32>
      %1250 = arith.addf %1249, %1248 : vector<8x128xf32>
      %1251 = arith.mulf %1250, %1228 : vector<8x128xf32>
      %cst_303 = arith.constant 1.50140941 : f32
      %1252 = vector.broadcast %cst_303 : f32 to vector<8x128xf32>
      %1253 = arith.addf %1252, %1251 : vector<8x128xf32>
      %cst_304 = arith.constant 5.000000e+00 : f32
      %1254 = vector.broadcast %cst_304 : f32 to vector<8x128xf32>
      %1255 = arith.maximumf %1226, %1254 : vector<8x128xf32>
      %1256 = math.sqrt %1255 : vector<8x128xf32>
      %cst_305 = arith.constant 3.000000e+00 : f32
      %1257 = vector.broadcast %cst_305 : f32 to vector<8x128xf32>
      %1258 = arith.subf %1256, %1257 : vector<8x128xf32>
      %cst_306 = arith.constant -2.00214257E-4 : f32
      %1259 = vector.broadcast %cst_306 : f32 to vector<8x128xf32>
      %1260 = arith.mulf %1259, %1258 : vector<8x128xf32>
      %cst_307 = arith.constant 1.00950558E-4 : f32
      %1261 = vector.broadcast %cst_307 : f32 to vector<8x128xf32>
      %1262 = arith.addf %1261, %1260 : vector<8x128xf32>
      %1263 = arith.mulf %1262, %1258 : vector<8x128xf32>
      %cst_308 = arith.constant 0.00134934322 : f32
      %1264 = vector.broadcast %cst_308 : f32 to vector<8x128xf32>
      %1265 = arith.addf %1264, %1263 : vector<8x128xf32>
      %1266 = arith.mulf %1265, %1258 : vector<8x128xf32>
      %cst_309 = arith.constant -0.00367342844 : f32
      %1267 = vector.broadcast %cst_309 : f32 to vector<8x128xf32>
      %1268 = arith.addf %1267, %1266 : vector<8x128xf32>
      %1269 = arith.mulf %1268, %1258 : vector<8x128xf32>
      %cst_310 = arith.constant 0.00573950773 : f32
      %1270 = vector.broadcast %cst_310 : f32 to vector<8x128xf32>
      %1271 = arith.addf %1270, %1269 : vector<8x128xf32>
      %1272 = arith.mulf %1271, %1258 : vector<8x128xf32>
      %cst_311 = arith.constant -0.0076224613 : f32
      %1273 = vector.broadcast %cst_311 : f32 to vector<8x128xf32>
      %1274 = arith.addf %1273, %1272 : vector<8x128xf32>
      %1275 = arith.mulf %1274, %1258 : vector<8x128xf32>
      %cst_312 = arith.constant 0.00943887047 : f32
      %1276 = vector.broadcast %cst_312 : f32 to vector<8x128xf32>
      %1277 = arith.addf %1276, %1275 : vector<8x128xf32>
      %1278 = arith.mulf %1277, %1258 : vector<8x128xf32>
      %cst_313 = arith.constant 1.00167406 : f32
      %1279 = vector.broadcast %cst_313 : f32 to vector<8x128xf32>
      %1280 = arith.addf %1279, %1278 : vector<8x128xf32>
      %1281 = arith.mulf %1280, %1258 : vector<8x128xf32>
      %cst_314 = arith.constant 2.83297682 : f32
      %1282 = vector.broadcast %cst_314 : f32 to vector<8x128xf32>
      %1283 = arith.addf %1282, %1281 : vector<8x128xf32>
      %cst_315 = arith.constant 5.000000e+00 : f32
      %1284 = vector.broadcast %cst_315 : f32 to vector<8x128xf32>
      %1285 = arith.cmpf olt, %1226, %1284 : vector<8x128xf32>
      %1286 = arith.select %1285, %1253, %1283 : vector<8x128xi1>, vector<8x128xf32>
      %1287 = arith.mulf %1286, %1218 : vector<8x128xf32>
      %cst_316 = arith.constant 1.41421354 : f32
      %1288 = vector.broadcast %cst_316 : f32 to vector<8x128xf32>
      %1289 = arith.mulf %1288, %1287 : vector<8x128xf32>
      %cst_317 = arith.constant 0.99999994 : f32
      %1290 = vector.broadcast %cst_317 : f32 to vector<8x128xf32>
      %1291 = arith.cmpf oge, %1201, %1290 : vector<8x128xf32>
      %cst_318 = arith.constant 0.000000e+00 : f32
      %1292 = vector.broadcast %cst_318 : f32 to vector<8x128xf32>
      %1293 = arith.select %1291, %1207, %1292 : vector<8x128xi1>, vector<8x128xf32>
      %cst_319 = arith.constant 5.000000e-08 : f32
      %1294 = vector.broadcast %cst_319 : f32 to vector<8x128xf32>
      %1295 = arith.cmpf ole, %1201, %1294 : vector<8x128xf32>
      %cst_320 = arith.constant 0.000000e+00 : f32
      %1296 = vector.broadcast %cst_320 : f32 to vector<8x128xf32>
      %1297 = arith.select %1295, %1204, %1296 : vector<8x128xi1>, vector<8x128xf32>
      %cst_321 = arith.constant -2.000000e+00 : f32
      %1298 = vector.broadcast %cst_321 : f32 to vector<8x128xf32>
      %1299 = arith.mulf %1298, %1293 : vector<8x128xf32>
      %1300 = math.sqrt %1299 : vector<8x128xf32>
      %1301 = arith.addf %1289, %1300 : vector<8x128xf32>
      %cst_322 = arith.constant -2.000000e+00 : f32
      %1302 = vector.broadcast %cst_322 : f32 to vector<8x128xf32>
      %1303 = arith.mulf %1302, %1297 : vector<8x128xf32>
      %1304 = math.sqrt %1303 : vector<8x128xf32>
      %1305 = arith.subf %1301, %1304 : vector<8x128xf32>
      %1306 = arith.cmpf olt, %1305, %1 : vector<8x128xf32>
      %1307 = arith.select %1306, %893, %arg9 : vector<8x128xi1>, vector<8x128xf32>
      %1308 = arith.cmpf ogt, %1305, %1 : vector<8x128xf32>
      %1309 = arith.select %1308, %893, %arg10 : vector<8x128xi1>, vector<8x128xf32>
      scf.yield %1307, %1309 : vector<8x128xf32>, vector<8x128xf32>
    }
    %102 = arith.addf %101#0, %101#1 : vector<8x128xf32>
    %cst_36 = arith.constant 5.000000e-01 : f32
    %103 = vector.broadcast %cst_36 : f32 to vector<8x128xf32>
    %104 = arith.mulf %103, %102 : vector<8x128xf32>
    %105 = vector.broadcast %3 : f32 to vector<8x128xf32>
    %106 = arith.subf %104, %105 : vector<8x128xf32>
    %107 = vector.broadcast %35 : f32 to vector<8x128xf32>
    %108 = arith.mulf %106, %107 : vector<8x128xf32>
    %cst_37 = arith.constant 0.000000e+00 : f32
    %109 = vector.broadcast %cst_37 : f32 to vector<8x128xf32>
    %110 = arith.subf %109, %108 : vector<8x128xf32>
    %cst_38 = arith.constant 0.000000e+00 : f32
    %111 = vector.broadcast %cst_38 : f32 to vector<8x128xf32>
    %112 = arith.maximumf %110, %111 : vector<8x128xf32>
    %113 = math.absf %110 : vector<8x128xf32>
    %cst_39 = arith.constant 0.000000e+00 : f32
    %114 = vector.broadcast %cst_39 : f32 to vector<8x128xf32>
    %115 = arith.subf %114, %113 : vector<8x128xf32>
    %116 = math.exp %115 : vector<8x128xf32>
    %cst_40 = arith.constant 1.000000e+00 : f32
    %117 = vector.broadcast %cst_40 : f32 to vector<8x128xf32>
    %118 = arith.addf %117, %116 : vector<8x128xf32>
    %119 = math.log %118 : vector<8x128xf32>
    %120 = arith.addf %112, %119 : vector<8x128xf32>
    %cst_41 = arith.constant 0.000000e+00 : f32
    %121 = vector.broadcast %cst_41 : f32 to vector<8x128xf32>
    %122 = arith.subf %121, %120 : vector<8x128xf32>
    %cst_42 = arith.constant 0.000000e+00 : f32
    %123 = vector.broadcast %cst_42 : f32 to vector<8x128xf32>
    %124 = arith.subf %123, %108 : vector<8x128xf32>
    %125 = arith.subf %124, %120 : vector<8x128xf32>
    %cst_43 = arith.constant 0.000000e+00 : f32
    %126 = vector.broadcast %cst_43 : f32 to vector<8x128xf32>
    %127 = arith.subf %126, %108 : vector<8x128xf32>
    %cst_44 = arith.constant 2.000000e+00 : f32
    %128 = vector.broadcast %cst_44 : f32 to vector<8x128xf32>
    %129 = arith.mulf %128, %120 : vector<8x128xf32>
    %130 = arith.subf %127, %129 : vector<8x128xf32>
    %131 = vector.broadcast %67 : f32 to vector<8x128xf32>
    %132 = arith.subf %130, %131 : vector<8x128xf32>
    %133 = vector.broadcast %5 : f32 to vector<8x128xf32>
    %134 = arith.subf %104, %133 : vector<8x128xf32>
    %135 = vector.broadcast %37 : f32 to vector<8x128xf32>
    %136 = arith.mulf %134, %135 : vector<8x128xf32>
    %cst_45 = arith.constant 0.000000e+00 : f32
    %137 = vector.broadcast %cst_45 : f32 to vector<8x128xf32>
    %138 = arith.subf %137, %136 : vector<8x128xf32>
    %cst_46 = arith.constant 0.000000e+00 : f32
    %139 = vector.broadcast %cst_46 : f32 to vector<8x128xf32>
    %140 = arith.maximumf %138, %139 : vector<8x128xf32>
    %141 = math.absf %138 : vector<8x128xf32>
    %cst_47 = arith.constant 0.000000e+00 : f32
    %142 = vector.broadcast %cst_47 : f32 to vector<8x128xf32>
    %143 = arith.subf %142, %141 : vector<8x128xf32>
    %144 = math.exp %143 : vector<8x128xf32>
    %cst_48 = arith.constant 1.000000e+00 : f32
    %145 = vector.broadcast %cst_48 : f32 to vector<8x128xf32>
    %146 = arith.addf %145, %144 : vector<8x128xf32>
    %147 = math.log %146 : vector<8x128xf32>
    %148 = arith.addf %140, %147 : vector<8x128xf32>
    %cst_49 = arith.constant 0.000000e+00 : f32
    %149 = vector.broadcast %cst_49 : f32 to vector<8x128xf32>
    %150 = arith.subf %149, %148 : vector<8x128xf32>
    %cst_50 = arith.constant 0.000000e+00 : f32
    %151 = vector.broadcast %cst_50 : f32 to vector<8x128xf32>
    %152 = arith.subf %151, %136 : vector<8x128xf32>
    %153 = arith.subf %152, %148 : vector<8x128xf32>
    %cst_51 = arith.constant 0.000000e+00 : f32
    %154 = vector.broadcast %cst_51 : f32 to vector<8x128xf32>
    %155 = arith.subf %154, %136 : vector<8x128xf32>
    %cst_52 = arith.constant 2.000000e+00 : f32
    %156 = vector.broadcast %cst_52 : f32 to vector<8x128xf32>
    %157 = arith.mulf %156, %148 : vector<8x128xf32>
    %158 = arith.subf %155, %157 : vector<8x128xf32>
    %159 = vector.broadcast %69 : f32 to vector<8x128xf32>
    %160 = arith.subf %158, %159 : vector<8x128xf32>
    %161 = vector.broadcast %7 : f32 to vector<8x128xf32>
    %162 = arith.subf %104, %161 : vector<8x128xf32>
    %163 = vector.broadcast %39 : f32 to vector<8x128xf32>
    %164 = arith.mulf %162, %163 : vector<8x128xf32>
    %cst_53 = arith.constant 0.000000e+00 : f32
    %165 = vector.broadcast %cst_53 : f32 to vector<8x128xf32>
    %166 = arith.subf %165, %164 : vector<8x128xf32>
    %cst_54 = arith.constant 0.000000e+00 : f32
    %167 = vector.broadcast %cst_54 : f32 to vector<8x128xf32>
    %168 = arith.maximumf %166, %167 : vector<8x128xf32>
    %169 = math.absf %166 : vector<8x128xf32>
    %cst_55 = arith.constant 0.000000e+00 : f32
    %170 = vector.broadcast %cst_55 : f32 to vector<8x128xf32>
    %171 = arith.subf %170, %169 : vector<8x128xf32>
    %172 = math.exp %171 : vector<8x128xf32>
    %cst_56 = arith.constant 1.000000e+00 : f32
    %173 = vector.broadcast %cst_56 : f32 to vector<8x128xf32>
    %174 = arith.addf %173, %172 : vector<8x128xf32>
    %175 = math.log %174 : vector<8x128xf32>
    %176 = arith.addf %168, %175 : vector<8x128xf32>
    %cst_57 = arith.constant 0.000000e+00 : f32
    %177 = vector.broadcast %cst_57 : f32 to vector<8x128xf32>
    %178 = arith.subf %177, %176 : vector<8x128xf32>
    %cst_58 = arith.constant 0.000000e+00 : f32
    %179 = vector.broadcast %cst_58 : f32 to vector<8x128xf32>
    %180 = arith.subf %179, %164 : vector<8x128xf32>
    %181 = arith.subf %180, %176 : vector<8x128xf32>
    %cst_59 = arith.constant 0.000000e+00 : f32
    %182 = vector.broadcast %cst_59 : f32 to vector<8x128xf32>
    %183 = arith.subf %182, %164 : vector<8x128xf32>
    %cst_60 = arith.constant 2.000000e+00 : f32
    %184 = vector.broadcast %cst_60 : f32 to vector<8x128xf32>
    %185 = arith.mulf %184, %176 : vector<8x128xf32>
    %186 = arith.subf %183, %185 : vector<8x128xf32>
    %187 = vector.broadcast %71 : f32 to vector<8x128xf32>
    %188 = arith.subf %186, %187 : vector<8x128xf32>
    %189 = vector.broadcast %9 : f32 to vector<8x128xf32>
    %190 = arith.subf %104, %189 : vector<8x128xf32>
    %191 = vector.broadcast %41 : f32 to vector<8x128xf32>
    %192 = arith.mulf %190, %191 : vector<8x128xf32>
    %cst_61 = arith.constant 0.000000e+00 : f32
    %193 = vector.broadcast %cst_61 : f32 to vector<8x128xf32>
    %194 = arith.subf %193, %192 : vector<8x128xf32>
    %cst_62 = arith.constant 0.000000e+00 : f32
    %195 = vector.broadcast %cst_62 : f32 to vector<8x128xf32>
    %196 = arith.maximumf %194, %195 : vector<8x128xf32>
    %197 = math.absf %194 : vector<8x128xf32>
    %cst_63 = arith.constant 0.000000e+00 : f32
    %198 = vector.broadcast %cst_63 : f32 to vector<8x128xf32>
    %199 = arith.subf %198, %197 : vector<8x128xf32>
    %200 = math.exp %199 : vector<8x128xf32>
    %cst_64 = arith.constant 1.000000e+00 : f32
    %201 = vector.broadcast %cst_64 : f32 to vector<8x128xf32>
    %202 = arith.addf %201, %200 : vector<8x128xf32>
    %203 = math.log %202 : vector<8x128xf32>
    %204 = arith.addf %196, %203 : vector<8x128xf32>
    %cst_65 = arith.constant 0.000000e+00 : f32
    %205 = vector.broadcast %cst_65 : f32 to vector<8x128xf32>
    %206 = arith.subf %205, %204 : vector<8x128xf32>
    %cst_66 = arith.constant 0.000000e+00 : f32
    %207 = vector.broadcast %cst_66 : f32 to vector<8x128xf32>
    %208 = arith.subf %207, %192 : vector<8x128xf32>
    %209 = arith.subf %208, %204 : vector<8x128xf32>
    %cst_67 = arith.constant 0.000000e+00 : f32
    %210 = vector.broadcast %cst_67 : f32 to vector<8x128xf32>
    %211 = arith.subf %210, %192 : vector<8x128xf32>
    %cst_68 = arith.constant 2.000000e+00 : f32
    %212 = vector.broadcast %cst_68 : f32 to vector<8x128xf32>
    %213 = arith.mulf %212, %204 : vector<8x128xf32>
    %214 = arith.subf %211, %213 : vector<8x128xf32>
    %215 = vector.broadcast %73 : f32 to vector<8x128xf32>
    %216 = arith.subf %214, %215 : vector<8x128xf32>
    %217 = vector.broadcast %11 : f32 to vector<8x128xf32>
    %218 = arith.subf %104, %217 : vector<8x128xf32>
    %219 = vector.broadcast %43 : f32 to vector<8x128xf32>
    %220 = arith.mulf %218, %219 : vector<8x128xf32>
    %cst_69 = arith.constant 0.000000e+00 : f32
    %221 = vector.broadcast %cst_69 : f32 to vector<8x128xf32>
    %222 = arith.subf %221, %220 : vector<8x128xf32>
    %cst_70 = arith.constant 0.000000e+00 : f32
    %223 = vector.broadcast %cst_70 : f32 to vector<8x128xf32>
    %224 = arith.maximumf %222, %223 : vector<8x128xf32>
    %225 = math.absf %222 : vector<8x128xf32>
    %cst_71 = arith.constant 0.000000e+00 : f32
    %226 = vector.broadcast %cst_71 : f32 to vector<8x128xf32>
    %227 = arith.subf %226, %225 : vector<8x128xf32>
    %228 = math.exp %227 : vector<8x128xf32>
    %cst_72 = arith.constant 1.000000e+00 : f32
    %229 = vector.broadcast %cst_72 : f32 to vector<8x128xf32>
    %230 = arith.addf %229, %228 : vector<8x128xf32>
    %231 = math.log %230 : vector<8x128xf32>
    %232 = arith.addf %224, %231 : vector<8x128xf32>
    %cst_73 = arith.constant 0.000000e+00 : f32
    %233 = vector.broadcast %cst_73 : f32 to vector<8x128xf32>
    %234 = arith.subf %233, %232 : vector<8x128xf32>
    %cst_74 = arith.constant 0.000000e+00 : f32
    %235 = vector.broadcast %cst_74 : f32 to vector<8x128xf32>
    %236 = arith.subf %235, %220 : vector<8x128xf32>
    %237 = arith.subf %236, %232 : vector<8x128xf32>
    %cst_75 = arith.constant 0.000000e+00 : f32
    %238 = vector.broadcast %cst_75 : f32 to vector<8x128xf32>
    %239 = arith.subf %238, %220 : vector<8x128xf32>
    %cst_76 = arith.constant 2.000000e+00 : f32
    %240 = vector.broadcast %cst_76 : f32 to vector<8x128xf32>
    %241 = arith.mulf %240, %232 : vector<8x128xf32>
    %242 = arith.subf %239, %241 : vector<8x128xf32>
    %243 = vector.broadcast %75 : f32 to vector<8x128xf32>
    %244 = arith.subf %242, %243 : vector<8x128xf32>
    %245 = vector.broadcast %13 : f32 to vector<8x128xf32>
    %246 = arith.subf %104, %245 : vector<8x128xf32>
    %247 = vector.broadcast %45 : f32 to vector<8x128xf32>
    %248 = arith.mulf %246, %247 : vector<8x128xf32>
    %cst_77 = arith.constant 0.000000e+00 : f32
    %249 = vector.broadcast %cst_77 : f32 to vector<8x128xf32>
    %250 = arith.subf %249, %248 : vector<8x128xf32>
    %cst_78 = arith.constant 0.000000e+00 : f32
    %251 = vector.broadcast %cst_78 : f32 to vector<8x128xf32>
    %252 = arith.maximumf %250, %251 : vector<8x128xf32>
    %253 = math.absf %250 : vector<8x128xf32>
    %cst_79 = arith.constant 0.000000e+00 : f32
    %254 = vector.broadcast %cst_79 : f32 to vector<8x128xf32>
    %255 = arith.subf %254, %253 : vector<8x128xf32>
    %256 = math.exp %255 : vector<8x128xf32>
    %cst_80 = arith.constant 1.000000e+00 : f32
    %257 = vector.broadcast %cst_80 : f32 to vector<8x128xf32>
    %258 = arith.addf %257, %256 : vector<8x128xf32>
    %259 = math.log %258 : vector<8x128xf32>
    %260 = arith.addf %252, %259 : vector<8x128xf32>
    %cst_81 = arith.constant 0.000000e+00 : f32
    %261 = vector.broadcast %cst_81 : f32 to vector<8x128xf32>
    %262 = arith.subf %261, %260 : vector<8x128xf32>
    %cst_82 = arith.constant 0.000000e+00 : f32
    %263 = vector.broadcast %cst_82 : f32 to vector<8x128xf32>
    %264 = arith.subf %263, %248 : vector<8x128xf32>
    %265 = arith.subf %264, %260 : vector<8x128xf32>
    %cst_83 = arith.constant 0.000000e+00 : f32
    %266 = vector.broadcast %cst_83 : f32 to vector<8x128xf32>
    %267 = arith.subf %266, %248 : vector<8x128xf32>
    %cst_84 = arith.constant 2.000000e+00 : f32
    %268 = vector.broadcast %cst_84 : f32 to vector<8x128xf32>
    %269 = arith.mulf %268, %260 : vector<8x128xf32>
    %270 = arith.subf %267, %269 : vector<8x128xf32>
    %271 = vector.broadcast %77 : f32 to vector<8x128xf32>
    %272 = arith.subf %270, %271 : vector<8x128xf32>
    %273 = vector.broadcast %15 : f32 to vector<8x128xf32>
    %274 = arith.subf %104, %273 : vector<8x128xf32>
    %275 = vector.broadcast %47 : f32 to vector<8x128xf32>
    %276 = arith.mulf %274, %275 : vector<8x128xf32>
    %cst_85 = arith.constant 0.000000e+00 : f32
    %277 = vector.broadcast %cst_85 : f32 to vector<8x128xf32>
    %278 = arith.subf %277, %276 : vector<8x128xf32>
    %cst_86 = arith.constant 0.000000e+00 : f32
    %279 = vector.broadcast %cst_86 : f32 to vector<8x128xf32>
    %280 = arith.maximumf %278, %279 : vector<8x128xf32>
    %281 = math.absf %278 : vector<8x128xf32>
    %cst_87 = arith.constant 0.000000e+00 : f32
    %282 = vector.broadcast %cst_87 : f32 to vector<8x128xf32>
    %283 = arith.subf %282, %281 : vector<8x128xf32>
    %284 = math.exp %283 : vector<8x128xf32>
    %cst_88 = arith.constant 1.000000e+00 : f32
    %285 = vector.broadcast %cst_88 : f32 to vector<8x128xf32>
    %286 = arith.addf %285, %284 : vector<8x128xf32>
    %287 = math.log %286 : vector<8x128xf32>
    %288 = arith.addf %280, %287 : vector<8x128xf32>
    %cst_89 = arith.constant 0.000000e+00 : f32
    %289 = vector.broadcast %cst_89 : f32 to vector<8x128xf32>
    %290 = arith.subf %289, %288 : vector<8x128xf32>
    %cst_90 = arith.constant 0.000000e+00 : f32
    %291 = vector.broadcast %cst_90 : f32 to vector<8x128xf32>
    %292 = arith.subf %291, %276 : vector<8x128xf32>
    %293 = arith.subf %292, %288 : vector<8x128xf32>
    %cst_91 = arith.constant 0.000000e+00 : f32
    %294 = vector.broadcast %cst_91 : f32 to vector<8x128xf32>
    %295 = arith.subf %294, %276 : vector<8x128xf32>
    %cst_92 = arith.constant 2.000000e+00 : f32
    %296 = vector.broadcast %cst_92 : f32 to vector<8x128xf32>
    %297 = arith.mulf %296, %288 : vector<8x128xf32>
    %298 = arith.subf %295, %297 : vector<8x128xf32>
    %299 = vector.broadcast %79 : f32 to vector<8x128xf32>
    %300 = arith.subf %298, %299 : vector<8x128xf32>
    %301 = vector.broadcast %17 : f32 to vector<8x128xf32>
    %302 = arith.subf %104, %301 : vector<8x128xf32>
    %303 = vector.broadcast %49 : f32 to vector<8x128xf32>
    %304 = arith.mulf %302, %303 : vector<8x128xf32>
    %cst_93 = arith.constant 0.000000e+00 : f32
    %305 = vector.broadcast %cst_93 : f32 to vector<8x128xf32>
    %306 = arith.subf %305, %304 : vector<8x128xf32>
    %cst_94 = arith.constant 0.000000e+00 : f32
    %307 = vector.broadcast %cst_94 : f32 to vector<8x128xf32>
    %308 = arith.maximumf %306, %307 : vector<8x128xf32>
    %309 = math.absf %306 : vector<8x128xf32>
    %cst_95 = arith.constant 0.000000e+00 : f32
    %310 = vector.broadcast %cst_95 : f32 to vector<8x128xf32>
    %311 = arith.subf %310, %309 : vector<8x128xf32>
    %312 = math.exp %311 : vector<8x128xf32>
    %cst_96 = arith.constant 1.000000e+00 : f32
    %313 = vector.broadcast %cst_96 : f32 to vector<8x128xf32>
    %314 = arith.addf %313, %312 : vector<8x128xf32>
    %315 = math.log %314 : vector<8x128xf32>
    %316 = arith.addf %308, %315 : vector<8x128xf32>
    %cst_97 = arith.constant 0.000000e+00 : f32
    %317 = vector.broadcast %cst_97 : f32 to vector<8x128xf32>
    %318 = arith.subf %317, %316 : vector<8x128xf32>
    %cst_98 = arith.constant 0.000000e+00 : f32
    %319 = vector.broadcast %cst_98 : f32 to vector<8x128xf32>
    %320 = arith.subf %319, %304 : vector<8x128xf32>
    %321 = arith.subf %320, %316 : vector<8x128xf32>
    %cst_99 = arith.constant 0.000000e+00 : f32
    %322 = vector.broadcast %cst_99 : f32 to vector<8x128xf32>
    %323 = arith.subf %322, %304 : vector<8x128xf32>
    %cst_100 = arith.constant 2.000000e+00 : f32
    %324 = vector.broadcast %cst_100 : f32 to vector<8x128xf32>
    %325 = arith.mulf %324, %316 : vector<8x128xf32>
    %326 = arith.subf %323, %325 : vector<8x128xf32>
    %327 = vector.broadcast %81 : f32 to vector<8x128xf32>
    %328 = arith.subf %326, %327 : vector<8x128xf32>
    %329 = vector.broadcast %19 : f32 to vector<8x128xf32>
    %330 = arith.subf %104, %329 : vector<8x128xf32>
    %331 = vector.broadcast %51 : f32 to vector<8x128xf32>
    %332 = arith.mulf %330, %331 : vector<8x128xf32>
    %cst_101 = arith.constant 0.000000e+00 : f32
    %333 = vector.broadcast %cst_101 : f32 to vector<8x128xf32>
    %334 = arith.subf %333, %332 : vector<8x128xf32>
    %cst_102 = arith.constant 0.000000e+00 : f32
    %335 = vector.broadcast %cst_102 : f32 to vector<8x128xf32>
    %336 = arith.maximumf %334, %335 : vector<8x128xf32>
    %337 = math.absf %334 : vector<8x128xf32>
    %cst_103 = arith.constant 0.000000e+00 : f32
    %338 = vector.broadcast %cst_103 : f32 to vector<8x128xf32>
    %339 = arith.subf %338, %337 : vector<8x128xf32>
    %340 = math.exp %339 : vector<8x128xf32>
    %cst_104 = arith.constant 1.000000e+00 : f32
    %341 = vector.broadcast %cst_104 : f32 to vector<8x128xf32>
    %342 = arith.addf %341, %340 : vector<8x128xf32>
    %343 = math.log %342 : vector<8x128xf32>
    %344 = arith.addf %336, %343 : vector<8x128xf32>
    %cst_105 = arith.constant 0.000000e+00 : f32
    %345 = vector.broadcast %cst_105 : f32 to vector<8x128xf32>
    %346 = arith.subf %345, %344 : vector<8x128xf32>
    %cst_106 = arith.constant 0.000000e+00 : f32
    %347 = vector.broadcast %cst_106 : f32 to vector<8x128xf32>
    %348 = arith.subf %347, %332 : vector<8x128xf32>
    %349 = arith.subf %348, %344 : vector<8x128xf32>
    %cst_107 = arith.constant 0.000000e+00 : f32
    %350 = vector.broadcast %cst_107 : f32 to vector<8x128xf32>
    %351 = arith.subf %350, %332 : vector<8x128xf32>
    %cst_108 = arith.constant 2.000000e+00 : f32
    %352 = vector.broadcast %cst_108 : f32 to vector<8x128xf32>
    %353 = arith.mulf %352, %344 : vector<8x128xf32>
    %354 = arith.subf %351, %353 : vector<8x128xf32>
    %355 = vector.broadcast %83 : f32 to vector<8x128xf32>
    %356 = arith.subf %354, %355 : vector<8x128xf32>
    %357 = vector.broadcast %21 : f32 to vector<8x128xf32>
    %358 = arith.subf %104, %357 : vector<8x128xf32>
    %359 = vector.broadcast %53 : f32 to vector<8x128xf32>
    %360 = arith.mulf %358, %359 : vector<8x128xf32>
    %cst_109 = arith.constant 0.000000e+00 : f32
    %361 = vector.broadcast %cst_109 : f32 to vector<8x128xf32>
    %362 = arith.subf %361, %360 : vector<8x128xf32>
    %cst_110 = arith.constant 0.000000e+00 : f32
    %363 = vector.broadcast %cst_110 : f32 to vector<8x128xf32>
    %364 = arith.maximumf %362, %363 : vector<8x128xf32>
    %365 = math.absf %362 : vector<8x128xf32>
    %cst_111 = arith.constant 0.000000e+00 : f32
    %366 = vector.broadcast %cst_111 : f32 to vector<8x128xf32>
    %367 = arith.subf %366, %365 : vector<8x128xf32>
    %368 = math.exp %367 : vector<8x128xf32>
    %cst_112 = arith.constant 1.000000e+00 : f32
    %369 = vector.broadcast %cst_112 : f32 to vector<8x128xf32>
    %370 = arith.addf %369, %368 : vector<8x128xf32>
    %371 = math.log %370 : vector<8x128xf32>
    %372 = arith.addf %364, %371 : vector<8x128xf32>
    %cst_113 = arith.constant 0.000000e+00 : f32
    %373 = vector.broadcast %cst_113 : f32 to vector<8x128xf32>
    %374 = arith.subf %373, %372 : vector<8x128xf32>
    %cst_114 = arith.constant 0.000000e+00 : f32
    %375 = vector.broadcast %cst_114 : f32 to vector<8x128xf32>
    %376 = arith.subf %375, %360 : vector<8x128xf32>
    %377 = arith.subf %376, %372 : vector<8x128xf32>
    %cst_115 = arith.constant 0.000000e+00 : f32
    %378 = vector.broadcast %cst_115 : f32 to vector<8x128xf32>
    %379 = arith.subf %378, %360 : vector<8x128xf32>
    %cst_116 = arith.constant 2.000000e+00 : f32
    %380 = vector.broadcast %cst_116 : f32 to vector<8x128xf32>
    %381 = arith.mulf %380, %372 : vector<8x128xf32>
    %382 = arith.subf %379, %381 : vector<8x128xf32>
    %383 = vector.broadcast %85 : f32 to vector<8x128xf32>
    %384 = arith.subf %382, %383 : vector<8x128xf32>
    %385 = vector.broadcast %23 : f32 to vector<8x128xf32>
    %386 = arith.subf %104, %385 : vector<8x128xf32>
    %387 = vector.broadcast %55 : f32 to vector<8x128xf32>
    %388 = arith.mulf %386, %387 : vector<8x128xf32>
    %cst_117 = arith.constant 0.000000e+00 : f32
    %389 = vector.broadcast %cst_117 : f32 to vector<8x128xf32>
    %390 = arith.subf %389, %388 : vector<8x128xf32>
    %cst_118 = arith.constant 0.000000e+00 : f32
    %391 = vector.broadcast %cst_118 : f32 to vector<8x128xf32>
    %392 = arith.maximumf %390, %391 : vector<8x128xf32>
    %393 = math.absf %390 : vector<8x128xf32>
    %cst_119 = arith.constant 0.000000e+00 : f32
    %394 = vector.broadcast %cst_119 : f32 to vector<8x128xf32>
    %395 = arith.subf %394, %393 : vector<8x128xf32>
    %396 = math.exp %395 : vector<8x128xf32>
    %cst_120 = arith.constant 1.000000e+00 : f32
    %397 = vector.broadcast %cst_120 : f32 to vector<8x128xf32>
    %398 = arith.addf %397, %396 : vector<8x128xf32>
    %399 = math.log %398 : vector<8x128xf32>
    %400 = arith.addf %392, %399 : vector<8x128xf32>
    %cst_121 = arith.constant 0.000000e+00 : f32
    %401 = vector.broadcast %cst_121 : f32 to vector<8x128xf32>
    %402 = arith.subf %401, %400 : vector<8x128xf32>
    %cst_122 = arith.constant 0.000000e+00 : f32
    %403 = vector.broadcast %cst_122 : f32 to vector<8x128xf32>
    %404 = arith.subf %403, %388 : vector<8x128xf32>
    %405 = arith.subf %404, %400 : vector<8x128xf32>
    %cst_123 = arith.constant 0.000000e+00 : f32
    %406 = vector.broadcast %cst_123 : f32 to vector<8x128xf32>
    %407 = arith.subf %406, %388 : vector<8x128xf32>
    %cst_124 = arith.constant 2.000000e+00 : f32
    %408 = vector.broadcast %cst_124 : f32 to vector<8x128xf32>
    %409 = arith.mulf %408, %400 : vector<8x128xf32>
    %410 = arith.subf %407, %409 : vector<8x128xf32>
    %411 = vector.broadcast %87 : f32 to vector<8x128xf32>
    %412 = arith.subf %410, %411 : vector<8x128xf32>
    %413 = vector.broadcast %25 : f32 to vector<8x128xf32>
    %414 = arith.subf %104, %413 : vector<8x128xf32>
    %415 = vector.broadcast %57 : f32 to vector<8x128xf32>
    %416 = arith.mulf %414, %415 : vector<8x128xf32>
    %cst_125 = arith.constant 0.000000e+00 : f32
    %417 = vector.broadcast %cst_125 : f32 to vector<8x128xf32>
    %418 = arith.subf %417, %416 : vector<8x128xf32>
    %cst_126 = arith.constant 0.000000e+00 : f32
    %419 = vector.broadcast %cst_126 : f32 to vector<8x128xf32>
    %420 = arith.maximumf %418, %419 : vector<8x128xf32>
    %421 = math.absf %418 : vector<8x128xf32>
    %cst_127 = arith.constant 0.000000e+00 : f32
    %422 = vector.broadcast %cst_127 : f32 to vector<8x128xf32>
    %423 = arith.subf %422, %421 : vector<8x128xf32>
    %424 = math.exp %423 : vector<8x128xf32>
    %cst_128 = arith.constant 1.000000e+00 : f32
    %425 = vector.broadcast %cst_128 : f32 to vector<8x128xf32>
    %426 = arith.addf %425, %424 : vector<8x128xf32>
    %427 = math.log %426 : vector<8x128xf32>
    %428 = arith.addf %420, %427 : vector<8x128xf32>
    %cst_129 = arith.constant 0.000000e+00 : f32
    %429 = vector.broadcast %cst_129 : f32 to vector<8x128xf32>
    %430 = arith.subf %429, %428 : vector<8x128xf32>
    %cst_130 = arith.constant 0.000000e+00 : f32
    %431 = vector.broadcast %cst_130 : f32 to vector<8x128xf32>
    %432 = arith.subf %431, %416 : vector<8x128xf32>
    %433 = arith.subf %432, %428 : vector<8x128xf32>
    %cst_131 = arith.constant 0.000000e+00 : f32
    %434 = vector.broadcast %cst_131 : f32 to vector<8x128xf32>
    %435 = arith.subf %434, %416 : vector<8x128xf32>
    %cst_132 = arith.constant 2.000000e+00 : f32
    %436 = vector.broadcast %cst_132 : f32 to vector<8x128xf32>
    %437 = arith.mulf %436, %428 : vector<8x128xf32>
    %438 = arith.subf %435, %437 : vector<8x128xf32>
    %439 = vector.broadcast %89 : f32 to vector<8x128xf32>
    %440 = arith.subf %438, %439 : vector<8x128xf32>
    %441 = vector.broadcast %27 : f32 to vector<8x128xf32>
    %442 = arith.subf %104, %441 : vector<8x128xf32>
    %443 = vector.broadcast %59 : f32 to vector<8x128xf32>
    %444 = arith.mulf %442, %443 : vector<8x128xf32>
    %cst_133 = arith.constant 0.000000e+00 : f32
    %445 = vector.broadcast %cst_133 : f32 to vector<8x128xf32>
    %446 = arith.subf %445, %444 : vector<8x128xf32>
    %cst_134 = arith.constant 0.000000e+00 : f32
    %447 = vector.broadcast %cst_134 : f32 to vector<8x128xf32>
    %448 = arith.maximumf %446, %447 : vector<8x128xf32>
    %449 = math.absf %446 : vector<8x128xf32>
    %cst_135 = arith.constant 0.000000e+00 : f32
    %450 = vector.broadcast %cst_135 : f32 to vector<8x128xf32>
    %451 = arith.subf %450, %449 : vector<8x128xf32>
    %452 = math.exp %451 : vector<8x128xf32>
    %cst_136 = arith.constant 1.000000e+00 : f32
    %453 = vector.broadcast %cst_136 : f32 to vector<8x128xf32>
    %454 = arith.addf %453, %452 : vector<8x128xf32>
    %455 = math.log %454 : vector<8x128xf32>
    %456 = arith.addf %448, %455 : vector<8x128xf32>
    %cst_137 = arith.constant 0.000000e+00 : f32
    %457 = vector.broadcast %cst_137 : f32 to vector<8x128xf32>
    %458 = arith.subf %457, %456 : vector<8x128xf32>
    %cst_138 = arith.constant 0.000000e+00 : f32
    %459 = vector.broadcast %cst_138 : f32 to vector<8x128xf32>
    %460 = arith.subf %459, %444 : vector<8x128xf32>
    %461 = arith.subf %460, %456 : vector<8x128xf32>
    %cst_139 = arith.constant 0.000000e+00 : f32
    %462 = vector.broadcast %cst_139 : f32 to vector<8x128xf32>
    %463 = arith.subf %462, %444 : vector<8x128xf32>
    %cst_140 = arith.constant 2.000000e+00 : f32
    %464 = vector.broadcast %cst_140 : f32 to vector<8x128xf32>
    %465 = arith.mulf %464, %456 : vector<8x128xf32>
    %466 = arith.subf %463, %465 : vector<8x128xf32>
    %467 = vector.broadcast %91 : f32 to vector<8x128xf32>
    %468 = arith.subf %466, %467 : vector<8x128xf32>
    %469 = vector.broadcast %29 : f32 to vector<8x128xf32>
    %470 = arith.subf %104, %469 : vector<8x128xf32>
    %471 = vector.broadcast %61 : f32 to vector<8x128xf32>
    %472 = arith.mulf %470, %471 : vector<8x128xf32>
    %cst_141 = arith.constant 0.000000e+00 : f32
    %473 = vector.broadcast %cst_141 : f32 to vector<8x128xf32>
    %474 = arith.subf %473, %472 : vector<8x128xf32>
    %cst_142 = arith.constant 0.000000e+00 : f32
    %475 = vector.broadcast %cst_142 : f32 to vector<8x128xf32>
    %476 = arith.maximumf %474, %475 : vector<8x128xf32>
    %477 = math.absf %474 : vector<8x128xf32>
    %cst_143 = arith.constant 0.000000e+00 : f32
    %478 = vector.broadcast %cst_143 : f32 to vector<8x128xf32>
    %479 = arith.subf %478, %477 : vector<8x128xf32>
    %480 = math.exp %479 : vector<8x128xf32>
    %cst_144 = arith.constant 1.000000e+00 : f32
    %481 = vector.broadcast %cst_144 : f32 to vector<8x128xf32>
    %482 = arith.addf %481, %480 : vector<8x128xf32>
    %483 = math.log %482 : vector<8x128xf32>
    %484 = arith.addf %476, %483 : vector<8x128xf32>
    %cst_145 = arith.constant 0.000000e+00 : f32
    %485 = vector.broadcast %cst_145 : f32 to vector<8x128xf32>
    %486 = arith.subf %485, %484 : vector<8x128xf32>
    %cst_146 = arith.constant 0.000000e+00 : f32
    %487 = vector.broadcast %cst_146 : f32 to vector<8x128xf32>
    %488 = arith.subf %487, %472 : vector<8x128xf32>
    %489 = arith.subf %488, %484 : vector<8x128xf32>
    %cst_147 = arith.constant 0.000000e+00 : f32
    %490 = vector.broadcast %cst_147 : f32 to vector<8x128xf32>
    %491 = arith.subf %490, %472 : vector<8x128xf32>
    %cst_148 = arith.constant 2.000000e+00 : f32
    %492 = vector.broadcast %cst_148 : f32 to vector<8x128xf32>
    %493 = arith.mulf %492, %484 : vector<8x128xf32>
    %494 = arith.subf %491, %493 : vector<8x128xf32>
    %495 = vector.broadcast %93 : f32 to vector<8x128xf32>
    %496 = arith.subf %494, %495 : vector<8x128xf32>
    %497 = vector.broadcast %31 : f32 to vector<8x128xf32>
    %498 = arith.subf %104, %497 : vector<8x128xf32>
    %499 = vector.broadcast %63 : f32 to vector<8x128xf32>
    %500 = arith.mulf %498, %499 : vector<8x128xf32>
    %cst_149 = arith.constant 0.000000e+00 : f32
    %501 = vector.broadcast %cst_149 : f32 to vector<8x128xf32>
    %502 = arith.subf %501, %500 : vector<8x128xf32>
    %cst_150 = arith.constant 0.000000e+00 : f32
    %503 = vector.broadcast %cst_150 : f32 to vector<8x128xf32>
    %504 = arith.maximumf %502, %503 : vector<8x128xf32>
    %505 = math.absf %502 : vector<8x128xf32>
    %cst_151 = arith.constant 0.000000e+00 : f32
    %506 = vector.broadcast %cst_151 : f32 to vector<8x128xf32>
    %507 = arith.subf %506, %505 : vector<8x128xf32>
    %508 = math.exp %507 : vector<8x128xf32>
    %cst_152 = arith.constant 1.000000e+00 : f32
    %509 = vector.broadcast %cst_152 : f32 to vector<8x128xf32>
    %510 = arith.addf %509, %508 : vector<8x128xf32>
    %511 = math.log %510 : vector<8x128xf32>
    %512 = arith.addf %504, %511 : vector<8x128xf32>
    %cst_153 = arith.constant 0.000000e+00 : f32
    %513 = vector.broadcast %cst_153 : f32 to vector<8x128xf32>
    %514 = arith.subf %513, %512 : vector<8x128xf32>
    %cst_154 = arith.constant 0.000000e+00 : f32
    %515 = vector.broadcast %cst_154 : f32 to vector<8x128xf32>
    %516 = arith.subf %515, %500 : vector<8x128xf32>
    %517 = arith.subf %516, %512 : vector<8x128xf32>
    %cst_155 = arith.constant 0.000000e+00 : f32
    %518 = vector.broadcast %cst_155 : f32 to vector<8x128xf32>
    %519 = arith.subf %518, %500 : vector<8x128xf32>
    %cst_156 = arith.constant 2.000000e+00 : f32
    %520 = vector.broadcast %cst_156 : f32 to vector<8x128xf32>
    %521 = arith.mulf %520, %512 : vector<8x128xf32>
    %522 = arith.subf %519, %521 : vector<8x128xf32>
    %523 = vector.broadcast %95 : f32 to vector<8x128xf32>
    %524 = arith.subf %522, %523 : vector<8x128xf32>
    %525 = vector.broadcast %33 : f32 to vector<8x128xf32>
    %526 = arith.subf %104, %525 : vector<8x128xf32>
    %527 = vector.broadcast %65 : f32 to vector<8x128xf32>
    %528 = arith.mulf %526, %527 : vector<8x128xf32>
    %cst_157 = arith.constant 0.000000e+00 : f32
    %529 = vector.broadcast %cst_157 : f32 to vector<8x128xf32>
    %530 = arith.subf %529, %528 : vector<8x128xf32>
    %cst_158 = arith.constant 0.000000e+00 : f32
    %531 = vector.broadcast %cst_158 : f32 to vector<8x128xf32>
    %532 = arith.maximumf %530, %531 : vector<8x128xf32>
    %533 = math.absf %530 : vector<8x128xf32>
    %cst_159 = arith.constant 0.000000e+00 : f32
    %534 = vector.broadcast %cst_159 : f32 to vector<8x128xf32>
    %535 = arith.subf %534, %533 : vector<8x128xf32>
    %536 = math.exp %535 : vector<8x128xf32>
    %cst_160 = arith.constant 1.000000e+00 : f32
    %537 = vector.broadcast %cst_160 : f32 to vector<8x128xf32>
    %538 = arith.addf %537, %536 : vector<8x128xf32>
    %539 = math.log %538 : vector<8x128xf32>
    %540 = arith.addf %532, %539 : vector<8x128xf32>
    %cst_161 = arith.constant 0.000000e+00 : f32
    %541 = vector.broadcast %cst_161 : f32 to vector<8x128xf32>
    %542 = arith.subf %541, %540 : vector<8x128xf32>
    %cst_162 = arith.constant 0.000000e+00 : f32
    %543 = vector.broadcast %cst_162 : f32 to vector<8x128xf32>
    %544 = arith.subf %543, %528 : vector<8x128xf32>
    %545 = arith.subf %544, %540 : vector<8x128xf32>
    %cst_163 = arith.constant 0.000000e+00 : f32
    %546 = vector.broadcast %cst_163 : f32 to vector<8x128xf32>
    %547 = arith.subf %546, %528 : vector<8x128xf32>
    %cst_164 = arith.constant 2.000000e+00 : f32
    %548 = vector.broadcast %cst_164 : f32 to vector<8x128xf32>
    %549 = arith.mulf %548, %540 : vector<8x128xf32>
    %550 = arith.subf %547, %549 : vector<8x128xf32>
    %551 = vector.broadcast %97 : f32 to vector<8x128xf32>
    %552 = arith.subf %550, %551 : vector<8x128xf32>
    %553 = arith.maximumf %122, %150 : vector<8x128xf32>
    %554 = arith.maximumf %553, %178 : vector<8x128xf32>
    %555 = arith.maximumf %554, %206 : vector<8x128xf32>
    %556 = arith.maximumf %555, %234 : vector<8x128xf32>
    %557 = arith.maximumf %556, %262 : vector<8x128xf32>
    %558 = arith.maximumf %557, %290 : vector<8x128xf32>
    %559 = arith.maximumf %558, %318 : vector<8x128xf32>
    %560 = arith.maximumf %559, %346 : vector<8x128xf32>
    %561 = arith.maximumf %560, %374 : vector<8x128xf32>
    %562 = arith.maximumf %561, %402 : vector<8x128xf32>
    %563 = arith.maximumf %562, %430 : vector<8x128xf32>
    %564 = arith.maximumf %563, %458 : vector<8x128xf32>
    %565 = arith.maximumf %564, %486 : vector<8x128xf32>
    %566 = arith.maximumf %565, %514 : vector<8x128xf32>
    %567 = arith.maximumf %566, %542 : vector<8x128xf32>
    %568 = arith.subf %122, %567 : vector<8x128xf32>
    %569 = math.exp %568 : vector<8x128xf32>
    %570 = arith.subf %150, %567 : vector<8x128xf32>
    %571 = math.exp %570 : vector<8x128xf32>
    %572 = arith.addf %569, %571 : vector<8x128xf32>
    %573 = arith.subf %178, %567 : vector<8x128xf32>
    %574 = math.exp %573 : vector<8x128xf32>
    %575 = arith.addf %572, %574 : vector<8x128xf32>
    %576 = arith.subf %206, %567 : vector<8x128xf32>
    %577 = math.exp %576 : vector<8x128xf32>
    %578 = arith.addf %575, %577 : vector<8x128xf32>
    %579 = arith.subf %234, %567 : vector<8x128xf32>
    %580 = math.exp %579 : vector<8x128xf32>
    %581 = arith.addf %578, %580 : vector<8x128xf32>
    %582 = arith.subf %262, %567 : vector<8x128xf32>
    %583 = math.exp %582 : vector<8x128xf32>
    %584 = arith.addf %581, %583 : vector<8x128xf32>
    %585 = arith.subf %290, %567 : vector<8x128xf32>
    %586 = math.exp %585 : vector<8x128xf32>
    %587 = arith.addf %584, %586 : vector<8x128xf32>
    %588 = arith.subf %318, %567 : vector<8x128xf32>
    %589 = math.exp %588 : vector<8x128xf32>
    %590 = arith.addf %587, %589 : vector<8x128xf32>
    %591 = arith.subf %346, %567 : vector<8x128xf32>
    %592 = math.exp %591 : vector<8x128xf32>
    %593 = arith.addf %590, %592 : vector<8x128xf32>
    %594 = arith.subf %374, %567 : vector<8x128xf32>
    %595 = math.exp %594 : vector<8x128xf32>
    %596 = arith.addf %593, %595 : vector<8x128xf32>
    %597 = arith.subf %402, %567 : vector<8x128xf32>
    %598 = math.exp %597 : vector<8x128xf32>
    %599 = arith.addf %596, %598 : vector<8x128xf32>
    %600 = arith.subf %430, %567 : vector<8x128xf32>
    %601 = math.exp %600 : vector<8x128xf32>
    %602 = arith.addf %599, %601 : vector<8x128xf32>
    %603 = arith.subf %458, %567 : vector<8x128xf32>
    %604 = math.exp %603 : vector<8x128xf32>
    %605 = arith.addf %602, %604 : vector<8x128xf32>
    %606 = arith.subf %486, %567 : vector<8x128xf32>
    %607 = math.exp %606 : vector<8x128xf32>
    %608 = arith.addf %605, %607 : vector<8x128xf32>
    %609 = arith.subf %514, %567 : vector<8x128xf32>
    %610 = math.exp %609 : vector<8x128xf32>
    %611 = arith.addf %608, %610 : vector<8x128xf32>
    %612 = arith.subf %542, %567 : vector<8x128xf32>
    %613 = math.exp %612 : vector<8x128xf32>
    %614 = arith.addf %611, %613 : vector<8x128xf32>
    %615 = math.log %614 : vector<8x128xf32>
    %616 = arith.addf %615, %567 : vector<8x128xf32>
    %cst_165 = arith.constant 2.77258873 : f32
    %617 = vector.broadcast %cst_165 : f32 to vector<8x128xf32>
    %618 = arith.subf %616, %617 : vector<8x128xf32>
    %619 = arith.maximumf %125, %153 : vector<8x128xf32>
    %620 = arith.maximumf %619, %181 : vector<8x128xf32>
    %621 = arith.maximumf %620, %209 : vector<8x128xf32>
    %622 = arith.maximumf %621, %237 : vector<8x128xf32>
    %623 = arith.maximumf %622, %265 : vector<8x128xf32>
    %624 = arith.maximumf %623, %293 : vector<8x128xf32>
    %625 = arith.maximumf %624, %321 : vector<8x128xf32>
    %626 = arith.maximumf %625, %349 : vector<8x128xf32>
    %627 = arith.maximumf %626, %377 : vector<8x128xf32>
    %628 = arith.maximumf %627, %405 : vector<8x128xf32>
    %629 = arith.maximumf %628, %433 : vector<8x128xf32>
    %630 = arith.maximumf %629, %461 : vector<8x128xf32>
    %631 = arith.maximumf %630, %489 : vector<8x128xf32>
    %632 = arith.maximumf %631, %517 : vector<8x128xf32>
    %633 = arith.maximumf %632, %545 : vector<8x128xf32>
    %634 = arith.subf %125, %633 : vector<8x128xf32>
    %635 = math.exp %634 : vector<8x128xf32>
    %636 = arith.subf %153, %633 : vector<8x128xf32>
    %637 = math.exp %636 : vector<8x128xf32>
    %638 = arith.addf %635, %637 : vector<8x128xf32>
    %639 = arith.subf %181, %633 : vector<8x128xf32>
    %640 = math.exp %639 : vector<8x128xf32>
    %641 = arith.addf %638, %640 : vector<8x128xf32>
    %642 = arith.subf %209, %633 : vector<8x128xf32>
    %643 = math.exp %642 : vector<8x128xf32>
    %644 = arith.addf %641, %643 : vector<8x128xf32>
    %645 = arith.subf %237, %633 : vector<8x128xf32>
    %646 = math.exp %645 : vector<8x128xf32>
    %647 = arith.addf %644, %646 : vector<8x128xf32>
    %648 = arith.subf %265, %633 : vector<8x128xf32>
    %649 = math.exp %648 : vector<8x128xf32>
    %650 = arith.addf %647, %649 : vector<8x128xf32>
    %651 = arith.subf %293, %633 : vector<8x128xf32>
    %652 = math.exp %651 : vector<8x128xf32>
    %653 = arith.addf %650, %652 : vector<8x128xf32>
    %654 = arith.subf %321, %633 : vector<8x128xf32>
    %655 = math.exp %654 : vector<8x128xf32>
    %656 = arith.addf %653, %655 : vector<8x128xf32>
    %657 = arith.subf %349, %633 : vector<8x128xf32>
    %658 = math.exp %657 : vector<8x128xf32>
    %659 = arith.addf %656, %658 : vector<8x128xf32>
    %660 = arith.subf %377, %633 : vector<8x128xf32>
    %661 = math.exp %660 : vector<8x128xf32>
    %662 = arith.addf %659, %661 : vector<8x128xf32>
    %663 = arith.subf %405, %633 : vector<8x128xf32>
    %664 = math.exp %663 : vector<8x128xf32>
    %665 = arith.addf %662, %664 : vector<8x128xf32>
    %666 = arith.subf %433, %633 : vector<8x128xf32>
    %667 = math.exp %666 : vector<8x128xf32>
    %668 = arith.addf %665, %667 : vector<8x128xf32>
    %669 = arith.subf %461, %633 : vector<8x128xf32>
    %670 = math.exp %669 : vector<8x128xf32>
    %671 = arith.addf %668, %670 : vector<8x128xf32>
    %672 = arith.subf %489, %633 : vector<8x128xf32>
    %673 = math.exp %672 : vector<8x128xf32>
    %674 = arith.addf %671, %673 : vector<8x128xf32>
    %675 = arith.subf %517, %633 : vector<8x128xf32>
    %676 = math.exp %675 : vector<8x128xf32>
    %677 = arith.addf %674, %676 : vector<8x128xf32>
    %678 = arith.subf %545, %633 : vector<8x128xf32>
    %679 = math.exp %678 : vector<8x128xf32>
    %680 = arith.addf %677, %679 : vector<8x128xf32>
    %681 = math.log %680 : vector<8x128xf32>
    %682 = arith.addf %681, %633 : vector<8x128xf32>
    %cst_166 = arith.constant 2.77258873 : f32
    %683 = vector.broadcast %cst_166 : f32 to vector<8x128xf32>
    %684 = arith.subf %682, %683 : vector<8x128xf32>
    %685 = arith.maximumf %132, %160 : vector<8x128xf32>
    %686 = arith.maximumf %685, %188 : vector<8x128xf32>
    %687 = arith.maximumf %686, %216 : vector<8x128xf32>
    %688 = arith.maximumf %687, %244 : vector<8x128xf32>
    %689 = arith.maximumf %688, %272 : vector<8x128xf32>
    %690 = arith.maximumf %689, %300 : vector<8x128xf32>
    %691 = arith.maximumf %690, %328 : vector<8x128xf32>
    %692 = arith.maximumf %691, %356 : vector<8x128xf32>
    %693 = arith.maximumf %692, %384 : vector<8x128xf32>
    %694 = arith.maximumf %693, %412 : vector<8x128xf32>
    %695 = arith.maximumf %694, %440 : vector<8x128xf32>
    %696 = arith.maximumf %695, %468 : vector<8x128xf32>
    %697 = arith.maximumf %696, %496 : vector<8x128xf32>
    %698 = arith.maximumf %697, %524 : vector<8x128xf32>
    %699 = arith.maximumf %698, %552 : vector<8x128xf32>
    %700 = arith.subf %132, %699 : vector<8x128xf32>
    %701 = math.exp %700 : vector<8x128xf32>
    %702 = arith.subf %160, %699 : vector<8x128xf32>
    %703 = math.exp %702 : vector<8x128xf32>
    %704 = arith.addf %701, %703 : vector<8x128xf32>
    %705 = arith.subf %188, %699 : vector<8x128xf32>
    %706 = math.exp %705 : vector<8x128xf32>
    %707 = arith.addf %704, %706 : vector<8x128xf32>
    %708 = arith.subf %216, %699 : vector<8x128xf32>
    %709 = math.exp %708 : vector<8x128xf32>
    %710 = arith.addf %707, %709 : vector<8x128xf32>
    %711 = arith.subf %244, %699 : vector<8x128xf32>
    %712 = math.exp %711 : vector<8x128xf32>
    %713 = arith.addf %710, %712 : vector<8x128xf32>
    %714 = arith.subf %272, %699 : vector<8x128xf32>
    %715 = math.exp %714 : vector<8x128xf32>
    %716 = arith.addf %713, %715 : vector<8x128xf32>
    %717 = arith.subf %300, %699 : vector<8x128xf32>
    %718 = math.exp %717 : vector<8x128xf32>
    %719 = arith.addf %716, %718 : vector<8x128xf32>
    %720 = arith.subf %328, %699 : vector<8x128xf32>
    %721 = math.exp %720 : vector<8x128xf32>
    %722 = arith.addf %719, %721 : vector<8x128xf32>
    %723 = arith.subf %356, %699 : vector<8x128xf32>
    %724 = math.exp %723 : vector<8x128xf32>
    %725 = arith.addf %722, %724 : vector<8x128xf32>
    %726 = arith.subf %384, %699 : vector<8x128xf32>
    %727 = math.exp %726 : vector<8x128xf32>
    %728 = arith.addf %725, %727 : vector<8x128xf32>
    %729 = arith.subf %412, %699 : vector<8x128xf32>
    %730 = math.exp %729 : vector<8x128xf32>
    %731 = arith.addf %728, %730 : vector<8x128xf32>
    %732 = arith.subf %440, %699 : vector<8x128xf32>
    %733 = math.exp %732 : vector<8x128xf32>
    %734 = arith.addf %731, %733 : vector<8x128xf32>
    %735 = arith.subf %468, %699 : vector<8x128xf32>
    %736 = math.exp %735 : vector<8x128xf32>
    %737 = arith.addf %734, %736 : vector<8x128xf32>
    %738 = arith.subf %496, %699 : vector<8x128xf32>
    %739 = math.exp %738 : vector<8x128xf32>
    %740 = arith.addf %737, %739 : vector<8x128xf32>
    %741 = arith.subf %524, %699 : vector<8x128xf32>
    %742 = math.exp %741 : vector<8x128xf32>
    %743 = arith.addf %740, %742 : vector<8x128xf32>
    %744 = arith.subf %552, %699 : vector<8x128xf32>
    %745 = math.exp %744 : vector<8x128xf32>
    %746 = arith.addf %743, %745 : vector<8x128xf32>
    %747 = math.log %746 : vector<8x128xf32>
    %748 = arith.addf %747, %699 : vector<8x128xf32>
    %cst_167 = arith.constant 2.77258873 : f32
    %749 = vector.broadcast %cst_167 : f32 to vector<8x128xf32>
    %750 = arith.subf %748, %749 : vector<8x128xf32>
    %751 = math.exp %618 : vector<8x128xf32>
    %cst_168 = arith.constant 5.000000e-08 : f32
    %752 = vector.broadcast %cst_168 : f32 to vector<8x128xf32>
    %753 = arith.cmpf ogt, %751, %752 : vector<8x128xf32>
    %cst_169 = arith.constant 0.99999994 : f32
    %754 = vector.broadcast %cst_169 : f32 to vector<8x128xf32>
    %755 = arith.cmpf olt, %751, %754 : vector<8x128xf32>
    %756 = arith.andi %753, %755 : vector<8x128xi1>
    %757 = arith.extui %756 : vector<8x128xi1> to vector<8x128xi32>
    %758 = arith.sitofp %757 : vector<8x128xi32> to vector<8x128xf32>
    %cst_170 = arith.constant 5.000000e-08 : f32
    %759 = vector.broadcast %cst_170 : f32 to vector<8x128xf32>
    %760 = arith.cmpf ole, %751, %759 : vector<8x128xf32>
    %761 = arith.extui %760 : vector<8x128xi1> to vector<8x128xi32>
    %762 = arith.sitofp %761 : vector<8x128xi32> to vector<8x128xf32>
    %cst_171 = arith.constant 0.99999994 : f32
    %763 = vector.broadcast %cst_171 : f32 to vector<8x128xf32>
    %764 = arith.cmpf oge, %751, %763 : vector<8x128xf32>
    %765 = arith.extui %764 : vector<8x128xi1> to vector<8x128xi32>
    %766 = arith.sitofp %765 : vector<8x128xi32> to vector<8x128xf32>
    %767 = arith.mulf %751, %758 : vector<8x128xf32>
    %cst_172 = arith.constant 1.000000e+00 : f32
    %768 = vector.broadcast %cst_172 : f32 to vector<8x128xf32>
    %769 = arith.subf %768, %758 : vector<8x128xf32>
    %cst_173 = arith.constant 5.000000e-01 : f32
    %770 = vector.broadcast %cst_173 : f32 to vector<8x128xf32>
    %771 = arith.mulf %770, %769 : vector<8x128xf32>
    %772 = arith.addf %767, %771 : vector<8x128xf32>
    %cst_174 = arith.constant 2.000000e+00 : f32
    %773 = vector.broadcast %cst_174 : f32 to vector<8x128xf32>
    %774 = arith.mulf %773, %772 : vector<8x128xf32>
    %cst_175 = arith.constant 1.000000e+00 : f32
    %775 = vector.broadcast %cst_175 : f32 to vector<8x128xf32>
    %776 = arith.subf %774, %775 : vector<8x128xf32>
    %cst_176 = arith.constant 1.000000e+00 : f32
    %777 = vector.broadcast %cst_176 : f32 to vector<8x128xf32>
    %778 = arith.subf %777, %776 : vector<8x128xf32>
    %cst_177 = arith.constant 1.000000e+00 : f32
    %779 = vector.broadcast %cst_177 : f32 to vector<8x128xf32>
    %780 = arith.addf %779, %776 : vector<8x128xf32>
    %781 = arith.mulf %778, %780 : vector<8x128xf32>
    %782 = math.log %781 : vector<8x128xf32>
    %cst_178 = arith.constant 0.000000e+00 : f32
    %783 = vector.broadcast %cst_178 : f32 to vector<8x128xf32>
    %784 = arith.subf %783, %782 : vector<8x128xf32>
    %cst_179 = arith.constant 2.500000e+00 : f32
    %785 = vector.broadcast %cst_179 : f32 to vector<8x128xf32>
    %786 = arith.subf %784, %785 : vector<8x128xf32>
    %cst_180 = arith.constant 2.81022636E-8 : f32
    %787 = vector.broadcast %cst_180 : f32 to vector<8x128xf32>
    %788 = arith.mulf %787, %786 : vector<8x128xf32>
    %cst_181 = arith.constant 3.43273939E-7 : f32
    %789 = vector.broadcast %cst_181 : f32 to vector<8x128xf32>
    %790 = arith.addf %789, %788 : vector<8x128xf32>
    %791 = arith.mulf %790, %786 : vector<8x128xf32>
    %cst_182 = arith.constant -3.5233877E-6 : f32
    %792 = vector.broadcast %cst_182 : f32 to vector<8x128xf32>
    %793 = arith.addf %792, %791 : vector<8x128xf32>
    %794 = arith.mulf %793, %786 : vector<8x128xf32>
    %cst_183 = arith.constant -4.39150654E-6 : f32
    %795 = vector.broadcast %cst_183 : f32 to vector<8x128xf32>
    %796 = arith.addf %795, %794 : vector<8x128xf32>
    %797 = arith.mulf %796, %786 : vector<8x128xf32>
    %cst_184 = arith.constant 2.1858087E-4 : f32
    %798 = vector.broadcast %cst_184 : f32 to vector<8x128xf32>
    %799 = arith.addf %798, %797 : vector<8x128xf32>
    %800 = arith.mulf %799, %786 : vector<8x128xf32>
    %cst_185 = arith.constant -0.00125372503 : f32
    %801 = vector.broadcast %cst_185 : f32 to vector<8x128xf32>
    %802 = arith.addf %801, %800 : vector<8x128xf32>
    %803 = arith.mulf %802, %786 : vector<8x128xf32>
    %cst_186 = arith.constant -0.00417768164 : f32
    %804 = vector.broadcast %cst_186 : f32 to vector<8x128xf32>
    %805 = arith.addf %804, %803 : vector<8x128xf32>
    %806 = arith.mulf %805, %786 : vector<8x128xf32>
    %cst_187 = arith.constant 0.246640727 : f32
    %807 = vector.broadcast %cst_187 : f32 to vector<8x128xf32>
    %808 = arith.addf %807, %806 : vector<8x128xf32>
    %809 = arith.mulf %808, %786 : vector<8x128xf32>
    %cst_188 = arith.constant 1.50140941 : f32
    %810 = vector.broadcast %cst_188 : f32 to vector<8x128xf32>
    %811 = arith.addf %810, %809 : vector<8x128xf32>
    %cst_189 = arith.constant 5.000000e+00 : f32
    %812 = vector.broadcast %cst_189 : f32 to vector<8x128xf32>
    %813 = arith.maximumf %784, %812 : vector<8x128xf32>
    %814 = math.sqrt %813 : vector<8x128xf32>
    %cst_190 = arith.constant 3.000000e+00 : f32
    %815 = vector.broadcast %cst_190 : f32 to vector<8x128xf32>
    %816 = arith.subf %814, %815 : vector<8x128xf32>
    %cst_191 = arith.constant -2.00214257E-4 : f32
    %817 = vector.broadcast %cst_191 : f32 to vector<8x128xf32>
    %818 = arith.mulf %817, %816 : vector<8x128xf32>
    %cst_192 = arith.constant 1.00950558E-4 : f32
    %819 = vector.broadcast %cst_192 : f32 to vector<8x128xf32>
    %820 = arith.addf %819, %818 : vector<8x128xf32>
    %821 = arith.mulf %820, %816 : vector<8x128xf32>
    %cst_193 = arith.constant 0.00134934322 : f32
    %822 = vector.broadcast %cst_193 : f32 to vector<8x128xf32>
    %823 = arith.addf %822, %821 : vector<8x128xf32>
    %824 = arith.mulf %823, %816 : vector<8x128xf32>
    %cst_194 = arith.constant -0.00367342844 : f32
    %825 = vector.broadcast %cst_194 : f32 to vector<8x128xf32>
    %826 = arith.addf %825, %824 : vector<8x128xf32>
    %827 = arith.mulf %826, %816 : vector<8x128xf32>
    %cst_195 = arith.constant 0.00573950773 : f32
    %828 = vector.broadcast %cst_195 : f32 to vector<8x128xf32>
    %829 = arith.addf %828, %827 : vector<8x128xf32>
    %830 = arith.mulf %829, %816 : vector<8x128xf32>
    %cst_196 = arith.constant -0.0076224613 : f32
    %831 = vector.broadcast %cst_196 : f32 to vector<8x128xf32>
    %832 = arith.addf %831, %830 : vector<8x128xf32>
    %833 = arith.mulf %832, %816 : vector<8x128xf32>
    %cst_197 = arith.constant 0.00943887047 : f32
    %834 = vector.broadcast %cst_197 : f32 to vector<8x128xf32>
    %835 = arith.addf %834, %833 : vector<8x128xf32>
    %836 = arith.mulf %835, %816 : vector<8x128xf32>
    %cst_198 = arith.constant 1.00167406 : f32
    %837 = vector.broadcast %cst_198 : f32 to vector<8x128xf32>
    %838 = arith.addf %837, %836 : vector<8x128xf32>
    %839 = arith.mulf %838, %816 : vector<8x128xf32>
    %cst_199 = arith.constant 2.83297682 : f32
    %840 = vector.broadcast %cst_199 : f32 to vector<8x128xf32>
    %841 = arith.addf %840, %839 : vector<8x128xf32>
    %cst_200 = arith.constant 5.000000e+00 : f32
    %842 = vector.broadcast %cst_200 : f32 to vector<8x128xf32>
    %843 = arith.cmpf olt, %784, %842 : vector<8x128xf32>
    %844 = arith.select %843, %811, %841 : vector<8x128xi1>, vector<8x128xf32>
    %845 = arith.mulf %844, %776 : vector<8x128xf32>
    %cst_201 = arith.constant 1.41421354 : f32
    %846 = vector.broadcast %cst_201 : f32 to vector<8x128xf32>
    %847 = arith.mulf %846, %845 : vector<8x128xf32>
    %848 = arith.mulf %684, %766 : vector<8x128xf32>
    %849 = arith.mulf %618, %762 : vector<8x128xf32>
    %cst_202 = arith.constant -2.000000e+00 : f32
    %850 = vector.broadcast %cst_202 : f32 to vector<8x128xf32>
    %851 = arith.mulf %850, %848 : vector<8x128xf32>
    %852 = math.sqrt %851 : vector<8x128xf32>
    %853 = arith.addf %847, %852 : vector<8x128xf32>
    %cst_203 = arith.constant -2.000000e+00 : f32
    %854 = vector.broadcast %cst_203 : f32 to vector<8x128xf32>
    %855 = arith.mulf %854, %849 : vector<8x128xf32>
    %856 = math.sqrt %855 : vector<8x128xf32>
    %857 = arith.subf %853, %856 : vector<8x128xf32>
    %cst_204 = arith.constant -5.000000e-01 : f32
    %858 = vector.broadcast %cst_204 : f32 to vector<8x128xf32>
    %859 = arith.mulf %858, %857 : vector<8x128xf32>
    %860 = arith.mulf %859, %857 : vector<8x128xf32>
    %cst_205 = arith.constant 0.918938517 : f32
    %861 = vector.broadcast %cst_205 : f32 to vector<8x128xf32>
    %862 = arith.subf %860, %861 : vector<8x128xf32>
    %863 = arith.mulf %862, %758 : vector<8x128xf32>
    %cst_206 = arith.constant 1.000000e+00 : f32
    %864 = vector.broadcast %cst_206 : f32 to vector<8x128xf32>
    %865 = arith.subf %864, %762 : vector<8x128xf32>
    %866 = arith.subf %849, %865 : vector<8x128xf32>
    %cst_207 = arith.constant -2.000000e+00 : f32
    %867 = vector.broadcast %cst_207 : f32 to vector<8x128xf32>
    %868 = arith.mulf %867, %866 : vector<8x128xf32>
    %869 = math.sqrt %868 : vector<8x128xf32>
    %870 = math.log %869 : vector<8x128xf32>
    %871 = arith.subf %870, %618 : vector<8x128xf32>
    %872 = arith.mulf %871, %762 : vector<8x128xf32>
    %cst_208 = arith.constant 1.000000e+00 : f32
    %873 = vector.broadcast %cst_208 : f32 to vector<8x128xf32>
    %874 = arith.subf %873, %766 : vector<8x128xf32>
    %875 = arith.subf %848, %874 : vector<8x128xf32>
    %cst_209 = arith.constant -2.000000e+00 : f32
    %876 = vector.broadcast %cst_209 : f32 to vector<8x128xf32>
    %877 = arith.mulf %876, %875 : vector<8x128xf32>
    %878 = math.sqrt %877 : vector<8x128xf32>
    %879 = math.log %878 : vector<8x128xf32>
    %880 = arith.subf %879, %684 : vector<8x128xf32>
    %881 = arith.mulf %880, %766 : vector<8x128xf32>
    %882 = arith.addf %863, %872 : vector<8x128xf32>
    %883 = arith.addf %882, %881 : vector<8x128xf32>
    %c0_210 = arith.constant 0 : index
    %c0_211 = arith.constant 0 : index
    %c0_212 = arith.constant 0 : index
    %884 = vector.load %arg6[%c0_210, %c0_211, %c0_212] : memref<1x8x128xf32, #tpu.memory_space<vmem>>, vector<1x8x128xf32>
    %885 = vector.shape_cast %884 : vector<1x8x128xf32> to vector<8x128xf32>
    %886 = vector.shape_cast %104 : vector<8x128xf32> to vector<1x8x128xf32>
    tpu.vector_store %arg6[%c0_210, %c0_211, %c0_212], %886 {strides = array<i32>} : memref<1x8x128xf32, #tpu.memory_space<vmem>>, vector<1x8x128xf32>,
    %887 = arith.subf %750, %883 : vector<8x128xf32>
    %c0_213 = arith.constant 0 : index
    %c0_214 = arith.constant 0 : index
    %c0_215 = arith.constant 0 : index
    %888 = vector.load %arg7[%c0_213, %c0_214, %c0_215] : memref<1x8x128xf32, #tpu.memory_space<vmem>>, vector<1x8x128xf32>
    %889 = vector.shape_cast %888 : vector<1x8x128xf32> to vector<8x128xf32>
    %890 = vector.shape_cast %887 : vector<8x128xf32> to vector<1x8x128xf32>
    tpu.vector_store %arg7[%c0_213, %c0_214, %c0_215], %890 {strides = array<i32>} : memref<1x8x128xf32, #tpu.memory_space<vmem>>, vector<1x8x128xf32>,
    return
  }
  func.func @transform_0(%arg0: i32, %arg1: i32) -> (i32, i32) {
    %c0_i32 = arith.constant 0 : i32
    %c0_i32_0 = arith.constant 0 : i32
    %c0_i32_1 = arith.constant 0 : i32
    return %c0_i32, %c0_i32_0 : i32, i32
  }
  func.func @transform_1(%arg0: i32, %arg1: i32) -> (i32, i32) {
    %c0_i32 = arith.constant 0 : i32
    %c0_i32_0 = arith.constant 0 : i32
    %c0_i32_1 = arith.constant 0 : i32
    return %c0_i32, %c0_i32_0 : i32, i32
  }
  func.func @transform_2(%arg0: i32, %arg1: i32) -> (i32, i32) {
    %c0_i32 = arith.constant 0 : i32
    %c0_i32_0 = arith.constant 0 : i32
    %c0_i32_1 = arith.constant 0 : i32
    return %c0_i32, %c0_i32_0 : i32, i32
  }
  func.func @transform_3(%arg0: i32, %arg1: i32) -> (i32, i32, i32) {
    %c0_i32 = arith.constant 0 : i32
    %c0_i32_0 = arith.constant 0 : i32
    return %arg0, %arg1, %c0_i32 : i32, i32, i32
  }
  func.func @transform_4(%arg0: i32, %arg1: i32) -> (i32, i32, i32) {
    %c0_i32 = arith.constant 0 : i32
    %c0_i32_0 = arith.constant 0 : i32
    return %arg0, %arg1, %c0_i32 : i32, i32, i32
  }
  func.func @transform_5(%arg0: i32, %arg1: i32) -> (i32, i32, i32) {
    %c0_i32 = arith.constant 0 : i32
    %c0_i32_0 = arith.constant 0 : i32
    return %arg0, %arg1, %c0_i32 : i32, i32, i32
  }
}

</mosaic_0001>

<llo_original>
// kernel: tpu_custom_call.1
$region0: #{tpu_custom_call.1}
  #allocation0 [shape = 'u32[]', space=smem, size = 0x4, offset = 0x4, fixed_abs, tag = 'smem constant byte address 0x4 - core index']
  #allocation1 [shape = 'u32[72,128]{1,0:T(1,128)}', space=vmem, size = 0x9000, scoped, tag = 'internal scratch']
  %s0 = inlined_call_operand.vmem [shape: f32[16,4], index: 0, kind: input, shape index: {}]
  %s1 = inlined_call_operand.vmem [shape: f32[16,4], index: 1, kind: input, shape index: {}]
  %s2 = inlined_call_operand.vmem [shape: f32[16,4], index: 2, kind: input, shape index: {}]
  %s3 = inlined_call_operand.vmem [shape: f32[4,8,128], index: 3, kind: input, shape index: {}]
  %s4 = inlined_call_operand.hbm [shape: f32[4,8,128], index: 4, kind: output, shape index: {0}]
  %s5 = inlined_call_operand.hbm [shape: f32[4,8,128], index: 5, kind: output, shape index: {1}]
  %6 = xla_tuple %s4, %s5
  %s7 = sld [smem:[#allocation0]]
  $region76: #{tpu_custom_call.1} parent=0
    _
  %s9 = ssub.s32 1, %s7
  %s10 = scalar_select 0, %s9, %s7
  $region1: #{tpu_custom_call.1} parent=0
    #allocation2 [shape = 'u8[8192]{0}', space=smem, size = 0x2000, scoped, tag = 'input window, operand 0, single buffered']
    #allocation3 [shape = 's32[2]{0}', space=sflag, size = 0x8, scoped, tag = 'scoped memory for tpu_custom_call.1']
    #allocation4 [shape = 's32[2]{0}', space=sflag, size = 0x8, scoped, tag = 'scoped memory for tpu_custom_call.1']
    #allocation5 [shape = 'u8[8192]{0}', space=smem, size = 0x2000, scoped, tag = 'input window, operand 1, single buffered']
    #allocation6 [shape = 's32[1]{0}', space=sflag, size = 0x4, scoped, tag = 'scoped memory for tpu_custom_call.1']
    #allocation7 [shape = 'u8[8192]{0}', space=smem, size = 0x2000, scoped, tag = 'input window, operand 2, single buffered']
    #allocation8 [shape = 'u8[8192]{0}', space=vmem, size = 0x2000, scoped, tag = 'output window, operand 0']
    #allocation9 [shape = 'u8[8192]{0}', space=vmem, size = 0x2000, scoped, tag = 'output window, operand 1']
    #allocation10 [shape = 's32[2]{0}', space=sflag, size = 0x8, scoped, tag = 'scoped memory for tpu_custom_call.1']
    %11 = vsyncpa [#allocation4], 0
    %12 = vsyncpa [#allocation6], 0
    %13 = vsyncpa [#allocation3], 0
    %s14 = scalar_lea.sflag [#allocation3], 1
    %15 = vsyncpa %s14, 0
    %16 = vsyncpa [#allocation10], 0
    %s17 = scalar_lea.sflag [#allocation10], 1
    %18 = vsyncpa %s17, 0
    loop: start=0, step=1, limit=6
    $region2: #{tpu_custom_call.1} parent=1 // loop_pre_header
      _
    $region3: #{tpu_custom_call.1} parent=1 // loop_header
      %s20 = sphi 0, %s24
      %p21 = scmp.ge.s32.totalorder %s20, 6
      %s27 = sphi 0, %s39
      %s28 = sphi 0, %s35
      %s29 = sphi 0, %s27
      %s30 = sphi 0, %s28
      %s31 = sphi 0, %s29
      %s32 = sphi 0, %s30
      %s40 = sphi 0, %s40
      %s42 = sphi 0, %s40
      %s43 = sphi 0, %s42
      %s57 = sphi 0, %s43
      %s61 = sphi 0, %s61
      %s63 = sphi 0, %s61
      %s64 = sphi 0, %s63
      %s78 = sphi 0, %s64
      %s82 = sphi 0, %s82
      %s84 = sphi 0, %s82
      %s85 = sphi 0, %s84
      %s99 = sphi 0, %s85
      %s107 = sphi 0, %s109
      %s110 = sphi 0, %s107
      %s111 = sphi 0, %s110
      %s127 = sphi 0, %s111
      %s135 = sphi 0, %s137
      %s138 = sphi 0, %s135
      %s139 = sphi 0, %s138
      %s155 = sphi 0, %s139
      %s163 = sphi 0, %s165
      %s166 = sphi 0, %s163
      %s167 = sphi 0, %s166
      %s183 = sphi 0, %s167
    $region4: #{tpu_custom_call.1} parent=1 // loop_header_branch
      %23 = sbr.rel (%p21) target = $region8
    $region5: #{tpu_custom_call.1} parent=1 // loop_body
      %s25 = ssub.s32 %s20, 1
      %s26 = ssub.s32 %s20, 2
      %s33 = sadd.s32 1, %s28
      %p34 = scmp.ge.s32.totalorder %s33, 1
      %s35 = scalar_select %p34, 0, %s33
      %s36 = sadd.s32 1, %s27
      %s37 = scalar_select %p34, %s36, %s27
      %p38 = scmp.ge.s32.totalorder %s37, 4
      %s39 = scalar_select %p38, 0, %s37
      %s41 = sadd.s32 %s40, 1
      %p44 = scmp.eq.s32.totalorder %s20, 3
      %p45 = scmp.ne.s32.totalorder %s40, %s42
      %p46 = scmp.eq.s32.totalorder %s20, 0
      %p47 = por %p45, %p46
      %p48 = scmp.ne.s32.totalorder %s40, %s42
      %p49 = scmp.eq.s32.totalorder %s25, 3
      %p50 = por %p48, %p49
      %p51 = scmp.ne.s32.totalorder %s42, %s43
      %p52 = scmp.eq.s32.totalorder %s25, 0
      %p53 = por %p51, %p52
      %p54 = scmp.ne.s32.totalorder %s42, %s43
      %p55 = scmp.eq.s32.totalorder %s26, 3
      %p56 = por %p54, %p55
      %p58 = scmp.ne.s32.totalorder %s43, %s57
      %p59 = scmp.eq.s32.totalorder %s26, 0
      %p60 = por %p58, %p59
      %s62 = sadd.s32 %s61, 1
      %p65 = scmp.eq.s32.totalorder %s20, 3
      %p66 = scmp.ne.s32.totalorder %s61, %s63
      %p67 = scmp.eq.s32.totalorder %s20, 0
      %p68 = por %p66, %p67
      %p69 = scmp.ne.s32.totalorder %s61, %s63
      %p70 = scmp.eq.s32.totalorder %s25, 3
      %p71 = por %p69, %p70
      %p72 = scmp.ne.s32.totalorder %s63, %s64
      %p73 = scmp.eq.s32.totalorder %s25, 0
      %p74 = por %p72, %p73
      %p75 = scmp.ne.s32.totalorder %s63, %s64
      %p76 = scmp.eq.s32.totalorder %s26, 3
      %p77 = por %p75, %p76
      %p79 = scmp.ne.s32.totalorder %s64, %s78
      %p80 = scmp.eq.s32.totalorder %s26, 0
      %p81 = por %p79, %p80
      %s83 = sadd.s32 %s82, 1
      %p86 = scmp.eq.s32.totalorder %s20, 3
      %p87 = scmp.ne.s32.totalorder %s82, %s84
      %p88 = scmp.eq.s32.totalorder %s20, 0
      %p89 = por %p87, %p88
      %p90 = scmp.ne.s32.totalorder %s82, %s84
      %p91 = scmp.eq.s32.totalorder %s25, 3
      %p92 = por %p90, %p91
      %p93 = scmp.ne.s32.totalorder %s84, %s85
      %p94 = scmp.eq.s32.totalorder %s25, 0
      %p95 = por %p93, %p94
      %p96 = scmp.ne.s32.totalorder %s84, %s85
      %p97 = scmp.eq.s32.totalorder %s26, 3
      %p98 = por %p96, %p97
      %p100 = scmp.ne.s32.totalorder %s85, %s99
      %p101 = scmp.eq.s32.totalorder %s26, 0
      %p102 = por %p100, %p101
      %s103 = ssub.s32 %s27, %s39
      %s104 = ssub.s32 %s28, %s35
      %s105 = sor.u32 %s103, %s104
      %p106 = scmp.eq.s32.totalorder %s105, 0
      %s108 = sadd.s32 %s107, 1
      %s109 = scalar_select %p106, %s107, %s108
      %p112 = pneg %p106
      %p113 = scmp.eq.s32.totalorder %s20, 3
      %p114 = por %p112, %p113
      %p115 = scmp.ne.s32.totalorder %s107, %s110
      %p116 = scmp.eq.s32.totalorder %s20, 0
      %p117 = por %p115, %p116
      %p118 = scmp.ne.s32.totalorder %s107, %s110
      %p119 = scmp.eq.s32.totalorder %s25, 3
      %p120 = por %p118, %p119
      %p121 = scmp.ne.s32.totalorder %s110, %s111
      %p122 = scmp.eq.s32.totalorder %s25, 0
      %p123 = por %p121, %p122
      %p124 = scmp.ne.s32.totalorder %s110, %s111
      %p125 = scmp.eq.s32.totalorder %s26, 3
      %p126 = por %p124, %p125
      %p128 = scmp.ne.s32.totalorder %s111, %s127
      %p129 = scmp.eq.s32.totalorder %s26, 0
      %p130 = por %p128, %p129
      %s131 = ssub.s32 %s27, %s39
      %s132 = ssub.s32 %s28, %s35
      %s133 = sor.u32 %s131, %s132
      %p134 = scmp.eq.s32.totalorder %s133, 0
      %s136 = sadd.s32 %s135, 1
      %s137 = scalar_select %p134, %s135, %s136
      %p140 = pneg %p134
      %p141 = scmp.eq.s32.totalorder %s20, 3
      %p142 = por %p140, %p141
      %p143 = scmp.ne.s32.totalorder %s135, %s138
      %p144 = scmp.eq.s32.totalorder %s20, 0
      %p145 = por %p143, %p144
      %p146 = scmp.ne.s32.totalorder %s135, %s138
      %p147 = scmp.eq.s32.totalorder %s25, 3
      %p148 = por %p146, %p147
      %p149 = scmp.ne.s32.totalorder %s138, %s139
      %p150 = scmp.eq.s32.totalorder %s25, 0
      %p151 = por %p149, %p150
      %p152 = scmp.ne.s32.totalorder %s138, %s139
      %p153 = scmp.eq.s32.totalorder %s26, 3
      %p154 = por %p152, %p153
      %p156 = scmp.ne.s32.totalorder %s139, %s155
      %p157 = scmp.eq.s32.totalorder %s26, 0
      %p158 = por %p156, %p157
      %s159 = ssub.s32 %s27, %s39
      %s160 = ssub.s32 %s28, %s35
      %s161 = sor.u32 %s159, %s160
      %p162 = scmp.eq.s32.totalorder %s161, 0
      %s164 = sadd.s32 %s163, 1
      %s165 = scalar_select %p162, %s163, %s164
      %p168 = pneg %p162
      %p169 = scmp.eq.s32.totalorder %s20, 3
      %p170 = por %p168, %p169
      %p171 = scmp.ne.s32.totalorder %s163, %s166
      %p172 = scmp.eq.s32.totalorder %s20, 0
      %p173 = por %p171, %p172
      %p174 = scmp.ne.s32.totalorder %s163, %s166
      %p175 = scmp.eq.s32.totalorder %s25, 3
      %p176 = por %p174, %p175
      %p177 = scmp.ne.s32.totalorder %s166, %s167
      %p178 = scmp.eq.s32.totalorder %s25, 0
      %p179 = por %p177, %p178
      %p180 = scmp.ne.s32.totalorder %s166, %s167
      %p181 = scmp.eq.s32.totalorder %s26, 3
      %p182 = por %p180, %p181
      %p184 = scmp.ne.s32.totalorder %s167, %s183
      %p185 = scmp.eq.s32.totalorder %s26, 0
      %p186 = por %p184, %p185
      %p187 = scmp.le.s32.totalorder 1, %s20
      %p188 = scmp.lt.s32.totalorder %s20, 5
      %p189 = pnand %p187, %p188
      %p190 = pneg %p189
      // Predicated region
      $region9: #{tpu_custom_call.1} parent=5 // pred_check
        _
      $region10: #{tpu_custom_call.1} parent=5 // pred_check_branch
        %192 = sbr.rel (%p189) target = $region12
      $region11: #{tpu_custom_call.1} parent=5 // pred_region
        %s193 = ssub.s32 %s20, 1
        // Predicated region
        $region13: #{tpu_custom_call.1} parent=11 // pred_check
          %p194 = pneg %p53
        $region14: #{tpu_custom_call.1} parent=11 // pred_check_branch
          %196 = sbr.rel (%p194) target = $region16
        $region15: #{tpu_custom_call.1} parent=11 // pred_region
          %198 = vsyncadd [#allocation4], 0
          %s199 = sshll.u32 %s0, 4
          %s200 = int_to_ptr.vmem [resolvable:$true] %s199
          %205 = dma.vmem_to_smem %s200, 256, [#allocation2], [#allocation4], 128, 128, 8
        $region16: #{tpu_custom_call.1} parent=11 // pred_fallthru
          _
        // Predicated region
        $region17: #{tpu_custom_call.1} parent=11 // pred_check
          %p206 = pneg %p74
        $region18: #{tpu_custom_call.1} parent=11 // pred_check_branch
          %208 = sbr.rel (%p206) target = $region20
        $region19: #{tpu_custom_call.1} parent=11 // pred_region
          %210 = vsyncadd [#allocation6], 0
          %s211 = sshll.u32 %s1, 4
          %s212 = int_to_ptr.vmem [resolvable:$true] %s211
          %217 = dma.vmem_to_smem %s212, 256, [#allocation5], [#allocation6], 128, 128, 8
        $region20: #{tpu_custom_call.1} parent=11 // pred_fallthru
          _
        // Predicated region
        $region21: #{tpu_custom_call.1} parent=11 // pred_check
          %p218 = pneg %p95
        $region22: #{tpu_custom_call.1} parent=11 // pred_check_branch
          %220 = sbr.rel (%p218) target = $region24
        $region23: #{tpu_custom_call.1} parent=11 // pred_region
          %222 = vsyncadd [#allocation6], 0
          %s223 = sshll.u32 %s2, 4
          %s224 = int_to_ptr.vmem [resolvable:$true] %s223
          %229 = dma.vmem_to_smem %s224, 256, [#allocation7], [#allocation6], 128, 128, 8
        $region24: #{tpu_custom_call.1} parent=11 // pred_fallthru
          _
      $region12: #{tpu_custom_call.1} parent=5 // pred_fallthru
        _
      %p230 = scmp.lt.s32.totalorder %s20, 4
      // Predicated region
      $region25: #{tpu_custom_call.1} parent=5 // pred_check
        %p231 = pneg %p230
      $region26: #{tpu_custom_call.1} parent=5 // pred_check_branch
        %233 = sbr.rel (%p231) target = $region28
      $region27: #{tpu_custom_call.1} parent=5 // pred_region
        // Predicated region
        $region29: #{tpu_custom_call.1} parent=27 // pred_check
          %p234 = pneg %p117
        $region30: #{tpu_custom_call.1} parent=27 // pred_check_branch
          %236 = sbr.rel (%p234) target = $region32
        $region31: #{tpu_custom_call.1} parent=27 // pred_region
          %p237 = scmp.lt.s32.totalorder %s27, 3
          %s238 = scalar_select %p237, %s27, 3
          %p239 = scmp.lt.s32.totalorder %s28, 0
          %s240 = scalar_select %p239, %s28, 0
          %s241 = sadd.s32 %s240, %s238
          %s242 = smul.addr %s241, 8
          %s243 = scalar_lea.vmem %s3, %s242
        $region32: #{tpu_custom_call.1} parent=27 // pred_fallthru
          _
      $region28: #{tpu_custom_call.1} parent=5 // pred_fallthru
        _
      %p244 = scmp.le.s32.totalorder 1, %s20
      %p245 = scmp.lt.s32.totalorder %s20, 5
      %p246 = pnand %p244, %p245
      %p247 = pneg %p246
      // Predicated region
      $region33: #{tpu_custom_call.1} parent=5 // pred_check
        _
      $region34: #{tpu_custom_call.1} parent=5 // pred_check_branch
        %249 = sbr.rel (%p246) target = $region36
      $region35: #{tpu_custom_call.1} parent=5 // pred_region
        %s250 = ssub.s32 %s20, 1
        // Predicated region
        $region37: #{tpu_custom_call.1} parent=35 // pred_check
          %p251 = pneg %p53
        $region38: #{tpu_custom_call.1} parent=35 // pred_check_branch
          %253 = sbr.rel (%p251) target = $region40
        $region39: #{tpu_custom_call.1} parent=35 // pred_region
          %255 = dma.done [#allocation4], 256
        $region40: #{tpu_custom_call.1} parent=35 // pred_fallthru
          _
        // Predicated region
        $region41: #{tpu_custom_call.1} parent=35 // pred_check
          %p256 = pneg %p74
        $region42: #{tpu_custom_call.1} parent=35 // pred_check_branch
          %258 = sbr.rel (%p256) target = $region44
        $region43: #{tpu_custom_call.1} parent=35 // pred_region
          %260 = dma.done [#allocation6], 256
        $region44: #{tpu_custom_call.1} parent=35 // pred_fallthru
          _
        // Predicated region
        $region45: #{tpu_custom_call.1} parent=35 // pred_check
          %p261 = pneg %p95
        $region46: #{tpu_custom_call.1} parent=35 // pred_check_branch
          %263 = sbr.rel (%p261) target = $region48
        $region47: #{tpu_custom_call.1} parent=35 // pred_region
          %265 = dma.done [#allocation6], 256
        $region48: #{tpu_custom_call.1} parent=35 // pred_fallthru
          _
        %266 = sfence
        %p267 = pneg %p53
        %p268 = pneg %p50
        %p269 = pneg %p74
        %p270 = pneg %p71
        %p271 = pneg %p95
        %p272 = pneg %p92
        %p273 = scmp.lt.s32.totalorder %s29, 3
        %s274 = scalar_select %p273, %s29, 3
        %p275 = scmp.lt.s32.totalorder %s30, 0
        %s276 = scalar_select %p275, %s30, 0
        %s277 = sadd.s32 %s276, %s274
        %s278 = smul.addr %s277, 8
        %s279 = scalar_lea.vmem %s3, %s278
        %p280 = pneg %p123
        %p281 = pneg %p120
        %p282 = pneg %p151
        %p283 = pneg %p148
        %s284 = sand.u32 %s138, 1
        %s285 = scalar_lea.sflag [#allocation3], %s284
        %s286 = sand.u32 %s138, 1
        %s287 = smul.addr %s286, 8
        %s288 = scalar_lea.vmem [#allocation8], %s287
        %p289 = pneg %p179
        %p290 = pneg %p176
        %s291 = sand.u32 %s166, 1
        %s292 = scalar_lea.sflag [#allocation10], %s291
        %s293 = sand.u32 %s166, 1
        %s294 = smul.addr %s293, 8
        %s295 = scalar_lea.vmem [#allocation9], %s294
        %p296 = scmp.lt.s32.totalorder %s29, 3
        %s297 = scalar_select %p296, %s29, 3
        %p298 = scmp.lt.s32.totalorder %s30, 0
        %s299 = scalar_select %p298, %s30, 0
        %s300 = sadd.s32 %s299, %s297
        %s301 = smul.addr %s300, 8
        %s302 = scalar_lea.vmem %s3, %s301
        %v303 = vld [vmem:[%s302] sm:$0xff]
        %s304 = sld [smem:[#allocation2 + %s29]]
        %s305 = sshra.s32 %s29, 7
        %s306 = sand.u32 %s29, 127
        %s307 = sadd.s32 %s305, 1
        %s308 = smul.u32 %s307, 128
        %s309 = sshra.s32 %s29, 7
        %s310 = sand.u32 %s29, 127
        %s311 = sadd.s32 %s308, %s310
        %s312 = sld [smem:[#allocation2 + %s311]]
        %s313 = sadd.s32 %s305, 2
        %s314 = smul.u32 %s313, 128
        %s315 = sadd.s32 %s314, %s310
        %s316 = sld [smem:[#allocation2 + %s315]]
        %s317 = sadd.s32 %s305, 3
        %s318 = smul.u32 %s317, 128
        %s319 = sadd.s32 %s318, %s310
        %s320 = sld [smem:[#allocation2 + %s319]]
        %s321 = sadd.s32 %s305, 4
        %s322 = smul.u32 %s321, 128
        %s323 = sadd.s32 %s322, %s310
        %s324 = sld [smem:[#allocation2 + %s323]]
        %s325 = sadd.s32 %s305, 5
        %s326 = smul.u32 %s325, 128
        %s327 = sadd.s32 %s326, %s310
        %s328 = sld [smem:[#allocation2 + %s327]]
        %s329 = sadd.s32 %s305, 6
        %s330 = smul.u32 %s329, 128
        %s331 = sadd.s32 %s330, %s310
        %s332 = sld [smem:[#allocation2 + %s331]]
        %s333 = sadd.s32 %s305, 7
        %s334 = smul.u32 %s333, 128
        %s335 = sadd.s32 %s334, %s310
        %s336 = sld [smem:[#allocation2 + %s335]]
        %s337 = sadd.s32 %s305, 8
        %s338 = smul.u32 %s337, 128
        %s339 = sadd.s32 %s338, %s310
        %s340 = sld [smem:[#allocation2 + %s339]]
        %s341 = sadd.s32 %s305, 9
        %s342 = smul.u32 %s341, 128
        %s343 = sadd.s32 %s342, %s310
        %s344 = sld [smem:[#allocation2 + %s343]]
        %s345 = sadd.s32 %s305, 10
        %s346 = smul.u32 %s345, 128
        %s347 = sadd.s32 %s346, %s310
        %s348 = sld [smem:[#allocation2 + %s347]]
        %s349 = sadd.s32 %s305, 11
        %s350 = smul.u32 %s349, 128
        %s351 = sadd.s32 %s350, %s310
        %s352 = sld [smem:[#allocation2 + %s351]]
        %s353 = sadd.s32 %s305, 12
        %s354 = smul.u32 %s353, 128
        %s355 = sadd.s32 %s354, %s310
        %s356 = sld [smem:[#allocation2 + %s355]]
        %s357 = sadd.s32 %s305, 13
        %s358 = smul.u32 %s357, 128
        %s359 = sadd.s32 %s358, %s310
        %s360 = sld [smem:[#allocation2 + %s359]]
        %s361 = sadd.s32 %s305, 14
        %s362 = smul.u32 %s361, 128
        %s363 = sadd.s32 %s362, %s310
        %s364 = sld [smem:[#allocation2 + %s363]]
        %s365 = sadd.s32 %s305, 15
        %s366 = smul.u32 %s365, 128
        %s367 = sadd.s32 %s366, %s310
        %s368 = sld [smem:[#allocation2 + %s367]]
        %s369 = sld [smem:[#allocation5 + %s29]]
        %s370 = sld [smem:[#allocation5 + %s311]]
        %s371 = sld [smem:[#allocation5 + %s315]]
        %s372 = sld [smem:[#allocation5 + %s319]]
        %s373 = sld [smem:[#allocation5 + %s323]]
        %s374 = sld [smem:[#allocation5 + %s327]]
        %s375 = sld [smem:[#allocation5 + %s331]]
        %s376 = sld [smem:[#allocation5 + %s335]]
        %s377 = sld [smem:[#allocation5 + %s339]]
        %s378 = sld [smem:[#allocation5 + %s343]]
        %s379 = sld [smem:[#allocation5 + %s347]]
        %s380 = sld [smem:[#allocation5 + %s351]]
        %s381 = sld [smem:[#allocation5 + %s355]]
        %s382 = sld [smem:[#allocation5 + %s359]]
        %s383 = sld [smem:[#allocation5 + %s363]]
        %s384 = sld [smem:[#allocation5 + %s367]]
        %s385 = sld [smem:[#allocation7 + %s29]]
        %s386 = sld [smem:[#allocation7 + %s311]]
        %s387 = sld [smem:[#allocation7 + %s315]]
        %s388 = sld [smem:[#allocation7 + %s319]]
        %s389 = sld [smem:[#allocation7 + %s323]]
        %s390 = sld [smem:[#allocation7 + %s327]]
        %s391 = sld [smem:[#allocation7 + %s331]]
        %s392 = sld [smem:[#allocation7 + %s335]]
        %s393 = sld [smem:[#allocation7 + %s339]]
        %s394 = sld [smem:[#allocation7 + %s343]]
        %s395 = sld [smem:[#allocation7 + %s347]]
        %s396 = sld [smem:[#allocation7 + %s351]]
        %s397 = sld [smem:[#allocation7 + %s355]]
        %s398 = sld [smem:[#allocation7 + %s359]]
        %s399 = sld [smem:[#allocation7 + %s363]]
        %s400 = sld [smem:[#allocation7 + %s367]]
        loop: start=0, step=1, limit=35
        $region49: #{tpu_custom_call.1} parent=35 // loop_pre_header
          _
        $region50: #{tpu_custom_call.1} parent=35 // loop_header
          %s402 = sphi 0, %s406
          %p403 = scmp.ge.s32.totalorder %s402, 35
          %v407 = vphi -10000.0, %v994
          %v408 = vphi 10000.0, %v996
        $region51: #{tpu_custom_call.1} parent=35 // loop_header_branch
          %405 = sbr.rel (%p403) target = $region55
        $region52: #{tpu_custom_call.1} parent=35 // loop_body
          %v409 = vadd.f32 %v407, %v408
          %v410 = vmul.f32 %v409, 0.5
          %v411 = vstv %s304
          %v412 = vsub.f32 %v410, %v411
          %v413 = vstv %s369
          %v414 = vmul.f32 %v412, %v413
          %v415 = vand.u32 2147483647, %v414
          %v416 = vsub.f32 0.0, %v415
          %v417 = vmul.f32 %v416, 1.442695
          %v418 = vpow.pop %v417
          %v419 = vadd.f32 %v418, 1.0
          %v420 = vrcp.pop %v419
          %v421 = vmul.f32 %v419, %v420
          %v422 = vsub.f32 1.0, %v421
          %v423 = vmul.f32 %v420, %v422
          %v424 = vadd.f32 %v420, %v423
          %vm425 = vweird.f32 %v419
          %vm426 = vweird.f32 %v420
          %vm427 = vmor %vm425, %vm426
          %v428 = vsel %vm427, %v420, %v424
          %v429 = vand.u32 2147483647, %v419
          %vm430 = vcmp.eq.f32.partialorder %v429, 8.507059e+37
          %v431 = vand.u32 %v419, 2147483648
          %v432 = vor.u32 1.1754944e-38, %v431
          %v433 = vsel %vm430, %v432, %v428
          %v434 = vmul.f32 1.0, %v433
          %v435 = vmul.f32 %v418, %v434
          %vm436 = vcmp.ge.f32.partialorder %v414, 0.0
          %v437 = vsel %vm436, %v434, %v435
          %v438 = vadd.f32 %v437, 0.0
          %v439 = vsel %vm436, %v435, %v434
          %v440 = vadd.f32 %v439, 0.0
          %v441 = vstv %s312
          %v442 = vsub.f32 %v410, %v441
          %v443 = vstv %s370
          %v444 = vmul.f32 %v442, %v443
          %v445 = vand.u32 2147483647, %v444
          %v446 = vsub.f32 0.0, %v445
          %v447 = vmul.f32 %v446, 1.442695
          %v448 = vpow.pop %v447
          %v449 = vadd.f32 %v448, 1.0
          %v450 = vrcp.pop %v449
          %v451 = vmul.f32 %v449, %v450
          %v452 = vsub.f32 1.0, %v451
          %v453 = vmul.f32 %v450, %v452
          %v454 = vadd.f32 %v450, %v453
          %vm455 = vweird.f32 %v449
          %vm456 = vweird.f32 %v450
          %vm457 = vmor %vm455, %vm456
          %v458 = vsel %vm457, %v450, %v454
          %v459 = vand.u32 2147483647, %v449
          %vm460 = vcmp.eq.f32.partialorder %v459, 8.507059e+37
          %v461 = vand.u32 %v449, 2147483648
          %v462 = vor.u32 1.1754944e-38, %v461
          %v463 = vsel %vm460, %v462, %v458
          %v464 = vmul.f32 1.0, %v463
          %v465 = vmul.f32 %v448, %v464
          %vm466 = vcmp.ge.f32.partialorder %v444, 0.0
          %v467 = vsel %vm466, %v464, %v465
          %v468 = vadd.f32 %v438, %v467
          %v469 = vsel %vm466, %v465, %v464
          %v470 = vadd.f32 %v440, %v469
          %v471 = vstv %s316
          %v472 = vsub.f32 %v410, %v471
          %v473 = vstv %s371
          %v474 = vmul.f32 %v472, %v473
          %v475 = vand.u32 2147483647, %v474
          %v476 = vsub.f32 0.0, %v475
          %v477 = vmul.f32 %v476, 1.442695
          %v478 = vpow.pop %v477
          %v479 = vadd.f32 %v478, 1.0
          %v480 = vrcp.pop %v479
          %v481 = vmul.f32 %v479, %v480
          %v482 = vsub.f32 1.0, %v481
          %v483 = vmul.f32 %v480, %v482
          %v484 = vadd.f32 %v480, %v483
          %vm485 = vweird.f32 %v479
          %vm486 = vweird.f32 %v480
          %vm487 = vmor %vm485, %vm486
          %v488 = vsel %vm487, %v480, %v484
          %v489 = vand.u32 2147483647, %v479
          %vm490 = vcmp.eq.f32.partialorder %v489, 8.507059e+37
          %v491 = vand.u32 %v479, 2147483648
          %v492 = vor.u32 1.1754944e-38, %v491
          %v493 = vsel %vm490, %v492, %v488
          %v494 = vmul.f32 1.0, %v493
          %v495 = vmul.f32 %v478, %v494
          %vm496 = vcmp.ge.f32.partialorder %v474, 0.0
          %v497 = vsel %vm496, %v494, %v495
          %v498 = vadd.f32 %v468, %v497
          %v499 = vsel %vm496, %v495, %v494
          %v500 = vadd.f32 %v470, %v499
          %v501 = vstv %s320
          %v502 = vsub.f32 %v410, %v501
          %v503 = vstv %s372
          %v504 = vmul.f32 %v502, %v503
          %v505 = vand.u32 2147483647, %v504
          %v506 = vsub.f32 0.0, %v505
          %v507 = vmul.f32 %v506, 1.442695
          %v508 = vpow.pop %v507
          %v509 = vadd.f32 %v508, 1.0
          %v510 = vrcp.pop %v509
          %v511 = vmul.f32 %v509, %v510
          %v512 = vsub.f32 1.0, %v511
          %v513 = vmul.f32 %v510, %v512
          %v514 = vadd.f32 %v510, %v513
          %vm515 = vweird.f32 %v509
          %vm516 = vweird.f32 %v510
          %vm517 = vmor %vm515, %vm516
          %v518 = vsel %vm517, %v510, %v514
          %v519 = vand.u32 2147483647, %v509
          %vm520 = vcmp.eq.f32.partialorder %v519, 8.507059e+37
          %v521 = vand.u32 %v509, 2147483648
          %v522 = vor.u32 1.1754944e-38, %v521
          %v523 = vsel %vm520, %v522, %v518
          %v524 = vmul.f32 1.0, %v523
          %v525 = vmul.f32 %v508, %v524
          %vm526 = vcmp.ge.f32.partialorder %v504, 0.0
          %v527 = vsel %vm526, %v524, %v525
          %v528 = vadd.f32 %v498, %v527
          %v529 = vsel %vm526, %v525, %v524
          %v530 = vadd.f32 %v500, %v529
          %v531 = vstv %s324
          %v532 = vsub.f32 %v410, %v531
          %v533 = vstv %s373
          %v534 = vmul.f32 %v532, %v533
          %v535 = vand.u32 2147483647, %v534
          %v536 = vsub.f32 0.0, %v535
          %v537 = vmul.f32 %v536, 1.442695
          %v538 = vpow.pop %v537
          %v539 = vadd.f32 %v538, 1.0
          %v540 = vrcp.pop %v539
          %v541 = vmul.f32 %v539, %v540
          %v542 = vsub.f32 1.0, %v541
          %v543 = vmul.f32 %v540, %v542
          %v544 = vadd.f32 %v540, %v543
          %vm545 = vweird.f32 %v539
          %vm546 = vweird.f32 %v540
          %vm547 = vmor %vm545, %vm546
          %v548 = vsel %vm547, %v540, %v544
          %v549 = vand.u32 2147483647, %v539
          %vm550 = vcmp.eq.f32.partialorder %v549, 8.507059e+37
          %v551 = vand.u32 %v539, 2147483648
          %v552 = vor.u32 1.1754944e-38, %v551
          %v553 = vsel %vm550, %v552, %v548
          %v554 = vmul.f32 1.0, %v553
          %v555 = vmul.f32 %v538, %v554
          %vm556 = vcmp.ge.f32.partialorder %v534, 0.0
          %v557 = vsel %vm556, %v554, %v555
          %v558 = vadd.f32 %v528, %v557
          %v559 = vsel %vm556, %v555, %v554
          %v560 = vadd.f32 %v530, %v559
          %v561 = vstv %s328
          %v562 = vsub.f32 %v410, %v561
          %v563 = vstv %s374
          %v564 = vmul.f32 %v562, %v563
          %v565 = vand.u32 2147483647, %v564
          %v566 = vsub.f32 0.0, %v565
          %v567 = vmul.f32 %v566, 1.442695
          %v568 = vpow.pop %v567
          %v569 = vadd.f32 %v568, 1.0
          %v570 = vrcp.pop %v569
          %v571 = vmul.f32 %v569, %v570
          %v572 = vsub.f32 1.0, %v571
          %v573 = vmul.f32 %v570, %v572
          %v574 = vadd.f32 %v570, %v573
          %vm575 = vweird.f32 %v569
          %vm576 = vweird.f32 %v570
          %vm577 = vmor %vm575, %vm576
          %v578 = vsel %vm577, %v570, %v574
          %v579 = vand.u32 2147483647, %v569
          %vm580 = vcmp.eq.f32.partialorder %v579, 8.507059e+37
          %v581 = vand.u32 %v569, 2147483648
          %v582 = vor.u32 1.1754944e-38, %v581
          %v583 = vsel %vm580, %v582, %v578
          %v584 = vmul.f32 1.0, %v583
          %v585 = vmul.f32 %v568, %v584
          %vm586 = vcmp.ge.f32.partialorder %v564, 0.0
          %v587 = vsel %vm586, %v584, %v585
          %v588 = vadd.f32 %v558, %v587
          %v589 = vsel %vm586, %v585, %v584
          %v590 = vadd.f32 %v560, %v589
          %v591 = vstv %s332
          %v592 = vsub.f32 %v410, %v591
          %v593 = vstv %s375
          %v594 = vmul.f32 %v592, %v593
          %v595 = vand.u32 2147483647, %v594
          %v596 = vsub.f32 0.0, %v595
          %v597 = vmul.f32 %v596, 1.442695
          %v598 = vpow.pop %v597
          %v599 = vadd.f32 %v598, 1.0
          %v600 = vrcp.pop %v599
          %v601 = vmul.f32 %v599, %v600
          %v602 = vsub.f32 1.0, %v601
          %v603 = vmul.f32 %v600, %v602
          %v604 = vadd.f32 %v600, %v603
          %vm605 = vweird.f32 %v599
          %vm606 = vweird.f32 %v600
          %vm607 = vmor %vm605, %vm606
          %v608 = vsel %vm607, %v600, %v604
          %v609 = vand.u32 2147483647, %v599
          %vm610 = vcmp.eq.f32.partialorder %v609, 8.507059e+37
          %v611 = vand.u32 %v599, 2147483648
          %v612 = vor.u32 1.1754944e-38, %v611
          %v613 = vsel %vm610, %v612, %v608
          %v614 = vmul.f32 1.0, %v613
          %v615 = vmul.f32 %v598, %v614
          %vm616 = vcmp.ge.f32.partialorder %v594, 0.0
          %v617 = vsel %vm616, %v614, %v615
          %v618 = vadd.f32 %v588, %v617
          %v619 = vsel %vm616, %v615, %v614
          %v620 = vadd.f32 %v590, %v619
          %v621 = vstv %s336
          %v622 = vsub.f32 %v410, %v621
          %v623 = vstv %s376
          %v624 = vmul.f32 %v622, %v623
          %v625 = vand.u32 2147483647, %v624
          %v626 = vsub.f32 0.0, %v625
          %v627 = vmul.f32 %v626, 1.442695
          %v628 = vpow.pop %v627
          %v629 = vadd.f32 %v628, 1.0
          %v630 = vrcp.pop %v629
          %v631 = vmul.f32 %v629, %v630
          %v632 = vsub.f32 1.0, %v631
          %v633 = vmul.f32 %v630, %v632
          %v634 = vadd.f32 %v630, %v633
          %vm635 = vweird.f32 %v629
          %vm636 = vweird.f32 %v630
          %vm637 = vmor %vm635, %vm636
          %v638 = vsel %vm637, %v630, %v634
          %v639 = vand.u32 2147483647, %v629
          %vm640 = vcmp.eq.f32.partialorder %v639, 8.507059e+37
          %v641 = vand.u32 %v629, 2147483648
          %v642 = vor.u32 1.1754944e-38, %v641
          %v643 = vsel %vm640, %v642, %v638
          %v644 = vmul.f32 1.0, %v643
          %v645 = vmul.f32 %v628, %v644
          %vm646 = vcmp.ge.f32.partialorder %v624, 0.0
          %v647 = vsel %vm646, %v644, %v645
          %v648 = vadd.f32 %v618, %v647
          %v649 = vsel %vm646, %v645, %v644
          %v650 = vadd.f32 %v620, %v649
          %v651 = vstv %s340
          %v652 = vsub.f32 %v410, %v651
          %v653 = vstv %s377
          %v654 = vmul.f32 %v652, %v653
          %v655 = vand.u32 2147483647, %v654
          %v656 = vsub.f32 0.0, %v655
          %v657 = vmul.f32 %v656, 1.442695
          %v658 = vpow.pop %v657
          %v659 = vadd.f32 %v658, 1.0
          %v660 = vrcp.pop %v659
          %v661 = vmul.f32 %v659, %v660
          %v662 = vsub.f32 1.0, %v661
          %v663 = vmul.f32 %v660, %v662
          %v664 = vadd.f32 %v660, %v663
          %vm665 = vweird.f32 %v659
          %vm666 = vweird.f32 %v660
          %vm667 = vmor %vm665, %vm666
          %v668 = vsel %vm667, %v660, %v664
          %v669 = vand.u32 2147483647, %v659
          %vm670 = vcmp.eq.f32.partialorder %v669, 8.507059e+37
          %v671 = vand.u32 %v659, 2147483648
          %v672 = vor.u32 1.1754944e-38, %v671
          %v673 = vsel %vm670, %v672, %v668
          %v674 = vmul.f32 1.0, %v673
          %v675 = vmul.f32 %v658, %v674
          %vm676 = vcmp.ge.f32.partialorder %v654, 0.0
          %v677 = vsel %vm676, %v674, %v675
          %v678 = vadd.f32 %v648, %v677
          %v679 = vsel %vm676, %v675, %v674
          %v680 = vadd.f32 %v650, %v679
          %v681 = vstv %s344
          %v682 = vsub.f32 %v410, %v681
          %v683 = vstv %s378
          %v684 = vmul.f32 %v682, %v683
          %v685 = vand.u32 2147483647, %v684
          %v686 = vsub.f32 0.0, %v685
          %v687 = vmul.f32 %v686, 1.442695
          %v688 = vpow.pop %v687
          %v689 = vadd.f32 %v688, 1.0
          %v690 = vrcp.pop %v689
          %v691 = vmul.f32 %v689, %v690
          %v692 = vsub.f32 1.0, %v691
          %v693 = vmul.f32 %v690, %v692
          %v694 = vadd.f32 %v690, %v693
          %vm695 = vweird.f32 %v689
          %vm696 = vweird.f32 %v690
          %vm697 = vmor %vm695, %vm696
          %v698 = vsel %vm697, %v690, %v694
          %v699 = vand.u32 2147483647, %v689
          %vm700 = vcmp.eq.f32.partialorder %v699, 8.507059e+37
          %v701 = vand.u32 %v689, 2147483648
          %v702 = vor.u32 1.1754944e-38, %v701
          %v703 = vsel %vm700, %v702, %v698
          %v704 = vmul.f32 1.0, %v703
          %v705 = vmul.f32 %v688, %v704
          %vm706 = vcmp.ge.f32.partialorder %v684, 0.0
          %v707 = vsel %vm706, %v704, %v705
          %v708 = vadd.f32 %v678, %v707
          %v709 = vsel %vm706, %v705, %v704
          %v710 = vadd.f32 %v680, %v709
          %v711 = vstv %s348
          %v712 = vsub.f32 %v410, %v711
          %v713 = vstv %s379
          %v714 = vmul.f32 %v712, %v713
          %v715 = vand.u32 2147483647, %v714
          %v716 = vsub.f32 0.0, %v715
          %v717 = vmul.f32 %v716, 1.442695
          %v718 = vpow.pop %v717
          %v719 = vadd.f32 %v718, 1.0
          %v720 = vrcp.pop %v719
          %v721 = vmul.f32 %v719, %v720
          %v722 = vsub.f32 1.0, %v721
          %v723 = vmul.f32 %v720, %v722
          %v724 = vadd.f32 %v720, %v723
          %vm725 = vweird.f32 %v719
          %vm726 = vweird.f32 %v720
          %vm727 = vmor %vm725, %vm726
          %v728 = vsel %vm727, %v720, %v724
          %v729 = vand.u32 2147483647, %v719
          %vm730 = vcmp.eq.f32.partialorder %v729, 8.507059e+37
          %v731 = vand.u32 %v719, 2147483648
          %v732 = vor.u32 1.1754944e-38, %v731
          %v733 = vsel %vm730, %v732, %v728
          %v734 = vmul.f32 1.0, %v733
          %v735 = vmul.f32 %v718, %v734
          %vm736 = vcmp.ge.f32.partialorder %v714, 0.0
          %v737 = vsel %vm736, %v734, %v735
          %v738 = vadd.f32 %v708, %v737
          %v739 = vsel %vm736, %v735, %v734
          %v740 = vadd.f32 %v710, %v739
          %v741 = vstv %s352
          %v742 = vsub.f32 %v410, %v741
          %v743 = vstv %s380
          %v744 = vmul.f32 %v742, %v743
          %v745 = vand.u32 2147483647, %v744
          %v746 = vsub.f32 0.0, %v745
          %v747 = vmul.f32 %v746, 1.442695
          %v748 = vpow.pop %v747
          %v749 = vadd.f32 %v748, 1.0
          %v750 = vrcp.pop %v749
          %v751 = vmul.f32 %v749, %v750
          %v752 = vsub.f32 1.0, %v751
          %v753 = vmul.f32 %v750, %v752
          %v754 = vadd.f32 %v750, %v753
          %vm755 = vweird.f32 %v749
          %vm756 = vweird.f32 %v750
          %vm757 = vmor %vm755, %vm756
          %v758 = vsel %vm757, %v750, %v754
          %v759 = vand.u32 2147483647, %v749
          %vm760 = vcmp.eq.f32.partialorder %v759, 8.507059e+37
          %v761 = vand.u32 %v749, 2147483648
          %v762 = vor.u32 1.1754944e-38, %v761
          %v763 = vsel %vm760, %v762, %v758
          %v764 = vmul.f32 1.0, %v763
          %v765 = vmul.f32 %v748, %v764
          %vm766 = vcmp.ge.f32.partialorder %v744, 0.0
          %v767 = vsel %vm766, %v764, %v765
          %v768 = vadd.f32 %v738, %v767
          %v769 = vsel %vm766, %v765, %v764
          %v770 = vadd.f32 %v740, %v769
          %v771 = vstv %s356
          %v772 = vsub.f32 %v410, %v771
          %v773 = vstv %s381
          %v774 = vmul.f32 %v772, %v773
          %v775 = vand.u32 2147483647, %v774
          %v776 = vsub.f32 0.0, %v775
          %v777 = vmul.f32 %v776, 1.442695
          %v778 = vpow.pop %v777
          %v779 = vadd.f32 %v778, 1.0
          %v780 = vrcp.pop %v779
          %v781 = vmul.f32 %v779, %v780
          %v782 = vsub.f32 1.0, %v781
          %v783 = vmul.f32 %v780, %v782
          %v784 = vadd.f32 %v780, %v783
          %vm785 = vweird.f32 %v779
          %vm786 = vweird.f32 %v780
          %vm787 = vmor %vm785, %vm786
          %v788 = vsel %vm787, %v780, %v784
          %v789 = vand.u32 2147483647, %v779
          %vm790 = vcmp.eq.f32.partialorder %v789, 8.507059e+37
          %v791 = vand.u32 %v779, 2147483648
          %v792 = vor.u32 1.1754944e-38, %v791
          %v793 = vsel %vm790, %v792, %v788
          %v794 = vmul.f32 1.0, %v793
          %v795 = vmul.f32 %v778, %v794
          %vm796 = vcmp.ge.f32.partialorder %v774, 0.0
          %v797 = vsel %vm796, %v794, %v795
          %v798 = vadd.f32 %v768, %v797
          %v799 = vsel %vm796, %v795, %v794
          %v800 = vadd.f32 %v770, %v799
          %v801 = vstv %s360
          %v802 = vsub.f32 %v410, %v801
          %v803 = vstv %s382
          %v804 = vmul.f32 %v802, %v803
          %v805 = vand.u32 2147483647, %v804
          %v806 = vsub.f32 0.0, %v805
          %v807 = vmul.f32 %v806, 1.442695
          %v808 = vpow.pop %v807
          %v809 = vadd.f32 %v808, 1.0
          %v810 = vrcp.pop %v809
          %v811 = vmul.f32 %v809, %v810
          %v812 = vsub.f32 1.0, %v811
          %v813 = vmul.f32 %v810, %v812
          %v814 = vadd.f32 %v810, %v813
          %vm815 = vweird.f32 %v809
          %vm816 = vweird.f32 %v810
          %vm817 = vmor %vm815, %vm816
          %v818 = vsel %vm817, %v810, %v814
          %v819 = vand.u32 2147483647, %v809
          %vm820 = vcmp.eq.f32.partialorder %v819, 8.507059e+37
          %v821 = vand.u32 %v809, 2147483648
          %v822 = vor.u32 1.1754944e-38, %v821
          %v823 = vsel %vm820, %v822, %v818
          %v824 = vmul.f32 1.0, %v823
          %v825 = vmul.f32 %v808, %v824
          %vm826 = vcmp.ge.f32.partialorder %v804, 0.0
          %v827 = vsel %vm826, %v824, %v825
          %v828 = vadd.f32 %v798, %v827
          %v829 = vsel %vm826, %v825, %v824
          %v830 = vadd.f32 %v800, %v829
          %v831 = vstv %s364
          %v832 = vsub.f32 %v410, %v831
          %v833 = vstv %s383
          %v834 = vmul.f32 %v832, %v833
          %v835 = vand.u32 2147483647, %v834
          %v836 = vsub.f32 0.0, %v835
          %v837 = vmul.f32 %v836, 1.442695
          %v838 = vpow.pop %v837
          %v839 = vadd.f32 %v838, 1.0
          %v840 = vrcp.pop %v839
          %v841 = vmul.f32 %v839, %v840
          %v842 = vsub.f32 1.0, %v841
          %v843 = vmul.f32 %v840, %v842
          %v844 = vadd.f32 %v840, %v843
          %vm845 = vweird.f32 %v839
          %vm846 = vweird.f32 %v840
          %vm847 = vmor %vm845, %vm846
          %v848 = vsel %vm847, %v840, %v844
          %v849 = vand.u32 2147483647, %v839
          %vm850 = vcmp.eq.f32.partialorder %v849, 8.507059e+37
          %v851 = vand.u32 %v839, 2147483648
          %v852 = vor.u32 1.1754944e-38, %v851
          %v853 = vsel %vm850, %v852, %v848
          %v854 = vmul.f32 1.0, %v853
          %v855 = vmul.f32 %v838, %v854
          %vm856 = vcmp.ge.f32.partialorder %v834, 0.0
          %v857 = vsel %vm856, %v854, %v855
          %v858 = vadd.f32 %v828, %v857
          %v859 = vsel %vm856, %v855, %v854
          %v860 = vadd.f32 %v830, %v859
          %v861 = vstv %s368
          %v862 = vsub.f32 %v410, %v861
          %v863 = vstv %s384
          %v864 = vmul.f32 %v862, %v863
          %v865 = vand.u32 2147483647, %v864
          %v866 = vsub.f32 0.0, %v865
          %v867 = vmul.f32 %v866, 1.442695
          %v868 = vpow.pop %v867
          %v869 = vadd.f32 %v868, 1.0
          %v870 = vrcp.pop %v869
          %v871 = vmul.f32 %v869, %v870
          %v872 = vsub.f32 1.0, %v871
          %v873 = vmul.f32 %v870, %v872
          %v874 = vadd.f32 %v870, %v873
          %vm875 = vweird.f32 %v869
          %vm876 = vweird.f32 %v870
          %vm877 = vmor %vm875, %vm876
          %v878 = vsel %vm877, %v870, %v874
          %v879 = vand.u32 2147483647, %v869
          %vm880 = vcmp.eq.f32.partialorder %v879, 8.507059e+37
          %v881 = vand.u32 %v869, 2147483648
          %v882 = vor.u32 1.1754944e-38, %v881
          %v883 = vsel %vm880, %v882, %v878
          %v884 = vmul.f32 1.0, %v883
          %v885 = vmul.f32 %v868, %v884
          %vm886 = vcmp.ge.f32.partialorder %v864, 0.0
          %v887 = vsel %vm886, %v884, %v885
          %v888 = vadd.f32 %v858, %v887
          %v889 = vsel %vm886, %v885, %v884
          %v890 = vadd.f32 %v860, %v889
          %v891 = vmul.f32 %v888, 0.0625
          %v892 = vlog2.pop %v888
          %v893 = vmul.f32 %v892, 0.6931472
          %v894 = vsub.f32 %v893, 2.7725887
          %v895 = vlog2.pop %v890
          %v896 = vmul.f32 %v895, 0.6931472
          %v897 = vsub.f32 %v896, 2.7725887
          %vm898 = vcmp.gt.f32.partialorder %v891, 5e-08
          %vm899 = vcmp.lt.f32.partialorder %v891, 0.99999994
          %vm900 = vmand %vm898, %vm899
          %v901 = vsel %vm900, %v891, 0.5
          %v902 = vmul.f32 %v901, 2.0
          %v903 = vsub.f32 %v902, 1.0
          %v904 = vsub.f32 1.0, %v903
          %v905 = vadd.f32 %v903, 1.0
          %v906 = vmul.f32 %v904, %v905
          %v907 = vlog2.pop %v906
          %v908 = vmul.f32 %v907, 0.6931472
          %v909 = vsub.f32 0.0, %v908
          %v910 = vsub.f32 %v909, 2.5
          %v911 = vmul.f32 %v910, 2.8102264e-08
          %v912 = vadd.f32 %v911, 3.4327394e-07
          %v913 = vmul.f32 %v912, %v910
          %v914 = vadd.f32 %v913, -3.5233877e-06
          %v915 = vmul.f32 %v914, %v910
          %v916 = vadd.f32 %v915, -4.3915065e-06
          %v917 = vmul.f32 %v916, %v910
          %v918 = vadd.f32 %v917, 0.00021858087
          %v919 = vmul.f32 %v918, %v910
          %v920 = vadd.f32 %v919, -0.001253725
          %v921 = vmul.f32 %v920, %v910
          %v922 = vadd.f32 %v921, -0.0041776816
          %v923 = vmul.f32 %v922, %v910
          %v924 = vadd.f32 %v923, 0.24664073
          %v925 = vmul.f32 %v924, %v910
          %v926 = vadd.f32 %v925, 1.5014094
          %v927 = vmax.f32 %v909, 5.0
          %v928 = vrsqrt.pop %v927
          %v929 = vmul.f32 %v928, %v927
          %v930 = vmul.f32 %v929, %v928
          %v931 = vmul.f32 0.5, %v930
          %v932 = vsub.f32 1.5, %v931
          %v933 = vmul.f32 %v928, %v932
          %v934 = vmul.f32 %v927, %v933
          %vm935 = vcmp.eq.f32.partialorder %v927, inf
          %v936 = vsel %vm935, %v927, %v934
          %vm937 = vcmp.eq.f32.partialorder %v927, 0.0
          %v938 = vand.u32 %v927, 2147483648
          %v939 = vsel %vm937, %v938, %v936
          %v940 = vsub.f32 %v939, 3.0
          %v941 = vmul.f32 %v940, -0.00020021426
          %v942 = vadd.f32 %v941, 0.00010095056
          %v943 = vmul.f32 %v942, %v940
          %v944 = vadd.f32 %v943, 0.0013493432
          %v945 = vmul.f32 %v944, %v940
          %v946 = vadd.f32 %v945, -0.0036734284
          %v947 = vmul.f32 %v946, %v940
          %v948 = vadd.f32 %v947, 0.0057395077
          %v949 = vmul.f32 %v948, %v940
          %v950 = vadd.f32 %v949, -0.0076224613
          %v951 = vmul.f32 %v950, %v940
          %v952 = vadd.f32 %v951, 0.0094388705
          %v953 = vmul.f32 %v952, %v940
          %v954 = vadd.f32 %v953, 1.001674
          %v955 = vmul.f32 %v954, %v940
          %v956 = vadd.f32 %v955, 2.8329768
          %vm957 = vcmp.lt.f32.partialorder %v909, 5.0
          %v958 = vsel %vm957, %v926, %v956
          %v959 = vmul.f32 %v958, %v903
          %v960 = vmul.f32 %v959, 1.4142135
          %vm961 = vcmp.ge.f32.partialorder %v891, 0.99999994
          %v962 = vsel %vm961, %v897, 0.0
          %vm963 = vcmp.le.f32.partialorder %v891, 5e-08
          %v964 = vsel %vm963, %v894, 0.0
          %v965 = vmul.f32 %v962, -2.0
          %v966 = vrsqrt.pop %v965
          %v967 = vmul.f32 %v966, %v965
          %v968 = vmul.f32 %v967, %v966
          %v969 = vmul.f32 0.5, %v968
          %v970 = vsub.f32 1.5, %v969
          %v971 = vmul.f32 %v966, %v970
          %v972 = vmul.f32 %v965, %v971
          %vm973 = vcmp.eq.f32.partialorder %v965, inf
          %v974 = vsel %vm973, %v965, %v972
          %vm975 = vcmp.eq.f32.partialorder %v965, 0.0
          %v976 = vand.u32 %v965, 2147483648
          %v977 = vsel %vm975, %v976, %v974
          %v978 = vadd.f32 %v960, %v977
          %v979 = vmul.f32 %v964, -2.0
          %v980 = vrsqrt.pop %v979
          %v981 = vmul.f32 %v980, %v979
          %v982 = vmul.f32 %v981, %v980
          %v983 = vmul.f32 0.5, %v982
          %v984 = vsub.f32 1.5, %v983
          %v985 = vmul.f32 %v980, %v984
          %v986 = vmul.f32 %v979, %v985
          %vm987 = vcmp.eq.f32.partialorder %v979, inf
          %v988 = vsel %vm987, %v979, %v986
          %vm989 = vcmp.eq.f32.partialorder %v979, 0.0
          %v990 = vand.u32 %v979, 2147483648
          %v991 = vsel %vm989, %v990, %v988
          %v992 = vsub.f32 %v978, %v991
          %vm993 = vcmp.lt.f32.partialorder %v992, %v303
          %v994 = vsel %vm993, %v410, %v407
          %vm995 = vcmp.gt.f32.partialorder %v992, %v303
          %v996 = vsel %vm995, %v410, %v408
        $region53: #{tpu_custom_call.1} parent=35 // loop_footer
          %s406 = sadd.s32 1, %s402
        $region54: #{tpu_custom_call.1} parent=35 // loop_footer_branch
          %401 = sbr.rel target = $region50
        $region55: #{tpu_custom_call.1} parent=35 // loop_exit
          _
        %v997 = vadd.f32 %v407, %v408
        %v998 = vmul.f32 %v997, 0.5
        %v999 = vstv %s304
        %v1000 = vsub.f32 %v998, %v999
        %v1001 = vstv %s369
        %v1002 = vmul.f32 %v1000, %v1001
        %v1003 = vsub.f32 0.0, %v1002
        %v1004 = vmax.f32 %v1003, 0.0
        %v1005 = vand.u32 2147483647, %v1003
        %v1006 = vsub.f32 0.0, %v1005
        %v1007 = vmul.f32 %v1006, 1.442695
        %v1008 = vpow.pop %v1007
        %v1009 = vadd.f32 %v1008, 1.0
        %v1010 = vlog2.pop %v1009
        %v1011 = vmul.f32 %v1010, 0.6931472
        %v1012 = vadd.f32 %v1004, %v1011
        %v1013 = vsub.f32 0.0, %v1012
        %v1014 = vsub.f32 %v1003, %v1012
        %v1015 = vmul.f32 %v1012, 2.0
        %v1016 = vsub.f32 %v1003, %v1015
        %v1017 = vstv %s385
        %v1018 = vsub.f32 %v1016, %v1017
        %v1019 = vstv %s312
        %v1020 = vsub.f32 %v998, %v1019
        %v1021 = vstv %s370
        %v1022 = vmul.f32 %v1020, %v1021
        %v1023 = vsub.f32 0.0, %v1022
        %v1024 = vmax.f32 %v1023, 0.0
        %v1025 = vand.u32 2147483647, %v1023
        %v1026 = vsub.f32 0.0, %v1025
        %v1027 = vmul.f32 %v1026, 1.442695
        %v1028 = vpow.pop %v1027
        %v1029 = vadd.f32 %v1028, 1.0
        %v1030 = vlog2.pop %v1029
        %v1031 = vmul.f32 %v1030, 0.6931472
        %v1032 = vadd.f32 %v1024, %v1031
        %v1033 = vsub.f32 0.0, %v1032
        %v1034 = vsub.f32 %v1023, %v1032
        %v1035 = vmul.f32 %v1032, 2.0
        %v1036 = vsub.f32 %v1023, %v1035
        %v1037 = vstv %s386
        %v1038 = vsub.f32 %v1036, %v1037
        %v1039 = vstv %s316
        %v1040 = vsub.f32 %v998, %v1039
        %v1041 = vstv %s371
        %v1042 = vmul.f32 %v1040, %v1041
        %v1043 = vsub.f32 0.0, %v1042
        %v1044 = vmax.f32 %v1043, 0.0
        %v1045 = vand.u32 2147483647, %v1043
        %v1046 = vsub.f32 0.0, %v1045
        %v1047 = vmul.f32 %v1046, 1.442695
        %v1048 = vpow.pop %v1047
        %v1049 = vadd.f32 %v1048, 1.0
        %v1050 = vlog2.pop %v1049
        %v1051 = vmul.f32 %v1050, 0.6931472
        %v1052 = vadd.f32 %v1044, %v1051
        %v1053 = vsub.f32 0.0, %v1052
        %v1054 = vsub.f32 %v1043, %v1052
        %v1055 = vmul.f32 %v1052, 2.0
        %v1056 = vsub.f32 %v1043, %v1055
        %v1057 = vstv %s387
        %v1058 = vsub.f32 %v1056, %v1057
        %v1059 = vstv %s320
        %v1060 = vsub.f32 %v998, %v1059
        %v1061 = vstv %s372
        %v1062 = vmul.f32 %v1060, %v1061
        %v1063 = vsub.f32 0.0, %v1062
        %v1064 = vmax.f32 %v1063, 0.0
        %v1065 = vand.u32 2147483647, %v1063
        %v1066 = vsub.f32 0.0, %v1065
        %v1067 = vmul.f32 %v1066, 1.442695
        %v1068 = vpow.pop %v1067
        %v1069 = vadd.f32 %v1068, 1.0
        %v1070 = vlog2.pop %v1069
        %v1071 = vmul.f32 %v1070, 0.6931472
        %v1072 = vadd.f32 %v1064, %v1071
        %v1073 = vsub.f32 0.0, %v1072
        %v1074 = vsub.f32 %v1063, %v1072
        %v1075 = vmul.f32 %v1072, 2.0
        %v1076 = vsub.f32 %v1063, %v1075
        %v1077 = vstv %s388
        %v1078 = vsub.f32 %v1076, %v1077
        %v1079 = vstv %s324
        %v1080 = vsub.f32 %v998, %v1079
        %v1081 = vstv %s373
        %v1082 = vmul.f32 %v1080, %v1081
        %v1083 = vsub.f32 0.0, %v1082
        %v1084 = vmax.f32 %v1083, 0.0
        %v1085 = vand.u32 2147483647, %v1083
        %v1086 = vsub.f32 0.0, %v1085
        %v1087 = vmul.f32 %v1086, 1.442695
        %v1088 = vpow.pop %v1087
        %v1089 = vadd.f32 %v1088, 1.0
        %v1090 = vlog2.pop %v1089
        %v1091 = vmul.f32 %v1090, 0.6931472
        %v1092 = vadd.f32 %v1084, %v1091
        %v1093 = vsub.f32 0.0, %v1092
        %v1094 = vsub.f32 %v1083, %v1092
        %v1095 = vmul.f32 %v1092, 2.0
        %v1096 = vsub.f32 %v1083, %v1095
        %v1097 = vstv %s389
        %v1098 = vsub.f32 %v1096, %v1097
        %v1099 = vstv %s328
        %v1100 = vsub.f32 %v998, %v1099
        %v1101 = vstv %s374
        %v1102 = vmul.f32 %v1100, %v1101
        %v1103 = vsub.f32 0.0, %v1102
        %v1104 = vmax.f32 %v1103, 0.0
        %v1105 = vand.u32 2147483647, %v1103
        %v1106 = vsub.f32 0.0, %v1105
        %v1107 = vmul.f32 %v1106, 1.442695
        %v1108 = vpow.pop %v1107
        %v1109 = vadd.f32 %v1108, 1.0
        %v1110 = vlog2.pop %v1109
        %v1111 = vmul.f32 %v1110, 0.6931472
        %v1112 = vadd.f32 %v1104, %v1111
        %v1113 = vsub.f32 0.0, %v1112
        %v1114 = vsub.f32 %v1103, %v1112
        %v1115 = vmul.f32 %v1112, 2.0
        %v1116 = vsub.f32 %v1103, %v1115
        %v1117 = vstv %s390
        %v1118 = vsub.f32 %v1116, %v1117
        %v1119 = vstv %s332
        %v1120 = vsub.f32 %v998, %v1119
        %v1121 = vstv %s375
        %v1122 = vmul.f32 %v1120, %v1121
        %v1123 = vsub.f32 0.0, %v1122
        %v1124 = vmax.f32 %v1123, 0.0
        %v1125 = vand.u32 2147483647, %v1123
        %v1126 = vsub.f32 0.0, %v1125
        %v1127 = vmul.f32 %v1126, 1.442695
        %v1128 = vpow.pop %v1127
        %v1129 = vadd.f32 %v1128, 1.0
        %v1130 = vlog2.pop %v1129
        %v1131 = vmul.f32 %v1130, 0.6931472
        %v1132 = vadd.f32 %v1124, %v1131
        %v1133 = vsub.f32 0.0, %v1132
        %v1134 = vsub.f32 %v1123, %v1132
        %v1135 = vmul.f32 %v1132, 2.0
        %v1136 = vsub.f32 %v1123, %v1135
        %v1137 = vstv %s391
        %v1138 = vsub.f32 %v1136, %v1137
        %v1139 = vstv %s336
        %v1140 = vsub.f32 %v998, %v1139
        %v1141 = vstv %s376
        %v1142 = vmul.f32 %v1140, %v1141
        %v1143 = vsub.f32 0.0, %v1142
        %v1144 = vmax.f32 %v1143, 0.0
        %v1145 = vand.u32 2147483647, %v1143
        %v1146 = vsub.f32 0.0, %v1145
        %v1147 = vmul.f32 %v1146, 1.442695
        %v1148 = vpow.pop %v1147
        %v1149 = vadd.f32 %v1148, 1.0
        %v1150 = vlog2.pop %v1149
        %v1151 = vmul.f32 %v1150, 0.6931472
        %v1152 = vadd.f32 %v1144, %v1151
        %v1153 = vsub.f32 0.0, %v1152
        %v1154 = vsub.f32 %v1143, %v1152
        %v1155 = vmul.f32 %v1152, 2.0
        %v1156 = vsub.f32 %v1143, %v1155
        %v1157 = vstv %s392
        %v1158 = vsub.f32 %v1156, %v1157
        %v1159 = vstv %s340
        %v1160 = vsub.f32 %v998, %v1159
        %v1161 = vstv %s377
        %v1162 = vmul.f32 %v1160, %v1161
        %v1163 = vsub.f32 0.0, %v1162
        %v1164 = vmax.f32 %v1163, 0.0
        %v1165 = vand.u32 2147483647, %v1163
        %v1166 = vsub.f32 0.0, %v1165
        %v1167 = vmul.f32 %v1166, 1.442695
        %v1168 = vpow.pop %v1167
        %v1169 = vadd.f32 %v1168, 1.0
        %v1170 = vlog2.pop %v1169
        %v1171 = vmul.f32 %v1170, 0.6931472
        %v1172 = vadd.f32 %v1164, %v1171
        %v1173 = vsub.f32 0.0, %v1172
        %v1174 = vsub.f32 %v1163, %v1172
        %v1175 = vmul.f32 %v1172, 2.0
        %v1176 = vsub.f32 %v1163, %v1175
        %v1177 = vstv %s393
        %v1178 = vsub.f32 %v1176, %v1177
        %v1179 = vstv %s344
        %v1180 = vsub.f32 %v998, %v1179
        %v1181 = vstv %s378
        %v1182 = vmul.f32 %v1180, %v1181
        %v1183 = vsub.f32 0.0, %v1182
        %v1184 = vmax.f32 %v1183, 0.0
        %v1185 = vand.u32 2147483647, %v1183
        %v1186 = vsub.f32 0.0, %v1185
        %v1187 = vmul.f32 %v1186, 1.442695
        %v1188 = vpow.pop %v1187
        %v1189 = vadd.f32 %v1188, 1.0
        %v1190 = vlog2.pop %v1189
        %v1191 = vmul.f32 %v1190, 0.6931472
        %v1192 = vadd.f32 %v1184, %v1191
        %v1193 = vsub.f32 0.0, %v1192
        %v1194 = vsub.f32 %v1183, %v1192
        %v1195 = vmul.f32 %v1192, 2.0
        %v1196 = vsub.f32 %v1183, %v1195
        %v1197 = vstv %s394
        %v1198 = vsub.f32 %v1196, %v1197
        %v1199 = vstv %s348
        %v1200 = vsub.f32 %v998, %v1199
        %v1201 = vstv %s379
        %v1202 = vmul.f32 %v1200, %v1201
        %v1203 = vsub.f32 0.0, %v1202
        %v1204 = vmax.f32 %v1203, 0.0
        %v1205 = vand.u32 2147483647, %v1203
        %v1206 = vsub.f32 0.0, %v1205
        %v1207 = vmul.f32 %v1206, 1.442695
        %v1208 = vpow.pop %v1207
        %v1209 = vadd.f32 %v1208, 1.0
        %v1210 = vlog2.pop %v1209
        %v1211 = vmul.f32 %v1210, 0.6931472
        %v1212 = vadd.f32 %v1204, %v1211
        %v1213 = vsub.f32 0.0, %v1212
        %v1214 = vsub.f32 %v1203, %v1212
        %v1215 = vmul.f32 %v1212, 2.0
        %v1216 = vsub.f32 %v1203, %v1215
        %v1217 = vstv %s395
        %v1218 = vsub.f32 %v1216, %v1217
        %v1219 = vstv %s352
        %v1220 = vsub.f32 %v998, %v1219
        %v1221 = vstv %s380
        %v1222 = vmul.f32 %v1220, %v1221
        %v1223 = vsub.f32 0.0, %v1222
        %v1224 = vmax.f32 %v1223, 0.0
        %v1225 = vand.u32 2147483647, %v1223
        %v1226 = vsub.f32 0.0, %v1225
        %v1227 = vmul.f32 %v1226, 1.442695
        %v1228 = vpow.pop %v1227
        %v1229 = vadd.f32 %v1228, 1.0
        %v1230 = vlog2.pop %v1229
        %v1231 = vmul.f32 %v1230, 0.6931472
        %v1232 = vadd.f32 %v1224, %v1231
        %v1233 = vsub.f32 0.0, %v1232
        %v1234 = vsub.f32 %v1223, %v1232
        %v1235 = vmul.f32 %v1232, 2.0
        %v1236 = vsub.f32 %v1223, %v1235
        %v1237 = vstv %s396
        %v1238 = vsub.f32 %v1236, %v1237
        %v1239 = vstv %s356
        %v1240 = vsub.f32 %v998, %v1239
        %v1241 = vstv %s381
        %v1242 = vmul.f32 %v1240, %v1241
        %v1243 = vsub.f32 0.0, %v1242
        %v1244 = vmax.f32 %v1243, 0.0
        %v1245 = vand.u32 2147483647, %v1243
        %v1246 = vsub.f32 0.0, %v1245
        %v1247 = vmul.f32 %v1246, 1.442695
        %v1248 = vpow.pop %v1247
        %v1249 = vadd.f32 %v1248, 1.0
        %v1250 = vlog2.pop %v1249
        %v1251 = vmul.f32 %v1250, 0.6931472
        %v1252 = vadd.f32 %v1244, %v1251
        %v1253 = vsub.f32 0.0, %v1252
        %v1254 = vsub.f32 %v1243, %v1252
        %v1255 = vmul.f32 %v1252, 2.0
        %v1256 = vsub.f32 %v1243, %v1255
        %v1257 = vstv %s397
        %v1258 = vsub.f32 %v1256, %v1257
        %v1259 = vstv %s360
        %v1260 = vsub.f32 %v998, %v1259
        %v1261 = vstv %s382
        %v1262 = vmul.f32 %v1260, %v1261
        %v1263 = vsub.f32 0.0, %v1262
        %v1264 = vmax.f32 %v1263, 0.0
        %v1265 = vand.u32 2147483647, %v1263
        %v1266 = vsub.f32 0.0, %v1265
        %v1267 = vmul.f32 %v1266, 1.442695
        %v1268 = vpow.pop %v1267
        %v1269 = vadd.f32 %v1268, 1.0
        %v1270 = vlog2.pop %v1269
        %v1271 = vmul.f32 %v1270, 0.6931472
        %v1272 = vadd.f32 %v1264, %v1271
        %v1273 = vsub.f32 0.0, %v1272
        %v1274 = vsub.f32 %v1263, %v1272
        %v1275 = vmul.f32 %v1272, 2.0
        %v1276 = vsub.f32 %v1263, %v1275
        %v1277 = vstv %s398
        %v1278 = vsub.f32 %v1276, %v1277
        %v1279 = vstv %s364
        %v1280 = vsub.f32 %v998, %v1279
        %v1281 = vstv %s383
        %v1282 = vmul.f32 %v1280, %v1281
        %v1283 = vsub.f32 0.0, %v1282
        %v1284 = vmax.f32 %v1283, 0.0
        %v1285 = vand.u32 2147483647, %v1283
        %v1286 = vsub.f32 0.0, %v1285
        %v1287 = vmul.f32 %v1286, 1.442695
        %v1288 = vpow.pop %v1287
        %v1289 = vadd.f32 %v1288, 1.0
        %v1290 = vlog2.pop %v1289
        %v1291 = vmul.f32 %v1290, 0.6931472
        %v1292 = vadd.f32 %v1284, %v1291
        %v1293 = vsub.f32 0.0, %v1292
        %v1294 = vsub.f32 %v1283, %v1292
        %v1295 = vmul.f32 %v1292, 2.0
        %v1296 = vsub.f32 %v1283, %v1295
        %v1297 = vstv %s399
        %v1298 = vsub.f32 %v1296, %v1297
        %v1299 = vstv %s368
        %v1300 = vsub.f32 %v998, %v1299
        %v1301 = vstv %s384
        %v1302 = vmul.f32 %v1300, %v1301
        %v1303 = vsub.f32 0.0, %v1302
        %v1304 = vmax.f32 %v1303, 0.0
        %v1305 = vand.u32 2147483647, %v1303
        %v1306 = vsub.f32 0.0, %v1305
        %v1307 = vmul.f32 %v1306, 1.442695
        %v1308 = vpow.pop %v1307
        %v1309 = vadd.f32 %v1308, 1.0
        %v1310 = vlog2.pop %v1309
        %v1311 = vmul.f32 %v1310, 0.6931472
        %v1312 = vadd.f32 %v1304, %v1311
        %v1313 = vsub.f32 0.0, %v1312
        %v1314 = vsub.f32 %v1303, %v1312
        %v1315 = vmul.f32 %v1312, 2.0
        %v1316 = vsub.f32 %v1303, %v1315
        %v1317 = vstv %s400
        %v1318 = vsub.f32 %v1316, %v1317
        %v1319 = vmax.f32 %v1013, %v1033
        %v1320 = vmax.f32 %v1319, %v1053
        %v1321 = vmax.f32 %v1320, %v1073
        %v1322 = vmax.f32 %v1321, %v1093
        %v1323 = vmax.f32 %v1322, %v1113
        %v1324 = vmax.f32 %v1323, %v1133
        %v1325 = vmax.f32 %v1324, %v1153
        %v1326 = vmax.f32 %v1325, %v1173
        %v1327 = vmax.f32 %v1326, %v1193
        %v1328 = vmax.f32 %v1327, %v1213
        %v1329 = vmax.f32 %v1328, %v1233
        %v1330 = vmax.f32 %v1329, %v1253
        %v1331 = vmax.f32 %v1330, %v1273
        %v1332 = vmax.f32 %v1331, %v1293
        %v1333 = vmax.f32 %v1332, %v1313
        %v1334 = vsub.f32 %v1013, %v1333
        %v1335 = vmul.f32 %v1334, 1.442695
        %v1336 = vpow.pop %v1335
        %v1337 = vsub.f32 %v1033, %v1333
        %v1338 = vmul.f32 %v1337, 1.442695
        %v1339 = vpow.pop %v1338
        %v1340 = vadd.f32 %v1336, %v1339
        %v1341 = vsub.f32 %v1053, %v1333
        %v1342 = vmul.f32 %v1341, 1.442695
        %v1343 = vpow.pop %v1342
        %v1344 = vadd.f32 %v1340, %v1343
        %v1345 = vsub.f32 %v1073, %v1333
        %v1346 = vmul.f32 %v1345, 1.442695
        %v1347 = vpow.pop %v1346
        %v1348 = vadd.f32 %v1344, %v1347
        %v1349 = vsub.f32 %v1093, %v1333
        %v1350 = vmul.f32 %v1349, 1.442695
        %v1351 = vpow.pop %v1350
        %v1352 = vadd.f32 %v1348, %v1351
        %v1353 = vsub.f32 %v1113, %v1333
        %v1354 = vmul.f32 %v1353, 1.442695
        %v1355 = vpow.pop %v1354
        %v1356 = vadd.f32 %v1352, %v1355
        %v1357 = vsub.f32 %v1133, %v1333
        %v1358 = vmul.f32 %v1357, 1.442695
        %v1359 = vpow.pop %v1358
        %v1360 = vadd.f32 %v1356, %v1359
        %v1361 = vsub.f32 %v1153, %v1333
        %v1362 = vmul.f32 %v1361, 1.442695
        %v1363 = vpow.pop %v1362
        %v1364 = vadd.f32 %v1360, %v1363
        %v1365 = vsub.f32 %v1173, %v1333
        %v1366 = vmul.f32 %v1365, 1.442695
        %v1367 = vpow.pop %v1366
        %v1368 = vadd.f32 %v1364, %v1367
        %v1369 = vsub.f32 %v1193, %v1333
        %v1370 = vmul.f32 %v1369, 1.442695
        %v1371 = vpow.pop %v1370
        %v1372 = vadd.f32 %v1368, %v1371
        %v1373 = vsub.f32 %v1213, %v1333
        %v1374 = vmul.f32 %v1373, 1.442695
        %v1375 = vpow.pop %v1374
        %v1376 = vadd.f32 %v1372, %v1375
        %v1377 = vsub.f32 %v1233, %v1333
        %v1378 = vmul.f32 %v1377, 1.442695
        %v1379 = vpow.pop %v1378
        %v1380 = vadd.f32 %v1376, %v1379
        %v1381 = vsub.f32 %v1253, %v1333
        %v1382 = vmul.f32 %v1381, 1.442695
        %v1383 = vpow.pop %v1382
        %v1384 = vadd.f32 %v1380, %v1383
        %v1385 = vsub.f32 %v1273, %v1333
        %v1386 = vmul.f32 %v1385, 1.442695
        %v1387 = vpow.pop %v1386
        %v1388 = vadd.f32 %v1384, %v1387
        %v1389 = vsub.f32 %v1293, %v1333
        %v1390 = vmul.f32 %v1389, 1.442695
        %v1391 = vpow.pop %v1390
        %v1392 = vadd.f32 %v1388, %v1391
        %v1393 = vsub.f32 %v1313, %v1333
        %v1394 = vmul.f32 %v1393, 1.442695
        %v1395 = vpow.pop %v1394
        %v1396 = vadd.f32 %v1392, %v1395
        %v1397 = vlog2.pop %v1396
        %v1398 = vmul.f32 %v1397, 0.6931472
        %v1399 = vadd.f32 %v1398, %v1333
        %v1400 = vsub.f32 %v1399, 2.7725887
        %v1401 = vmax.f32 %v1014, %v1034
        %v1402 = vmax.f32 %v1401, %v1054
        %v1403 = vmax.f32 %v1402, %v1074
        %v1404 = vmax.f32 %v1403, %v1094
        %v1405 = vmax.f32 %v1404, %v1114
        %v1406 = vmax.f32 %v1405, %v1134
        %v1407 = vmax.f32 %v1406, %v1154
        %v1408 = vmax.f32 %v1407, %v1174
        %v1409 = vmax.f32 %v1408, %v1194
        %v1410 = vmax.f32 %v1409, %v1214
        %v1411 = vmax.f32 %v1410, %v1234
        %v1412 = vmax.f32 %v1411, %v1254
        %v1413 = vmax.f32 %v1412, %v1274
        %v1414 = vmax.f32 %v1413, %v1294
        %v1415 = vmax.f32 %v1414, %v1314
        %v1416 = vsub.f32 %v1014, %v1415
        %v1417 = vmul.f32 %v1416, 1.442695
        %v1418 = vpow.pop %v1417
        %v1419 = vsub.f32 %v1034, %v1415
        %v1420 = vmul.f32 %v1419, 1.442695
        %v1421 = vpow.pop %v1420
        %v1422 = vadd.f32 %v1418, %v1421
        %v1423 = vsub.f32 %v1054, %v1415
        %v1424 = vmul.f32 %v1423, 1.442695
        %v1425 = vpow.pop %v1424
        %v1426 = vadd.f32 %v1422, %v1425
        %v1427 = vsub.f32 %v1074, %v1415
        %v1428 = vmul.f32 %v1427, 1.442695
        %v1429 = vpow.pop %v1428
        %v1430 = vadd.f32 %v1426, %v1429
        %v1431 = vsub.f32 %v1094, %v1415
        %v1432 = vmul.f32 %v1431, 1.442695
        %v1433 = vpow.pop %v1432
        %v1434 = vadd.f32 %v1430, %v1433
        %v1435 = vsub.f32 %v1114, %v1415
        %v1436 = vmul.f32 %v1435, 1.442695
        %v1437 = vpow.pop %v1436
        %v1438 = vadd.f32 %v1434, %v1437
        %v1439 = vsub.f32 %v1134, %v1415
        %v1440 = vmul.f32 %v1439, 1.442695
        %v1441 = vpow.pop %v1440
        %v1442 = vadd.f32 %v1438, %v1441
        %v1443 = vsub.f32 %v1154, %v1415
        %v1444 = vmul.f32 %v1443, 1.442695
        %v1445 = vpow.pop %v1444
        %v1446 = vadd.f32 %v1442, %v1445
        %v1447 = vsub.f32 %v1174, %v1415
        %v1448 = vmul.f32 %v1447, 1.442695
        %v1449 = vpow.pop %v1448
        %v1450 = vadd.f32 %v1446, %v1449
        %v1451 = vsub.f32 %v1194, %v1415
        %v1452 = vmul.f32 %v1451, 1.442695
        %v1453 = vpow.pop %v1452
        %v1454 = vadd.f32 %v1450, %v1453
        %v1455 = vsub.f32 %v1214, %v1415
        %v1456 = vmul.f32 %v1455, 1.442695
        %v1457 = vpow.pop %v1456
        %v1458 = vadd.f32 %v1454, %v1457
        %v1459 = vsub.f32 %v1234, %v1415
        %v1460 = vmul.f32 %v1459, 1.442695
        %v1461 = vpow.pop %v1460
        %v1462 = vadd.f32 %v1458, %v1461
        %v1463 = vsub.f32 %v1254, %v1415
        %v1464 = vmul.f32 %v1463, 1.442695
        %v1465 = vpow.pop %v1464
        %v1466 = vadd.f32 %v1462, %v1465
        %v1467 = vsub.f32 %v1274, %v1415
        %v1468 = vmul.f32 %v1467, 1.442695
        %v1469 = vpow.pop %v1468
        %v1470 = vadd.f32 %v1466, %v1469
        %v1471 = vsub.f32 %v1294, %v1415
        %v1472 = vmul.f32 %v1471, 1.442695
        %v1473 = vpow.pop %v1472
        %v1474 = vadd.f32 %v1470, %v1473
        %v1475 = vsub.f32 %v1314, %v1415
        %v1476 = vmul.f32 %v1475, 1.442695
        %v1477 = vpow.pop %v1476
        %v1478 = vadd.f32 %v1474, %v1477
        %v1479 = vlog2.pop %v1478
        %v1480 = vmul.f32 %v1479, 0.6931472
        %v1481 = vadd.f32 %v1480, %v1415
        %v1482 = vsub.f32 %v1481, 2.7725887
        %v1483 = vmax.f32 %v1018, %v1038
        %v1484 = vmax.f32 %v1483, %v1058
        %v1485 = vmax.f32 %v1484, %v1078
        %v1486 = vmax.f32 %v1485, %v1098
        %v1487 = vmax.f32 %v1486, %v1118
        %v1488 = vmax.f32 %v1487, %v1138
        %v1489 = vmax.f32 %v1488, %v1158
        %v1490 = vmax.f32 %v1489, %v1178
        %v1491 = vmax.f32 %v1490, %v1198
        %v1492 = vmax.f32 %v1491, %v1218
        %v1493 = vmax.f32 %v1492, %v1238
        %v1494 = vmax.f32 %v1493, %v1258
        %v1495 = vmax.f32 %v1494, %v1278
        %v1496 = vmax.f32 %v1495, %v1298
        %v1497 = vmax.f32 %v1496, %v1318
        %v1498 = vsub.f32 %v1018, %v1497
        %v1499 = vmul.f32 %v1498, 1.442695
        %v1500 = vpow.pop %v1499
        %v1501 = vsub.f32 %v1038, %v1497
        %v1502 = vmul.f32 %v1501, 1.442695
        %v1503 = vpow.pop %v1502
        %v1504 = vadd.f32 %v1500, %v1503
        %v1505 = vsub.f32 %v1058, %v1497
        %v1506 = vmul.f32 %v1505, 1.442695
        %v1507 = vpow.pop %v1506
        %v1508 = vadd.f32 %v1504, %v1507
        %v1509 = vsub.f32 %v1078, %v1497
        %v1510 = vmul.f32 %v1509, 1.442695
        %v1511 = vpow.pop %v1510
        %v1512 = vadd.f32 %v1508, %v1511
        %v1513 = vsub.f32 %v1098, %v1497
        %v1514 = vmul.f32 %v1513, 1.442695
        %v1515 = vpow.pop %v1514
        %v1516 = vadd.f32 %v1512, %v1515
        %v1517 = vsub.f32 %v1118, %v1497
        %v1518 = vmul.f32 %v1517, 1.442695
        %v1519 = vpow.pop %v1518
        %v1520 = vadd.f32 %v1516, %v1519
        %v1521 = vsub.f32 %v1138, %v1497
        %v1522 = vmul.f32 %v1521, 1.442695
        %v1523 = vpow.pop %v1522
        %v1524 = vadd.f32 %v1520, %v1523
        %v1525 = vsub.f32 %v1158, %v1497
        %v1526 = vmul.f32 %v1525, 1.442695
        %v1527 = vpow.pop %v1526
        %v1528 = vadd.f32 %v1524, %v1527
        %v1529 = vsub.f32 %v1178, %v1497
        %v1530 = vmul.f32 %v1529, 1.442695
        %v1531 = vpow.pop %v1530
        %v1532 = vadd.f32 %v1528, %v1531
        %v1533 = vsub.f32 %v1198, %v1497
        %v1534 = vmul.f32 %v1533, 1.442695
        %v1535 = vpow.pop %v1534
        %v1536 = vadd.f32 %v1532, %v1535
        %v1537 = vsub.f32 %v1218, %v1497
        %v1538 = vmul.f32 %v1537, 1.442695
        %v1539 = vpow.pop %v1538
        %v1540 = vadd.f32 %v1536, %v1539
        %v1541 = vsub.f32 %v1238, %v1497
        %v1542 = vmul.f32 %v1541, 1.442695
        %v1543 = vpow.pop %v1542
        %v1544 = vadd.f32 %v1540, %v1543
        %v1545 = vsub.f32 %v1258, %v1497
        %v1546 = vmul.f32 %v1545, 1.442695
        %v1547 = vpow.pop %v1546
        %v1548 = vadd.f32 %v1544, %v1547
        %v1549 = vsub.f32 %v1278, %v1497
        %v1550 = vmul.f32 %v1549, 1.442695
        %v1551 = vpow.pop %v1550
        %v1552 = vadd.f32 %v1548, %v1551
        %v1553 = vsub.f32 %v1298, %v1497
        %v1554 = vmul.f32 %v1553, 1.442695
        %v1555 = vpow.pop %v1554
        %v1556 = vadd.f32 %v1552, %v1555
        %v1557 = vsub.f32 %v1318, %v1497
        %v1558 = vmul.f32 %v1557, 1.442695
        %v1559 = vpow.pop %v1558
        %v1560 = vadd.f32 %v1556, %v1559
        %v1561 = vlog2.pop %v1560
        %v1562 = vmul.f32 %v1561, 0.6931472
        %v1563 = vadd.f32 %v1562, %v1497
        %v1564 = vsub.f32 %v1563, 2.7725887
        %v1565 = vmul.f32 %v1400, 1.442695
        %v1566 = vpow.pop %v1565
        %vm1567 = vcmp.gt.f32.partialorder %v1566, 5e-08
        %vm1568 = vcmp.lt.f32.partialorder %v1566, 0.99999994
        %vm1569 = vmand %vm1567, %vm1568
        %v1570 = vsel %vm1569, 1, 0
        %v1571 = vcvt.s32.f32 %v1570
        %vm1572 = vcmp.le.f32.partialorder %v1566, 5e-08
        %v1573 = vsel %vm1572, 1, 0
        %v1574 = vcvt.s32.f32 %v1573
        %vm1575 = vcmp.ge.f32.partialorder %v1566, 0.99999994
        %v1576 = vsel %vm1575, 1, 0
        %v1577 = vcvt.s32.f32 %v1576
        %v1578 = vmul.f32 %v1566, %v1571
        %v1579 = vsub.f32 1.0, %v1571
        %v1580 = vmul.f32 %v1579, 0.5
        %v1581 = vadd.f32 %v1578, %v1580
        %v1582 = vmul.f32 %v1581, 2.0
        %v1583 = vsub.f32 %v1582, 1.0
        %v1584 = vsub.f32 1.0, %v1583
        %v1585 = vadd.f32 %v1583, 1.0
        %v1586 = vmul.f32 %v1584, %v1585
        %v1587 = vlog2.pop %v1586
        %v1588 = vmul.f32 %v1587, 0.6931472
        %v1589 = vsub.f32 0.0, %v1588
        %v1590 = vsub.f32 %v1589, 2.5
        %v1591 = vmul.f32 %v1590, 2.8102264e-08
        %v1592 = vadd.f32 %v1591, 3.4327394e-07
        %v1593 = vmul.f32 %v1592, %v1590
        %v1594 = vadd.f32 %v1593, -3.5233877e-06
        %v1595 = vmul.f32 %v1594, %v1590
        %v1596 = vadd.f32 %v1595, -4.3915065e-06
        %v1597 = vmul.f32 %v1596, %v1590
        %v1598 = vadd.f32 %v1597, 0.00021858087
        %v1599 = vmul.f32 %v1598, %v1590
        %v1600 = vadd.f32 %v1599, -0.001253725
        %v1601 = vmul.f32 %v1600, %v1590
        %v1602 = vadd.f32 %v1601, -0.0041776816
        %v1603 = vmul.f32 %v1602, %v1590
        %v1604 = vadd.f32 %v1603, 0.24664073
        %v1605 = vmul.f32 %v1604, %v1590
        %v1606 = vadd.f32 %v1605, 1.5014094
        %v1607 = vmax.f32 %v1589, 5.0
        %v1608 = vrsqrt.pop %v1607
        %v1609 = vmul.f32 %v1608, %v1607
        %v1610 = vmul.f32 %v1609, %v1608
        %v1611 = vmul.f32 0.5, %v1610
        %v1612 = vsub.f32 1.5, %v1611
        %v1613 = vmul.f32 %v1608, %v1612
        %v1614 = vmul.f32 %v1607, %v1613
        %vm1615 = vcmp.eq.f32.partialorder %v1607, inf
        %v1616 = vsel %vm1615, %v1607, %v1614
        %vm1617 = vcmp.eq.f32.partialorder %v1607, 0.0
        %v1618 = vand.u32 %v1607, 2147483648
        %v1619 = vsel %vm1617, %v1618, %v1616
        %v1620 = vsub.f32 %v1619, 3.0
        %v1621 = vmul.f32 %v1620, -0.00020021426
        %v1622 = vadd.f32 %v1621, 0.00010095056
        %v1623 = vmul.f32 %v1622, %v1620
        %v1624 = vadd.f32 %v1623, 0.0013493432
        %v1625 = vmul.f32 %v1624, %v1620
        %v1626 = vadd.f32 %v1625, -0.0036734284
        %v1627 = vmul.f32 %v1626, %v1620
        %v1628 = vadd.f32 %v1627, 0.0057395077
        %v1629 = vmul.f32 %v1628, %v1620
        %v1630 = vadd.f32 %v1629, -0.0076224613
        %v1631 = vmul.f32 %v1630, %v1620
        %v1632 = vadd.f32 %v1631, 0.0094388705
        %v1633 = vmul.f32 %v1632, %v1620
        %v1634 = vadd.f32 %v1633, 1.001674
        %v1635 = vmul.f32 %v1634, %v1620
        %v1636 = vadd.f32 %v1635, 2.8329768
        %vm1637 = vcmp.lt.f32.partialorder %v1589, 5.0
        %v1638 = vsel %vm1637, %v1606, %v1636
        %v1639 = vmul.f32 %v1638, %v1583
        %v1640 = vmul.f32 %v1639, 1.4142135
        %v1641 = vmul.f32 %v1482, %v1577
        %v1642 = vmul.f32 %v1400, %v1574
        %v1643 = vmul.f32 %v1641, -2.0
        %v1644 = vrsqrt.pop %v1643
        %v1645 = vmul.f32 %v1644, %v1643
        %v1646 = vmul.f32 %v1645, %v1644
        %v1647 = vmul.f32 0.5, %v1646
        %v1648 = vsub.f32 1.5, %v1647
        %v1649 = vmul.f32 %v1644, %v1648
        %v1650 = vmul.f32 %v1643, %v1649
        %vm1651 = vcmp.eq.f32.partialorder %v1643, inf
        %v1652 = vsel %vm1651, %v1643, %v1650
        %vm1653 = vcmp.eq.f32.partialorder %v1643, 0.0
        %v1654 = vand.u32 %v1643, 2147483648
        %v1655 = vsel %vm1653, %v1654, %v1652
        %v1656 = vadd.f32 %v1640, %v1655
        %v1657 = vmul.f32 %v1642, -2.0
        %v1658 = vrsqrt.pop %v1657
        %v1659 = vmul.f32 %v1658, %v1657
        %v1660 = vmul.f32 %v1659, %v1658
        %v1661 = vmul.f32 0.5, %v1660
        %v1662 = vsub.f32 1.5, %v1661
        %v1663 = vmul.f32 %v1658, %v1662
        %v1664 = vmul.f32 %v1657, %v1663
        %vm1665 = vcmp.eq.f32.partialorder %v1657, inf
        %v1666 = vsel %vm1665, %v1657, %v1664
        %vm1667 = vcmp.eq.f32.partialorder %v1657, 0.0
        %v1668 = vand.u32 %v1657, 2147483648
        %v1669 = vsel %vm1667, %v1668, %v1666
        %v1670 = vsub.f32 %v1656, %v1669
        %v1671 = vmul.f32 %v1670, -0.5
        %v1672 = vmul.f32 %v1671, %v1670
        %v1673 = vsub.f32 %v1672, 0.9189385
        %v1674 = vmul.f32 %v1673, %v1571
        %v1675 = vsub.f32 1.0, %v1574
        %v1676 = vsub.f32 %v1642, %v1675
        %v1677 = vmul.f32 %v1676, -2.0
        %v1678 = vrsqrt.pop %v1677
        %v1679 = vmul.f32 %v1678, %v1677
        %v1680 = vmul.f32 %v1679, %v1678
        %v1681 = vmul.f32 0.5, %v1680
        %v1682 = vsub.f32 1.5, %v1681
        %v1683 = vmul.f32 %v1678, %v1682
        %v1684 = vmul.f32 %v1677, %v1683
        %vm1685 = vcmp.eq.f32.partialorder %v1677, inf
        %v1686 = vsel %vm1685, %v1677, %v1684
        %vm1687 = vcmp.eq.f32.partialorder %v1677, 0.0
        %v1688 = vand.u32 %v1677, 2147483648
        %v1689 = vsel %vm1687, %v1688, %v1686
        %v1690 = vlog2.pop %v1689
        %v1691 = vmul.f32 %v1690, 0.6931472
        %v1692 = vsub.f32 %v1691, %v1400
        %v1693 = vmul.f32 %v1692, %v1574
        %v1694 = vsub.f32 1.0, %v1577
        %v1695 = vsub.f32 %v1641, %v1694
        %v1696 = vmul.f32 %v1695, -2.0
        %v1697 = vrsqrt.pop %v1696
        %v1698 = vmul.f32 %v1697, %v1696
        %v1699 = vmul.f32 %v1698, %v1697
        %v1700 = vmul.f32 0.5, %v1699
        %v1701 = vsub.f32 1.5, %v1700
        %v1702 = vmul.f32 %v1697, %v1701
        %v1703 = vmul.f32 %v1696, %v1702
        %vm1704 = vcmp.eq.f32.partialorder %v1696, inf
        %v1705 = vsel %vm1704, %v1696, %v1703
        %vm1706 = vcmp.eq.f32.partialorder %v1696, 0.0
        %v1707 = vand.u32 %v1696, 2147483648
        %v1708 = vsel %vm1706, %v1707, %v1705
        %v1709 = vlog2.pop %v1708
        %v1710 = vmul.f32 %v1709, 0.6931472
        %v1711 = vsub.f32 %v1710, %v1482
        %v1712 = vmul.f32 %v1711, %v1577
        %v1713 = vadd.f32 %v1674, %v1693
        %v1714 = vadd.f32 %v1713, %v1712
        %1715 = vst [vmem:[%s288] sm:$0xff] %v998
        %v1716 = vsub.f32 %v1564, %v1714
        %1717 = vst [vmem:[%s295] sm:$0xff] %v1716
        %s1718 = sand.u32 %s138, 1
        %s1719 = scalar_lea.sflag [#allocation3], %s1718
        %s1720 = sand.u32 %s138, 1
        %s1721 = smul.addr %s1720, 8
        %s1722 = scalar_lea.vmem [#allocation8], %s1721
        %s1723 = sand.u32 %s166, 1
        %s1724 = scalar_lea.sflag [#allocation10], %s1723
        %s1725 = sand.u32 %s166, 1
        %s1726 = smul.addr %s1725, 8
        %s1727 = scalar_lea.vmem [#allocation9], %s1726
        // Predicated region
        $region56: #{tpu_custom_call.1} parent=35 // pred_check
          %p1728 = pneg %p148
        $region57: #{tpu_custom_call.1} parent=35 // pred_check_branch
          %1730 = sbr.rel (%p1728) target = $region59
        $region58: #{tpu_custom_call.1} parent=35 // pred_region
          %1732 = vsyncadd %s1719, 0
          %s1733 = sadd.s32 %s30, %s29
          %s1734 = smul.addr %s1733, 8
          %s1735 = scalar_lea.hbm %s4, %s1734
          %s1737 = sshll.u32 %s1722, 4
          %s1738 = int_to_ptr.vmem [resolvable:$true] %s1737
          %s1739 = sshll.u32 %s1735, 4
          %s1740 = int_to_ptr.hbm [resolvable:$true] %s1739
          %1742 = dma.vmem_to_hbm [thread:$0]  %s1738, 128, %s1740, %s1719
        $region59: #{tpu_custom_call.1} parent=35 // pred_fallthru
          _
        // Predicated region
        $region60: #{tpu_custom_call.1} parent=35 // pred_check
          %p1743 = pneg %p176
        $region61: #{tpu_custom_call.1} parent=35 // pred_check_branch
          %1745 = sbr.rel (%p1743) target = $region63
        $region62: #{tpu_custom_call.1} parent=35 // pred_region
          %1747 = vsyncadd %s1724, 0
          %s1748 = sadd.s32 %s30, %s29
          %s1749 = smul.addr %s1748, 8
          %s1750 = scalar_lea.hbm %s5, %s1749
          %s1752 = sshll.u32 %s1727, 4
          %s1753 = int_to_ptr.vmem [resolvable:$true] %s1752
          %s1754 = sshll.u32 %s1750, 4
          %s1755 = int_to_ptr.hbm [resolvable:$true] %s1754
          %1757 = dma.vmem_to_hbm [thread:$0]  %s1753, 128, %s1755, %s1724
        $region63: #{tpu_custom_call.1} parent=35 // pred_fallthru
          _
      $region36: #{tpu_custom_call.1} parent=5 // pred_fallthru
        _
      %p1758 = scmp.le.s32.totalorder 2, %s20
      // Predicated region
      $region64: #{tpu_custom_call.1} parent=5 // pred_check
        %p1759 = pneg %p1758
      $region65: #{tpu_custom_call.1} parent=5 // pred_check_branch
        %1761 = sbr.rel (%p1759) target = $region67
      $region66: #{tpu_custom_call.1} parent=5 // pred_region
        %s1762 = ssub.s32 %s20, 2
        // Predicated region
        $region68: #{tpu_custom_call.1} parent=66 // pred_check
          %p1763 = pneg %p154
        $region69: #{tpu_custom_call.1} parent=66 // pred_check_branch
          %1765 = sbr.rel (%p1763) target = $region71
        $region70: #{tpu_custom_call.1} parent=66 // pred_region
          %s1766 = sand.u32 %s139, 1
          %s1767 = scalar_lea.sflag [#allocation3], %s1766
          %s1768 = sand.u32 %s139, 1
          %s1769 = smul.addr %s1768, 8
          %s1770 = scalar_lea.vmem [#allocation8], %s1769
          %1772 = dma.done %s1767, 128
        $region71: #{tpu_custom_call.1} parent=66 // pred_fallthru
          _
        // Predicated region
        $region72: #{tpu_custom_call.1} parent=66 // pred_check
          %p1773 = pneg %p182
        $region73: #{tpu_custom_call.1} parent=66 // pred_check_branch
          %1775 = sbr.rel (%p1773) target = $region75
        $region74: #{tpu_custom_call.1} parent=66 // pred_region
          %s1776 = sand.u32 %s167, 1
          %s1777 = scalar_lea.sflag [#allocation10], %s1776
          %s1778 = sand.u32 %s167, 1
          %s1779 = smul.addr %s1778, 8
          %s1780 = scalar_lea.vmem [#allocation9], %s1779
          %1782 = dma.done %s1777, 128
        $region75: #{tpu_custom_call.1} parent=66 // pred_fallthru
          _
      $region67: #{tpu_custom_call.1} parent=5 // pred_fallthru
        _
    $region6: #{tpu_custom_call.1} parent=1 // loop_footer
      %s24 = sadd.s32 1, %s20
    $region7: #{tpu_custom_call.1} parent=1 // loop_footer_branch
      %19 = sbr.rel target = $region3
    $region8: #{tpu_custom_call.1} parent=1 // loop_exit
      _
    %1783 = vsyncpa [#allocation3], 1
    %s1784 = scalar_lea.sflag [#allocation3], 1
    %1785 = vsyncpa %s1784, 1
    %1786 = vsyncpa [#allocation10], 1
    %s1787 = scalar_lea.sflag [#allocation10], 1
    %1788 = vsyncpa %s1787, 1
    %1789 = vsyncpa [#allocation4], 1
    %s1790 = scalar_lea.sflag [#allocation4], 1
    %1791 = vsyncpa %s1790, 1
    %1792 = vsyncpa [#allocation6], 1

</llo_original>
